<compile_context>
chip_gen: v5e
topology: v5e:2x2
jax: 0.10.0
libtpu: 0.0.40
codegen_flags: <defaults>
</compile_context>

<pallas_src>
import functools

import jax
import jax.numpy as jnp
from jax import lax
from jax.experimental import pallas as pl
from jax.experimental.pallas import tpu as pltpu


def _round_up(x, m):
    return (x + m - 1) // m * m


def _pad_gate_cols(w, H, Hp):
    """Pad the 4 gate blocks of the last axis (4H) independently to 4*Hp."""
    parts = jnp.split(w, 4, axis=-1)
    pad = [(0, 0)] * (w.ndim - 1) + [(0, Hp - H)]
    return jnp.concatenate([jnp.pad(p, pad) for p in parts], axis=-1)


# ----------------------------------------------------------------------------
# Fused multi-layer LSTM kernel (single pallas_call, activations stay in VMEM)
# ----------------------------------------------------------------------------
def _fused_lstm_kernel(n_layers, S, Bc, Hp, Tc, *refs):
    # inputs: x, zb0, wih0, whh0, [wih_l, whh_l, b_l]*(L-1), h0, c0
    n_in = 6 + 3 * (n_layers - 1)
    in_refs = refs[:n_in]
    y_ref, hT_ref, cT_ref = refs[n_in], refs[n_in + 1], refs[n_in + 2]
    gx_scr, y_scr = refs[n_in + 3], refs[n_in + 4]

    x_ref, zb0_ref = in_refs[0], in_refs[1]
    wih_refs = [in_refs[2]]
    whh_refs = [in_refs[3]]
    b_refs = []
    p = 4
    for _ in range(n_layers - 1):
        wih_refs.append(in_refs[p])
        whh_refs.append(in_refs[p + 1])
        b_refs.append(in_refs[p + 2])
        p += 3
    h0_ref, c0_ref = in_refs[p], in_refs[p + 1]

    Ep = x_ref.shape[2]
    G = 4 * Hp
    zb0 = zb0_ref[...]                        # (Bc, 4Hp) f32: z@Wz + b (layer 0)

    # TODO(synk): for large H / many layers, pass weights with
    # memory_space=pl.ANY and double-buffer DMA layer l+1's weights into VMEM
    # while layer l's recurrence runs (make_async_copy + DMA semaphore).
    for l in range(n_layers):
        wih = wih_refs[l][...]                # bf16
        whh = whh_refs[l][...]                # bf16
        out_buf = y_ref if l == n_layers - 1 else y_scr
        h = h0_ref[l]                         # (Bc, Hp) f32
        c = c0_ref[l]

        # Time-blocked hoisted input projection: one (Tc*Bc, D) GEMM per chunk
        # instead of materializing the whole (S, Bc, 4Hp) f32 gate tensor.
        for t0 in range(0, S, Tc):
            tc = min(Tc, S - t0)
            if l == 0:
                x2d = x_ref[pl.ds(t0, tc)].reshape(tc * Bc, Ep)        # bf16
                gx2d = jnp.dot(x2d, wih, preferred_element_type=jnp.float32)
                gx = gx2d.reshape(tc, Bc, G) + zb0[None, :, :]
            else:
                prev2d = y_scr[pl.ds(t0, tc)].reshape(tc * Bc, Hp)     # bf16
                gx2d = (jnp.dot(prev2d, wih,
                                preferred_element_type=jnp.float32)
                        + b_refs[l - 1][...])
                gx = gx2d.reshape(tc, Bc, G)
            gx_scr[pl.ds(0, tc)] = gx

            # TODO(synk): for long S / large Bc, replace this full unroll with
            # lax.fori_loop(..., unroll=2-4) to bound live ranges (vreg spill).
            for tl in range(tc):
                gates = gx_scr[tl] + jnp.dot(h.astype(jnp.bfloat16), whh,
                                             preferred_element_type=jnp.float32)
                # TODO(synk): when H << 128 the 4 per-gate 128-lane pads waste
                # EUP/VPU lanes; packing the 4 gates into one 128-lane block
                # would cut nonlinearity work ~4x.
                i = jax.nn.sigmoid(gates[:, 0 * Hp:1 * Hp])   # lane-aligned
                f = jax.nn.sigmoid(gates[:, 1 * Hp:2 * Hp])
                g = jnp.tanh(gates[:, 2 * Hp:3 * Hp])
                o = jax.nn.sigmoid(gates[:, 3 * Hp:4 * Hp])
                c = f * c + i * g
                h = o * jnp.tanh(c)
                out_buf[t0 + tl] = h.astype(out_buf.dtype)    # bf16 store

        hT_ref[l] = h
        cT_ref[l] = c


def _lstm_vmem_limit(S, Bc, Hp, Ep, L, Tc):
    G = 4 * Hp
    w_bytes = Ep * G * 2 + Hp * G * 2 + (L - 1) * (2 * Hp * G * 2 + G * 4)
    io_bytes = (S * Bc * Ep * 2 + Bc * G * 4 + 2 * L * Bc * Hp * 4    # inputs
                + S * Bc * Hp * 2 + 2 * L * Bc * Hp * 4)              # outputs
    scr_bytes = Tc * Bc * G * 4 + S * Bc * Hp * 2
    total = 2 * (w_bytes + io_bytes) + scr_bytes   # double-buffered blocks
    return int(max(16 << 20, min(total * 2, 48 << 20)))


def _fused_lstm(x_tm, zb0, lstm_params, h0, c0, n_layers, S, Bp, Hp, Ep,
                batch_splits, Tc):
    Bc = Bp // batch_splits
    G = 4 * Hp

    inputs = [x_tm, zb0, lstm_params[0]["wih"], lstm_params[0]["whh"]]
    in_specs = [
        pl.BlockSpec((S, Bc, Ep), lambda b: (0, b, 0)),
        pl.BlockSpec((Bc, G), lambda b: (b, 0)),
        pl.BlockSpec((Ep, G), lambda b: (0, 0)),
        pl.BlockSpec((Hp, G), lambda b: (0, 0)),
    ]
    for l in range(1, n_layers):
        inputs += [lstm_params[l]["wih"], lstm_params[l]["whh"],
                   lstm_params[l]["b"]]
        in_specs += [
            pl.BlockSpec((Hp, G), lambda b: (0, 0)),
            pl.BlockSpec((Hp, G), lambda b: (0, 0)),
            pl.BlockSpec((1, G), lambda b: (0, 0)),
        ]
    inputs += [h0, c0]
    in_specs += [
        pl.BlockSpec((n_layers, Bc, Hp), lambda b: (0, b, 0)),
        pl.BlockSpec((n_layers, Bc, Hp), lambda b: (0, b, 0)),
    ]
    out_specs = (
        pl.BlockSpec((S, Bc, Hp), lambda b: (0, b, 0)),
        pl.BlockSpec((n_layers, Bc, Hp), lambda b: (0, b, 0)),
        pl.BlockSpec((n_layers, Bc, Hp), lambda b: (0, b, 0)),
    )

    kernel = functools.partial(_fused_lstm_kernel, n_layers, S, Bc, Hp, Tc)
    return pl.pallas_call(
        kernel,
        out_shape=(
            jax.ShapeDtypeStruct((S, Bp, Hp), jnp.bfloat16),          # y
            jax.ShapeDtypeStruct((n_layers, Bp, Hp), jnp.float32),    # h_T
            jax.ShapeDtypeStruct((n_layers, Bp, Hp), jnp.float32),    # c_T
        ),
        grid=(batch_splits,),          # batch halves -> 2 TCs on v7x
        in_specs=in_specs,
        out_specs=out_specs,
        scratch_shapes=[
            pltpu.VMEM((Tc, Bc, G), jnp.float32),     # time-blocked input gates
            pltpu.VMEM((S, Bc, Hp), jnp.bfloat16),    # inter-layer activations
        ],
        compiler_params=pltpu.CompilerParams(
            dimension_semantics=("parallel",),
            vmem_limit_bytes=_lstm_vmem_limit(S, Bc, Hp, Ep, n_layers, Tc)),
    )(*inputs)


# ----------------------------------------------------------------------------
# Tiled Linear (fc): logits = y @ W^T + b.
# Grid is (vocab, rows) with vocab as the OUTER (slow) axis so the big weight
# tile stays resident across all row tiles and is streamed from HBM once.
# ----------------------------------------------------------------------------
def _fc_kernel(y_ref, w_ref, b_ref, o_ref):
    o_ref[...] = (jnp.dot(y_ref[...], w_ref[...],
                          preferred_element_type=jnp.float32)
                  + b_ref[...]).astype(o_ref.dtype)


def _pick_fc_tiles(M, Hp, Vp, budget_bytes):
    tn_cands = [c for c in (2048, 1024, 512, 256, 128) if Vp % c == 0] or [Vp]
    tm_cands = [c for c in (1024, 512, 256, 128, 64, 32, 16, 8) if M % c == 0] or [M]
    for tn in tn_cands:           # favor wide vocab tiles (fewer y re-reads)
        for tm in tm_cands:
            need = 2 * (tm * Hp * 2 + Hp * tn * 2 + tn * 4 + tm * tn * 4)
            if need <= budget_bytes:
                return tm, tn
    return tm_cands[-1], tn_cands[-1]


def fc_tiled(y2d_bf16, w_bf16, b_f32):
    M, Hp = y2d_bf16.shape
    Vp = w_bf16.shape[1]
    tm, tn = _pick_fc_tiles(M, Hp, Vp, budget_bytes=32 << 20)
    grid = (Vp // tn, M // tm)
    # TODO(synk): for very large hidden sizes, also tile the contraction (Hp)
    # axis with an "arbitrary" grid dim + f32 accumulator scratch.
    return pl.pallas_call(
        _fc_kernel,
        out_shape=jax.ShapeDtypeStruct((M, Vp), jnp.float32),
        grid=grid,
        in_specs=[
            pl.BlockSpec((tm, Hp), lambda j, i: (i, 0)),
            pl.BlockSpec((Hp, tn), lambda j, i: (0, j)),
            pl.BlockSpec((1, tn), lambda j, i: (0, j)),
        ],
        out_specs=pl.BlockSpec((tm, tn), lambda j, i: (i, j)),
        compiler_params=pltpu.CompilerParams(
            dimension_semantics=("parallel", "parallel"),
            vmem_limit_bytes=48 << 20),
    )(y2d_bf16, w_bf16, b_f32)


# ----------------------------------------------------------------------------
# Parameter construction + preprocessing (padding / transposing / bf16 cast)
# ----------------------------------------------------------------------------
def make_params(key, n_embed, n_z, n_hidden, n_layers, n_vocab):
    """Raw PyTorch-style parameters (uniform init), kept in f32 for reference."""
    bound = 1.0 / jnp.sqrt(n_hidden)
    raw = {"lstm": []}
    for l in range(n_layers):
        d_in = (n_embed + n_z) if l == 0 else n_hidden
        key, k1, k2, k3, k4 = jax.random.split(key, 5)
        raw["lstm"].append({
            "w_ih": jax.random.uniform(k1, (4 * n_hidden, d_in), jnp.float32, -bound, bound),
            "w_hh": jax.random.uniform(k2, (4 * n_hidden, n_hidden), jnp.float32, -bound, bound),
            "b_ih": jax.random.uniform(k3, (4 * n_hidden,), jnp.float32, -bound, bound),
            "b_hh": jax.random.uniform(k4, (4 * n_hidden,), jnp.float32, -bound, bound),
        })
    key, k1, k2 = jax.random.split(key, 3)
    raw["fc_w"] = jax.random.uniform(k1, (n_vocab, n_hidden), jnp.float32, -bound, bound)
    raw["fc_b"] = jax.random.uniform(k2, (n_vocab,), jnp.float32, -bound, bound)
    return raw


def preprocess_params(raw, n_embed, n_z, n_hidden, n_layers, n_vocab):
    """Pad H->mult of 128 (per-gate), pad contraction dims, cast MXU operands to bf16.

    Padded gate columns keep a ZERO bias so padded lanes stay inert
    (i=f=o=0.5, g=0 with zero-padded h0/c0/zb0 => h,c stay 0).
    """
    H = n_hidden
    Hp = _round_up(H, 128)
    Ep = _round_up(n_embed, 128)
    Vp = _round_up(n_vocab, 128)
    proc = {"H": H, "Hp": Hp, "Ep": Ep, "Vp": Vp, "n_embed": n_embed,
            "n_z": n_z, "n_layers": n_layers, "n_vocab": n_vocab, "lstm": []}
    for l, p in enumerate(raw["lstm"]):
        wih_t = p["w_ih"].T                       # (d_in, 4H)
        whh_t = p["w_hh"].T                       # (H, 4H)
        b = (p["b_ih"] + p["b_hh"])[None, :]      # (1, 4H)
        whh_p = jnp.pad(_pad_gate_cols(whh_t, H, Hp), ((0, Hp - H), (0, 0)))
        b_p = _pad_gate_cols(b, H, Hp)            # (1, 4Hp)
        if l == 0:
            wih_x = jnp.pad(_pad_gate_cols(wih_t[:n_embed], H, Hp),
                            ((0, Ep - n_embed), (0, 0)))        # (Ep, 4Hp)
            wih_z = _pad_gate_cols(wih_t[n_embed:], H, Hp)      # (n_z, 4Hp), f32
            proc["lstm"].append({
                "wih": wih_x.astype(jnp.bfloat16),
                "wih_z": wih_z,
                "b": b_p,
                "whh": whh_p.astype(jnp.bfloat16),
            })
        else:
            wih_p = jnp.pad(_pad_gate_cols(wih_t, H, Hp), ((0, Hp - H), (0, 0)))
            proc["lstm"].append({
                "wih": wih_p.astype(jnp.bfloat16),
                "whh": whh_p.astype(jnp.bfloat16),
                "b": b_p,
            })
    fc_w_t = raw["fc_w"].T                                       # (H, V)
    proc["fc_w"] = jnp.pad(fc_w_t, ((0, Hp - H), (0, Vp - n_vocab))).astype(jnp.bfloat16)
    proc["fc_b"] = jnp.pad(raw["fc_b"][None, :], ((0, 0), (0, Vp - n_vocab)))
    return proc


# ----------------------------------------------------------------------------
# Generator forward (padding glue in JAX, compute in the Pallas kernels)
# ----------------------------------------------------------------------------
def generator_forward(x, z, proc, g_hidden=None):
    B, S, n_embed = x.shape
    L = proc["n_layers"]
    H, Hp, Ep = proc["H"], proc["Hp"], proc["Ep"]
    V, Vp = proc["n_vocab"], proc["Vp"]
    Bp = _round_up(B, 8)

    # z is constant over time: fold z @ W_z + (b_ih + b_hh) into a per-batch
    # bias for layer 0 (replaces the [x, z] concat and S redundant z-matmuls).
    zb0 = jnp.dot(z, proc["lstm"][0]["wih_z"]) + proc["lstm"][0]["b"]  # (B, 4Hp)
    zb0 = jnp.pad(zb0, ((0, Bp - B), (0, 0)))

    # x -> time-major, batch/feature padded, bf16 MXU operand
    x_p = jnp.pad(x, ((0, Bp - B), (0, 0), (0, Ep - n_embed)))
    x_tm = jnp.transpose(x_p, (1, 0, 2)).astype(jnp.bfloat16)          # (S, Bp, Ep)

    if g_hidden is None:
        h0 = jnp.zeros((L, Bp, Hp), jnp.float32)
        c0 = jnp.zeros((L, Bp, Hp), jnp.float32)
    else:
        h0_u, c0_u = g_hidden
        h0 = jnp.pad(h0_u.astype(jnp.float32), ((0, 0), (0, Bp - B), (0, Hp - H)))
        c0 = jnp.pad(c0_u.astype(jnp.float32), ((0, 0), (0, Bp - B), (0, Hp - H)))

    # Split the padded batch across the two v7x TensorCores when possible;
    # on 1-TC chips the size-2 grid just runs two cheap sequential steps.
    batch_splits = 2 if Bp % 16 == 0 else 1
    Tc = min(S, 32)   # time-chunk for the hoisted input-gate GEMM

    y, hT, cT = _fused_lstm(x_tm, zb0, proc["lstm"], h0, c0,
                            L, S, Bp, Hp, Ep, batch_splits, Tc)

    logits_p = fc_tiled(y.reshape(S * Bp, Hp), proc["fc_w"], proc["fc_b"])
    logits = jnp.transpose(logits_p.reshape(S, Bp, Vp), (1, 0, 2))[:B, :, :V]

    return logits, (hT[:, :B, :H], cT[:, :B, :H])


# ----------------------------------------------------------------------------
# Pure-JAX f32 reference (for a loose numerical sanity check)
# ----------------------------------------------------------------------------
def _reference_forward(x, z, raw):
    B, S, _ = x.shape
    L = len(raw["lstm"])
    H = raw["lstm"][0]["w_hh"].shape[1]
    z_rep = jnp.broadcast_to(z[:, None, :], (B, S, z.shape[-1]))
    layer_in = jnp.concatenate([x, z_rep], axis=2)
    hs, cs = [], []
    for l in range(L):
        p = raw["lstm"][l]
        wih_t, whh_t = p["w_ih"].T, p["w_hh"].T
        b = p["b_ih"] + p["b_hh"]

        def step(carry, x_t, wih_t=wih_t, whh_t=whh_t, b=b):
            h, c = carry
            gates = x_t @ wih_t + h @ whh_t + b
            i = jax.nn.sigmoid(gates[:, 0 * H:1 * H])
            f = jax.nn.sigmoid(gates[:, 1 * H:2 * H])
            g = jnp.tanh(gates[:, 2 * H:3 * H])
            o = jax.nn.sigmoid(gates[:, 3 * H:4 * H])
            c_new = f * c + i * g
            h_new = o * jnp.tanh(c_new)
            return (h_new, c_new), h_new

        init = (jnp.zeros((B, H), jnp.float32), jnp.zeros((B, H), jnp.float32))
        (hT, cT), ys = lax.scan(step, init, jnp.transpose(layer_in, (1, 0, 2)))
        layer_in = jnp.transpose(ys, (1, 0, 2))
        hs.append(hT)
        cs.append(cT)
    logits = layer_in @ raw["fc_w"].T + raw["fc_b"]
    return logits, (jnp.stack(hs), jnp.stack(cs))


if __name__ == "__main__":
    # Small shapes consistent with the module's forward.
    B, S = 2, 8
    n_embed, n_z = 16, 8
    n_hidden_G, n_layers_G = 32, 2
    n_vocab = 50

    key = jax.random.PRNGKey(0)
    kx, kz, kp = jax.random.split(key, 3)
    x = jax.random.normal(kx, (B, S, n_embed), jnp.float32)
    z = jax.random.normal(kz, (B, n_z), jnp.float32)

    raw = make_params(kp, n_embed, n_z, n_hidden_G, n_layers_G, n_vocab)
    proc = preprocess_params(raw, n_embed, n_z, n_hidden_G, n_layers_G, n_vocab)

    fwd = jax.jit(functools.partial(generator_forward, proc=proc))
    logits, (h_T, c_T) = fwd(x, z)
    jax.block_until_ready((logits, h_T, c_T))

    assert logits.shape == (B, S, n_vocab)
    assert h_T.shape == (n_layers_G, B, n_hidden_G)
    assert c_T.shape == (n_layers_G, B, n_hidden_G)

    # Loose tolerance: kernel uses bf16 MXU operands with f32 accumulation.
    ref_logits, (ref_h, ref_c) = _reference_forward(x, z, raw)
    err = max(
        float(jnp.max(jnp.abs(logits - ref_logits))),
        float(jnp.max(jnp.abs(h_T - ref_h))),
        float(jnp.max(jnp.abs(c_T - ref_c))),
    )
    assert err < 1e-1, f"numerical mismatch vs reference: {err}"

    print("KERNEL_OK")
</pallas_src>

<mosaic_0001>
module attributes {stable_mosaic.version = 11 : i64} {
  func.func @_fc_kernel(%arg0: i32, %arg1: i32, %arg2: memref<64x128xbf16, #tpu.memory_space<vmem>>, %arg3: memref<128x128xbf16, #tpu.memory_space<vmem>>, %arg4: memref<1x128xf32, #tpu.memory_space<vmem>>, %arg5: memref<64x128xf32, #tpu.memory_space<vmem>>) attributes {dimension_semantics = [#tpu.dimension_semantics<parallel>, #tpu.dimension_semantics<parallel>], iteration_bounds = array<i64: 1, 1>, scalar_prefetch = 0 : i64, scratch_operands = 0 : i64, tpu.core_type = #tpu.core_type<tc>, window_params = [{transform_indices = @transform_0, window_bounds = array<i64: 64, 128>}, {transform_indices = @transform_1, window_bounds = array<i64: 128, 128>}, {transform_indices = @transform_2, window_bounds = array<i64: 1, 128>}, {transform_indices = @transform_3, window_bounds = array<i64: 64, 128>}]} {
    %c0 = arith.constant 0 : index
    %c0_0 = arith.constant 0 : index
    %0 = vector.load %arg2[%c0, %c0_0] : memref<64x128xbf16, #tpu.memory_space<vmem>>, vector<64x128xbf16>
    %c0_1 = arith.constant 0 : index
    %c0_2 = arith.constant 0 : index
    %1 = vector.load %arg3[%c0_1, %c0_2] : memref<128x128xbf16, #tpu.memory_space<vmem>>, vector<128x128xbf16>
    %cst = arith.constant dense<0.000000e+00> : vector<64x128xf32>
    %2 = tpu.matmul %0, %1, %cst {dimension_numbers = #tpu.dot_dimension_numbers<[1], [0], [0], [1], [0, 0, 1, 1], [], []>} : vector<64x128xbf16>, vector<128x128xbf16>, vector<64x128xf32> -> vector<64x128xf32>
    %c0_3 = arith.constant 0 : index
    %c0_4 = arith.constant 0 : index
    %3 = vector.load %arg4[%c0_3, %c0_4] : memref<1x128xf32, #tpu.memory_space<vmem>>, vector<1x128xf32>
    %4 = vector.broadcast %3 : vector<1x128xf32> to vector<64x128xf32>
    %5 = arith.addf %2, %4 : vector<64x128xf32>
    %c0_5 = arith.constant 0 : index
    %c0_6 = arith.constant 0 : index
    %6 = vector.load %arg5[%c0_5, %c0_6] : memref<64x128xf32, #tpu.memory_space<vmem>>, vector<64x128xf32>
    tpu.vector_store %arg5[%c0_5, %c0_6], %5 {strides = array<i32>} : memref<64x128xf32, #tpu.memory_space<vmem>>, vector<64x128xf32>,
    return
  }
  func.func @transform_0(%arg0: i32, %arg1: i32) -> (i32, i32) {
    %c0_i32 = arith.constant 0 : i32
    %c0_i32_0 = arith.constant 0 : i32
    return %arg1, %c0_i32 : i32, i32
  }
  func.func @transform_1(%arg0: i32, %arg1: i32) -> (i32, i32) {
    %c0_i32 = arith.constant 0 : i32
    %c0_i32_0 = arith.constant 0 : i32
    return %c0_i32, %arg0 : i32, i32
  }
  func.func @transform_2(%arg0: i32, %arg1: i32) -> (i32, i32) {
    %c0_i32 = arith.constant 0 : i32
    %c0_i32_0 = arith.constant 0 : i32
    return %c0_i32, %arg0 : i32, i32
  }
  func.func @transform_3(%arg0: i32, %arg1: i32) -> (i32, i32) {
    %c0_i32 = arith.constant 0 : i32
    return %arg1, %arg0 : i32, i32
  }
}

module attributes {stable_mosaic.version = 11 : i64} {
  func.func @_fused_lstm_kernel(%arg0: i32, %arg1: memref<8x8x128xbf16, #tpu.memory_space<vmem>>, %arg2: memref<8x512xf32, #tpu.memory_space<vmem>>, %arg3: memref<128x512xbf16, #tpu.memory_space<vmem>>, %arg4: memref<128x512xbf16, #tpu.memory_space<vmem>>, %arg5: memref<128x512xbf16, #tpu.memory_space<vmem>>, %arg6: memref<128x512xbf16, #tpu.memory_space<vmem>>, %arg7: memref<1x512xf32, #tpu.memory_space<vmem>>, %arg8: memref<2x8x128xf32, #tpu.memory_space<vmem>>, %arg9: memref<2x8x128xf32, #tpu.memory_space<vmem>>, %arg10: memref<8x8x128xbf16, #tpu.memory_space<vmem>>, %arg11: memref<2x8x128xf32, #tpu.memory_space<vmem>>, %arg12: memref<2x8x128xf32, #tpu.memory_space<vmem>>, %arg13: memref<8x8x512xf32, #tpu.memory_space<vmem>>, %arg14: memref<8x8x128xbf16, #tpu.memory_space<vmem>>) attributes {dimension_semantics = [#tpu.dimension_semantics<parallel>], iteration_bounds = array<i64: 1>, scalar_prefetch = 0 : i64, scratch_operands = 2 : i64, tpu.core_type = #tpu.core_type<tc>, window_params = [{transform_indices = @transform_0, window_bounds = array<i64: 8, 8, 128>}, {transform_indices = @transform_1, window_bounds = array<i64: 8, 512>}, {pipeline_mode = #tpu.pipeline_mode<synchronous>, transform_indices = @transform_2, window_bounds = array<i64: 128, 512>}, {pipeline_mode = #tpu.pipeline_mode<synchronous>, transform_indices = @transform_3, window_bounds = array<i64: 128, 512>}, {pipeline_mode = #tpu.pipeline_mode<synchronous>, transform_indices = @transform_4, window_bounds = array<i64: 128, 512>}, {pipeline_mode = #tpu.pipeline_mode<synchronous>, transform_indices = @transform_5, window_bounds = array<i64: 128, 512>}, {pipeline_mode = #tpu.pipeline_mode<synchronous>, transform_indices = @transform_6, window_bounds = array<i64: 1, 512>}, {transform_indices = @transform_7, window_bounds = array<i64: 2, 8, 128>}, {transform_indices = @transform_8, window_bounds = array<i64: 2, 8, 128>}, {transform_indices = @transform_9, window_bounds = array<i64: 8, 8, 128>}, {transform_indices = @transform_10, window_bounds = array<i64: 2, 8, 128>}, {transform_indices = @transform_11, window_bounds = array<i64: 2, 8, 128>}]} {
    %c0 = arith.constant 0 : index
    %c0_0 = arith.constant 0 : index
    %0 = vector.load %arg2[%c0, %c0_0] : memref<8x512xf32, #tpu.memory_space<vmem>>, vector<8x512xf32>
    %c0_1 = arith.constant 0 : index
    %c0_2 = arith.constant 0 : index
    %1 = vector.load %arg3[%c0_1, %c0_2] : memref<128x512xbf16, #tpu.memory_space<vmem>>, vector<128x512xbf16>
    %c0_3 = arith.constant 0 : index
    %c0_4 = arith.constant 0 : index
    %2 = vector.load %arg4[%c0_3, %c0_4] : memref<128x512xbf16, #tpu.memory_space<vmem>>, vector<128x512xbf16>
    %c0_5 = arith.constant 0 : index
    %c0_6 = arith.constant 0 : index
    %c0_7 = arith.constant 0 : index
    %3 = vector.load %arg8[%c0_5, %c0_6, %c0_7] : memref<2x8x128xf32, #tpu.memory_space<vmem>>, vector<1x8x128xf32>
    %4 = vector.shape_cast %3 : vector<1x8x128xf32> to vector<8x128xf32>
    %c0_8 = arith.constant 0 : index
    %c0_9 = arith.constant 0 : index
    %c0_10 = arith.constant 0 : index
    %5 = vector.load %arg9[%c0_8, %c0_9, %c0_10] : memref<2x8x128xf32, #tpu.memory_space<vmem>>, vector<1x8x128xf32>
    %6 = vector.shape_cast %5 : vector<1x8x128xf32> to vector<8x128xf32>
    %c0_11 = arith.constant 0 : index
    %c0_12 = arith.constant 0 : index
    %c0_13 = arith.constant 0 : index
    %7 = vector.load %arg1[%c0_11, %c0_12, %c0_13] : memref<8x8x128xbf16, #tpu.memory_space<vmem>>, vector<8x8x128xbf16>
    %8 = vector.shape_cast %7 : vector<8x8x128xbf16> to vector<64x128xbf16>
    %cst = arith.constant dense<0.000000e+00> : vector<64x512xf32>
    %9 = tpu.matmul %8, %1, %cst {dimension_numbers = #tpu.dot_dimension_numbers<[1], [0], [0], [1], [0, 0, 1, 1], [], []>} : vector<64x128xbf16>, vector<128x512xbf16>, vector<64x512xf32> -> vector<64x512xf32>
    %10 = vector.shape_cast %9 : vector<64x512xf32> to vector<8x8x512xf32>
    %11 = vector.shape_cast %0 : vector<8x512xf32> to vector<1x8x512xf32>
    %12 = vector.broadcast %11 : vector<1x8x512xf32> to vector<8x8x512xf32>
    %13 = arith.addf %10, %12 : vector<8x8x512xf32>
    %c0_14 = arith.constant 0 : index
    %c0_15 = arith.constant 0 : index
    %c0_16 = arith.constant 0 : index
    %14 = vector.load %arg13[%c0_14, %c0_15, %c0_16] : memref<8x8x512xf32, #tpu.memory_space<vmem>>, vector<8x8x512xf32>
    tpu.vector_store %arg13[%c0_14, %c0_15, %c0_16], %13 {strides = array<i32>} : memref<8x8x512xf32, #tpu.memory_space<vmem>>, vector<8x8x512xf32>,
    %c0_17 = arith.constant 0 : index
    %c0_18 = arith.constant 0 : index
    %c0_19 = arith.constant 0 : index
    %15 = vector.load %arg13[%c0_17, %c0_18, %c0_19] : memref<8x8x512xf32, #tpu.memory_space<vmem>>, vector<1x8x512xf32>
    %16 = vector.shape_cast %15 : vector<1x8x512xf32> to vector<8x512xf32>
    %17 = arith.truncf %4 : vector<8x128xf32> to vector<8x128xbf16>
    %cst_20 = arith.constant dense<0.000000e+00> : vector<8x512xf32>
    %18 = tpu.matmul %17, %2, %cst_20 {dimension_numbers = #tpu.dot_dimension_numbers<[1], [0], [0], [1], [0, 0, 1, 1], [], []>} : vector<8x128xbf16>, vector<128x512xbf16>, vector<8x512xf32> -> vector<8x512xf32>
    %19 = arith.addf %16, %18 : vector<8x512xf32>
    %20 = vector.extract_strided_slice %19 {offsets = [0, 0], sizes = [8, 128], strides = [1, 1]} : vector<8x512xf32> to vector<8x128xf32>
    %21 = arith.negf %20 : vector<8x128xf32>
    %22 = math.exp %21 : vector<8x128xf32>
    %cst_21 = arith.constant 1.000000e+00 : f32
    %23 = vector.broadcast %cst_21 : f32 to vector<8x128xf32>
    %24 = arith.addf %23, %22 : vector<8x128xf32>
    %25 = arith.divf %23, %24 : vector<8x128xf32>
    %26 = vector.extract_strided_slice %19 {offsets = [0, 128], sizes = [8, 128], strides = [1, 1]} : vector<8x512xf32> to vector<8x128xf32>
    %27 = arith.negf %26 : vector<8x128xf32>
    %28 = math.exp %27 : vector<8x128xf32>
    %cst_22 = arith.constant 1.000000e+00 : f32
    %29 = vector.broadcast %cst_22 : f32 to vector<8x128xf32>
    %30 = arith.addf %29, %28 : vector<8x128xf32>
    %31 = arith.divf %29, %30 : vector<8x128xf32>
    %32 = vector.extract_strided_slice %19 {offsets = [0, 256], sizes = [8, 128], strides = [1, 1]} : vector<8x512xf32> to vector<8x128xf32>
    %33 = math.tanh %32 : vector<8x128xf32>
    %34 = vector.extract_strided_slice %19 {offsets = [0, 384], sizes = [8, 128], strides = [1, 1]} : vector<8x512xf32> to vector<8x128xf32>
    %35 = arith.negf %34 : vector<8x128xf32>
    %36 = math.exp %35 : vector<8x128xf32>
    %cst_23 = arith.constant 1.000000e+00 : f32
    %37 = vector.broadcast %cst_23 : f32 to vector<8x128xf32>
    %38 = arith.addf %37, %36 : vector<8x128xf32>
    %39 = arith.divf %37, %38 : vector<8x128xf32>
    %40 = arith.mulf %31, %6 : vector<8x128xf32>
    %41 = arith.mulf %25, %33 : vector<8x128xf32>
    %42 = arith.addf %40, %41 : vector<8x128xf32>
    %43 = math.tanh %42 : vector<8x128xf32>
    %44 = arith.mulf %39, %43 : vector<8x128xf32>
    %45 = arith.truncf %44 : vector<8x128xf32> to vector<8x128xbf16>
    %c0_24 = arith.constant 0 : index
    %c0_25 = arith.constant 0 : index
    %c0_26 = arith.constant 0 : index
    %46 = vector.load %arg14[%c0_24, %c0_25, %c0_26] : memref<8x8x128xbf16, #tpu.memory_space<vmem>>, vector<1x8x128xbf16>
    %47 = vector.shape_cast %46 : vector<1x8x128xbf16> to vector<8x128xbf16>
    %48 = vector.shape_cast %45 : vector<8x128xbf16> to vector<1x8x128xbf16>
    tpu.vector_store %arg14[%c0_24, %c0_25, %c0_26], %48 {strides = array<i32>} : memref<8x8x128xbf16, #tpu.memory_space<vmem>>, vector<1x8x128xbf16>,
    %c1 = arith.constant 1 : index
    %c0_27 = arith.constant 0 : index
    %c0_28 = arith.constant 0 : index
    %49 = vector.load %arg13[%c1, %c0_27, %c0_28] : memref<8x8x512xf32, #tpu.memory_space<vmem>>, vector<1x8x512xf32>
    %50 = vector.shape_cast %49 : vector<1x8x512xf32> to vector<8x512xf32>
    %51 = arith.truncf %44 : vector<8x128xf32> to vector<8x128xbf16>
    %cst_29 = arith.constant dense<0.000000e+00> : vector<8x512xf32>
    %52 = tpu.matmul %51, %2, %cst_29 {dimension_numbers = #tpu.dot_dimension_numbers<[1], [0], [0], [1], [0, 0, 1, 1], [], []>} : vector<8x128xbf16>, vector<128x512xbf16>, vector<8x512xf32> -> vector<8x512xf32>
    %53 = arith.addf %50, %52 : vector<8x512xf32>
    %54 = vector.extract_strided_slice %53 {offsets = [0, 0], sizes = [8, 128], strides = [1, 1]} : vector<8x512xf32> to vector<8x128xf32>
    %55 = arith.negf %54 : vector<8x128xf32>
    %56 = math.exp %55 : vector<8x128xf32>
    %cst_30 = arith.constant 1.000000e+00 : f32
    %57 = vector.broadcast %cst_30 : f32 to vector<8x128xf32>
    %58 = arith.addf %57, %56 : vector<8x128xf32>
    %59 = arith.divf %57, %58 : vector<8x128xf32>
    %60 = vector.extract_strided_slice %53 {offsets = [0, 128], sizes = [8, 128], strides = [1, 1]} : vector<8x512xf32> to vector<8x128xf32>
    %61 = arith.negf %60 : vector<8x128xf32>
    %62 = math.exp %61 : vector<8x128xf32>
    %cst_31 = arith.constant 1.000000e+00 : f32
    %63 = vector.broadcast %cst_31 : f32 to vector<8x128xf32>
    %64 = arith.addf %63, %62 : vector<8x128xf32>
    %65 = arith.divf %63, %64 : vector<8x128xf32>
    %66 = vector.extract_strided_slice %53 {offsets = [0, 256], sizes = [8, 128], strides = [1, 1]} : vector<8x512xf32> to vector<8x128xf32>
    %67 = math.tanh %66 : vector<8x128xf32>
    %68 = vector.extract_strided_slice %53 {offsets = [0, 384], sizes = [8, 128], strides = [1, 1]} : vector<8x512xf32> to vector<8x128xf32>
    %69 = arith.negf %68 : vector<8x128xf32>
    %70 = math.exp %69 : vector<8x128xf32>
    %cst_32 = arith.constant 1.000000e+00 : f32
    %71 = vector.broadcast %cst_32 : f32 to vector<8x128xf32>
    %72 = arith.addf %71, %70 : vector<8x128xf32>
    %73 = arith.divf %71, %72 : vector<8x128xf32>
    %74 = arith.mulf %65, %42 : vector<8x128xf32>
    %75 = arith.mulf %59, %67 : vector<8x128xf32>
    %76 = arith.addf %74, %75 : vector<8x128xf32>
    %77 = math.tanh %76 : vector<8x128xf32>
    %78 = arith.mulf %73, %77 : vector<8x128xf32>
    %79 = arith.truncf %78 : vector<8x128xf32> to vector<8x128xbf16>
    %c1_33 = arith.constant 1 : index
    %c0_34 = arith.constant 0 : index
    %c0_35 = arith.constant 0 : index
    %80 = vector.load %arg14[%c1_33, %c0_34, %c0_35] : memref<8x8x128xbf16, #tpu.memory_space<vmem>>, vector<1x8x128xbf16>
    %81 = vector.shape_cast %80 : vector<1x8x128xbf16> to vector<8x128xbf16>
    %82 = vector.shape_cast %79 : vector<8x128xbf16> to vector<1x8x128xbf16>
    tpu.vector_store %arg14[%c1_33, %c0_34, %c0_35], %82 {strides = array<i32>} : memref<8x8x128xbf16, #tpu.memory_space<vmem>>, vector<1x8x128xbf16>,
    %c2 = arith.constant 2 : index
    %c0_36 = arith.constant 0 : index
    %c0_37 = arith.constant 0 : index
    %83 = vector.load %arg13[%c2, %c0_36, %c0_37] : memref<8x8x512xf32, #tpu.memory_space<vmem>>, vector<1x8x512xf32>
    %84 = vector.shape_cast %83 : vector<1x8x512xf32> to vector<8x512xf32>
    %85 = arith.truncf %78 : vector<8x128xf32> to vector<8x128xbf16>
    %cst_38 = arith.constant dense<0.000000e+00> : vector<8x512xf32>
    %86 = tpu.matmul %85, %2, %cst_38 {dimension_numbers = #tpu.dot_dimension_numbers<[1], [0], [0], [1], [0, 0, 1, 1], [], []>} : vector<8x128xbf16>, vector<128x512xbf16>, vector<8x512xf32> -> vector<8x512xf32>
    %87 = arith.addf %84, %86 : vector<8x512xf32>
    %88 = vector.extract_strided_slice %87 {offsets = [0, 0], sizes = [8, 128], strides = [1, 1]} : vector<8x512xf32> to vector<8x128xf32>
    %89 = arith.negf %88 : vector<8x128xf32>
    %90 = math.exp %89 : vector<8x128xf32>
    %cst_39 = arith.constant 1.000000e+00 : f32
    %91 = vector.broadcast %cst_39 : f32 to vector<8x128xf32>
    %92 = arith.addf %91, %90 : vector<8x128xf32>
    %93 = arith.divf %91, %92 : vector<8x128xf32>
    %94 = vector.extract_strided_slice %87 {offsets = [0, 128], sizes = [8, 128], strides = [1, 1]} : vector<8x512xf32> to vector<8x128xf32>
    %95 = arith.negf %94 : vector<8x128xf32>
    %96 = math.exp %95 : vector<8x128xf32>
    %cst_40 = arith.constant 1.000000e+00 : f32
    %97 = vector.broadcast %cst_40 : f32 to vector<8x128xf32>
    %98 = arith.addf %97, %96 : vector<8x128xf32>
    %99 = arith.divf %97, %98 : vector<8x128xf32>
    %100 = vector.extract_strided_slice %87 {offsets = [0, 256], sizes = [8, 128], strides = [1, 1]} : vector<8x512xf32> to vector<8x128xf32>
    %101 = math.tanh %100 : vector<8x128xf32>
    %102 = vector.extract_strided_slice %87 {offsets = [0, 384], sizes = [8, 128], strides = [1, 1]} : vector<8x512xf32> to vector<8x128xf32>
    %103 = arith.negf %102 : vector<8x128xf32>
    %104 = math.exp %103 : vector<8x128xf32>
    %cst_41 = arith.constant 1.000000e+00 : f32
    %105 = vector.broadcast %cst_41 : f32 to vector<8x128xf32>
    %106 = arith.addf %105, %104 : vector<8x128xf32>
    %107 = arith.divf %105, %106 : vector<8x128xf32>
    %108 = arith.mulf %99, %76 : vector<8x128xf32>
    %109 = arith.mulf %93, %101 : vector<8x128xf32>
    %110 = arith.addf %108, %109 : vector<8x128xf32>
    %111 = math.tanh %110 : vector<8x128xf32>
    %112 = arith.mulf %107, %111 : vector<8x128xf32>
    %113 = arith.truncf %112 : vector<8x128xf32> to vector<8x128xbf16>
    %c2_42 = arith.constant 2 : index
    %c0_43 = arith.constant 0 : index
    %c0_44 = arith.constant 0 : index
    %114 = vector.load %arg14[%c2_42, %c0_43, %c0_44] : memref<8x8x128xbf16, #tpu.memory_space<vmem>>, vector<1x8x128xbf16>
    %115 = vector.shape_cast %114 : vector<1x8x128xbf16> to vector<8x128xbf16>
    %116 = vector.shape_cast %113 : vector<8x128xbf16> to vector<1x8x128xbf16>
    tpu.vector_store %arg14[%c2_42, %c0_43, %c0_44], %116 {strides = array<i32>} : memref<8x8x128xbf16, #tpu.memory_space<vmem>>, vector<1x8x128xbf16>,
    %c3 = arith.constant 3 : index
    %c0_45 = arith.constant 0 : index
    %c0_46 = arith.constant 0 : index
    %117 = vector.load %arg13[%c3, %c0_45, %c0_46] : memref<8x8x512xf32, #tpu.memory_space<vmem>>, vector<1x8x512xf32>
    %118 = vector.shape_cast %117 : vector<1x8x512xf32> to vector<8x512xf32>
    %119 = arith.truncf %112 : vector<8x128xf32> to vector<8x128xbf16>
    %cst_47 = arith.constant dense<0.000000e+00> : vector<8x512xf32>
    %120 = tpu.matmul %119, %2, %cst_47 {dimension_numbers = #tpu.dot_dimension_numbers<[1], [0], [0], [1], [0, 0, 1, 1], [], []>} : vector<8x128xbf16>, vector<128x512xbf16>, vector<8x512xf32> -> vector<8x512xf32>
    %121 = arith.addf %118, %120 : vector<8x512xf32>
    %122 = vector.extract_strided_slice %121 {offsets = [0, 0], sizes = [8, 128], strides = [1, 1]} : vector<8x512xf32> to vector<8x128xf32>
    %123 = arith.negf %122 : vector<8x128xf32>
    %124 = math.exp %123 : vector<8x128xf32>
    %cst_48 = arith.constant 1.000000e+00 : f32
    %125 = vector.broadcast %cst_48 : f32 to vector<8x128xf32>
    %126 = arith.addf %125, %124 : vector<8x128xf32>
    %127 = arith.divf %125, %126 : vector<8x128xf32>
    %128 = vector.extract_strided_slice %121 {offsets = [0, 128], sizes = [8, 128], strides = [1, 1]} : vector<8x512xf32> to vector<8x128xf32>
    %129 = arith.negf %128 : vector<8x128xf32>
    %130 = math.exp %129 : vector<8x128xf32>
    %cst_49 = arith.constant 1.000000e+00 : f32
    %131 = vector.broadcast %cst_49 : f32 to vector<8x128xf32>
    %132 = arith.addf %131, %130 : vector<8x128xf32>
    %133 = arith.divf %131, %132 : vector<8x128xf32>
    %134 = vector.extract_strided_slice %121 {offsets = [0, 256], sizes = [8, 128], strides = [1, 1]} : vector<8x512xf32> to vector<8x128xf32>
    %135 = math.tanh %134 : vector<8x128xf32>
    %136 = vector.extract_strided_slice %121 {offsets = [0, 384], sizes = [8, 128], strides = [1, 1]} : vector<8x512xf32> to vector<8x128xf32>
    %137 = arith.negf %136 : vector<8x128xf32>
    %138 = math.exp %137 : vector<8x128xf32>
    %cst_50 = arith.constant 1.000000e+00 : f32
    %139 = vector.broadcast %cst_50 : f32 to vector<8x128xf32>
    %140 = arith.addf %139, %138 : vector<8x128xf32>
    %141 = arith.divf %139, %140 : vector<8x128xf32>
    %142 = arith.mulf %133, %110 : vector<8x128xf32>
    %143 = arith.mulf %127, %135 : vector<8x128xf32>
    %144 = arith.addf %142, %143 : vector<8x128xf32>
    %145 = math.tanh %144 : vector<8x128xf32>
    %146 = arith.mulf %141, %145 : vector<8x128xf32>
    %147 = arith.truncf %146 : vector<8x128xf32> to vector<8x128xbf16>
    %c3_51 = arith.constant 3 : index
    %c0_52 = arith.constant 0 : index
    %c0_53 = arith.constant 0 : index
    %148 = vector.load %arg14[%c3_51, %c0_52, %c0_53] : memref<8x8x128xbf16, #tpu.memory_space<vmem>>, vector<1x8x128xbf16>
    %149 = vector.shape_cast %148 : vector<1x8x128xbf16> to vector<8x128xbf16>
    %150 = vector.shape_cast %147 : vector<8x128xbf16> to vector<1x8x128xbf16>
    tpu.vector_store %arg14[%c3_51, %c0_52, %c0_53], %150 {strides = array<i32>} : memref<8x8x128xbf16, #tpu.memory_space<vmem>>, vector<1x8x128xbf16>,
    %c4 = arith.constant 4 : index
    %c0_54 = arith.constant 0 : index
    %c0_55 = arith.constant 0 : index
    %151 = vector.load %arg13[%c4, %c0_54, %c0_55] : memref<8x8x512xf32, #tpu.memory_space<vmem>>, vector<1x8x512xf32>
    %152 = vector.shape_cast %151 : vector<1x8x512xf32> to vector<8x512xf32>
    %153 = arith.truncf %146 : vector<8x128xf32> to vector<8x128xbf16>
    %cst_56 = arith.constant dense<0.000000e+00> : vector<8x512xf32>
    %154 = tpu.matmul %153, %2, %cst_56 {dimension_numbers = #tpu.dot_dimension_numbers<[1], [0], [0], [1], [0, 0, 1, 1], [], []>} : vector<8x128xbf16>, vector<128x512xbf16>, vector<8x512xf32> -> vector<8x512xf32>
    %155 = arith.addf %152, %154 : vector<8x512xf32>
    %156 = vector.extract_strided_slice %155 {offsets = [0, 0], sizes = [8, 128], strides = [1, 1]} : vector<8x512xf32> to vector<8x128xf32>
    %157 = arith.negf %156 : vector<8x128xf32>
    %158 = math.exp %157 : vector<8x128xf32>
    %cst_57 = arith.constant 1.000000e+00 : f32
    %159 = vector.broadcast %cst_57 : f32 to vector<8x128xf32>
    %160 = arith.addf %159, %158 : vector<8x128xf32>
    %161 = arith.divf %159, %160 : vector<8x128xf32>
    %162 = vector.extract_strided_slice %155 {offsets = [0, 128], sizes = [8, 128], strides = [1, 1]} : vector<8x512xf32> to vector<8x128xf32>
    %163 = arith.negf %162 : vector<8x128xf32>
    %164 = math.exp %163 : vector<8x128xf32>
    %cst_58 = arith.constant 1.000000e+00 : f32
    %165 = vector.broadcast %cst_58 : f32 to vector<8x128xf32>
    %166 = arith.addf %165, %164 : vector<8x128xf32>
    %167 = arith.divf %165, %166 : vector<8x128xf32>
    %168 = vector.extract_strided_slice %155 {offsets = [0, 256], sizes = [8, 128], strides = [1, 1]} : vector<8x512xf32> to vector<8x128xf32>
    %169 = math.tanh %168 : vector<8x128xf32>
    %170 = vector.extract_strided_slice %155 {offsets = [0, 384], sizes = [8, 128], strides = [1, 1]} : vector<8x512xf32> to vector<8x128xf32>
    %171 = arith.negf %170 : vector<8x128xf32>
    %172 = math.exp %171 : vector<8x128xf32>
    %cst_59 = arith.constant 1.000000e+00 : f32
    %173 = vector.broadcast %cst_59 : f32 to vector<8x128xf32>
    %174 = arith.addf %173, %172 : vector<8x128xf32>
    %175 = arith.divf %173, %174 : vector<8x128xf32>
    %176 = arith.mulf %167, %144 : vector<8x128xf32>
    %177 = arith.mulf %161, %169 : vector<8x128xf32>
    %178 = arith.addf %176, %177 : vector<8x128xf32>
    %179 = math.tanh %178 : vector<8x128xf32>
    %180 = arith.mulf %175, %179 : vector<8x128xf32>
    %181 = arith.truncf %180 : vector<8x128xf32> to vector<8x128xbf16>
    %c4_60 = arith.constant 4 : index
    %c0_61 = arith.constant 0 : index
    %c0_62 = arith.constant 0 : index
    %182 = vector.load %arg14[%c4_60, %c0_61, %c0_62] : memref<8x8x128xbf16, #tpu.memory_space<vmem>>, vector<1x8x128xbf16>
    %183 = vector.shape_cast %182 : vector<1x8x128xbf16> to vector<8x128xbf16>
    %184 = vector.shape_cast %181 : vector<8x128xbf16> to vector<1x8x128xbf16>
    tpu.vector_store %arg14[%c4_60, %c0_61, %c0_62], %184 {strides = array<i32>} : memref<8x8x128xbf16, #tpu.memory_space<vmem>>, vector<1x8x128xbf16>,
    %c5 = arith.constant 5 : index
    %c0_63 = arith.constant 0 : index
    %c0_64 = arith.constant 0 : index
    %185 = vector.load %arg13[%c5, %c0_63, %c0_64] : memref<8x8x512xf32, #tpu.memory_space<vmem>>, vector<1x8x512xf32>
    %186 = vector.shape_cast %185 : vector<1x8x512xf32> to vector<8x512xf32>
    %187 = arith.truncf %180 : vector<8x128xf32> to vector<8x128xbf16>
    %cst_65 = arith.constant dense<0.000000e+00> : vector<8x512xf32>
    %188 = tpu.matmul %187, %2, %cst_65 {dimension_numbers = #tpu.dot_dimension_numbers<[1], [0], [0], [1], [0, 0, 1, 1], [], []>} : vector<8x128xbf16>, vector<128x512xbf16>, vector<8x512xf32> -> vector<8x512xf32>
    %189 = arith.addf %186, %188 : vector<8x512xf32>
    %190 = vector.extract_strided_slice %189 {offsets = [0, 0], sizes = [8, 128], strides = [1, 1]} : vector<8x512xf32> to vector<8x128xf32>
    %191 = arith.negf %190 : vector<8x128xf32>
    %192 = math.exp %191 : vector<8x128xf32>
    %cst_66 = arith.constant 1.000000e+00 : f32
    %193 = vector.broadcast %cst_66 : f32 to vector<8x128xf32>
    %194 = arith.addf %193, %192 : vector<8x128xf32>
    %195 = arith.divf %193, %194 : vector<8x128xf32>
    %196 = vector.extract_strided_slice %189 {offsets = [0, 128], sizes = [8, 128], strides = [1, 1]} : vector<8x512xf32> to vector<8x128xf32>
    %197 = arith.negf %196 : vector<8x128xf32>
    %198 = math.exp %197 : vector<8x128xf32>
    %cst_67 = arith.constant 1.000000e+00 : f32
    %199 = vector.broadcast %cst_67 : f32 to vector<8x128xf32>
    %200 = arith.addf %199, %198 : vector<8x128xf32>
    %201 = arith.divf %199, %200 : vector<8x128xf32>
    %202 = vector.extract_strided_slice %189 {offsets = [0, 256], sizes = [8, 128], strides = [1, 1]} : vector<8x512xf32> to vector<8x128xf32>
    %203 = math.tanh %202 : vector<8x128xf32>
    %204 = vector.extract_strided_slice %189 {offsets = [0, 384], sizes = [8, 128], strides = [1, 1]} : vector<8x512xf32> to vector<8x128xf32>
    %205 = arith.negf %204 : vector<8x128xf32>
    %206 = math.exp %205 : vector<8x128xf32>
    %cst_68 = arith.constant 1.000000e+00 : f32
    %207 = vector.broadcast %cst_68 : f32 to vector<8x128xf32>
    %208 = arith.addf %207, %206 : vector<8x128xf32>
    %209 = arith.divf %207, %208 : vector<8x128xf32>
    %210 = arith.mulf %201, %178 : vector<8x128xf32>
    %211 = arith.mulf %195, %203 : vector<8x128xf32>
    %212 = arith.addf %210, %211 : vector<8x128xf32>
    %213 = math.tanh %212 : vector<8x128xf32>
    %214 = arith.mulf %209, %213 : vector<8x128xf32>
    %215 = arith.truncf %214 : vector<8x128xf32> to vector<8x128xbf16>
    %c5_69 = arith.constant 5 : index
    %c0_70 = arith.constant 0 : index
    %c0_71 = arith.constant 0 : index
    %216 = vector.load %arg14[%c5_69, %c0_70, %c0_71] : memref<8x8x128xbf16, #tpu.memory_space<vmem>>, vector<1x8x128xbf16>
    %217 = vector.shape_cast %216 : vector<1x8x128xbf16> to vector<8x128xbf16>
    %218 = vector.shape_cast %215 : vector<8x128xbf16> to vector<1x8x128xbf16>
    tpu.vector_store %arg14[%c5_69, %c0_70, %c0_71], %218 {strides = array<i32>} : memref<8x8x128xbf16, #tpu.memory_space<vmem>>, vector<1x8x128xbf16>,
    %c6 = arith.constant 6 : index
    %c0_72 = arith.constant 0 : index
    %c0_73 = arith.constant 0 : index
    %219 = vector.load %arg13[%c6, %c0_72, %c0_73] : memref<8x8x512xf32, #tpu.memory_space<vmem>>, vector<1x8x512xf32>
    %220 = vector.shape_cast %219 : vector<1x8x512xf32> to vector<8x512xf32>
    %221 = arith.truncf %214 : vector<8x128xf32> to vector<8x128xbf16>
    %cst_74 = arith.constant dense<0.000000e+00> : vector<8x512xf32>
    %222 = tpu.matmul %221, %2, %cst_74 {dimension_numbers = #tpu.dot_dimension_numbers<[1], [0], [0], [1], [0, 0, 1, 1], [], []>} : vector<8x128xbf16>, vector<128x512xbf16>, vector<8x512xf32> -> vector<8x512xf32>
    %223 = arith.addf %220, %222 : vector<8x512xf32>
    %224 = vector.extract_strided_slice %223 {offsets = [0, 0], sizes = [8, 128], strides = [1, 1]} : vector<8x512xf32> to vector<8x128xf32>
    %225 = arith.negf %224 : vector<8x128xf32>
    %226 = math.exp %225 : vector<8x128xf32>
    %cst_75 = arith.constant 1.000000e+00 : f32
    %227 = vector.broadcast %cst_75 : f32 to vector<8x128xf32>
    %228 = arith.addf %227, %226 : vector<8x128xf32>
    %229 = arith.divf %227, %228 : vector<8x128xf32>
    %230 = vector.extract_strided_slice %223 {offsets = [0, 128], sizes = [8, 128], strides = [1, 1]} : vector<8x512xf32> to vector<8x128xf32>
    %231 = arith.negf %230 : vector<8x128xf32>
    %232 = math.exp %231 : vector<8x128xf32>
    %cst_76 = arith.constant 1.000000e+00 : f32
    %233 = vector.broadcast %cst_76 : f32 to vector<8x128xf32>
    %234 = arith.addf %233, %232 : vector<8x128xf32>
    %235 = arith.divf %233, %234 : vector<8x128xf32>
    %236 = vector.extract_strided_slice %223 {offsets = [0, 256], sizes = [8, 128], strides = [1, 1]} : vector<8x512xf32> to vector<8x128xf32>
    %237 = math.tanh %236 : vector<8x128xf32>
    %238 = vector.extract_strided_slice %223 {offsets = [0, 384], sizes = [8, 128], strides = [1, 1]} : vector<8x512xf32> to vector<8x128xf32>
    %239 = arith.negf %238 : vector<8x128xf32>
    %240 = math.exp %239 : vector<8x128xf32>
    %cst_77 = arith.constant 1.000000e+00 : f32
    %241 = vector.broadcast %cst_77 : f32 to vector<8x128xf32>
    %242 = arith.addf %241, %240 : vector<8x128xf32>
    %243 = arith.divf %241, %242 : vector<8x128xf32>
    %244 = arith.mulf %235, %212 : vector<8x128xf32>
    %245 = arith.mulf %229, %237 : vector<8x128xf32>
    %246 = arith.addf %244, %245 : vector<8x128xf32>
    %247 = math.tanh %246 : vector<8x128xf32>
    %248 = arith.mulf %243, %247 : vector<8x128xf32>
    %249 = arith.truncf %248 : vector<8x128xf32> to vector<8x128xbf16>
    %c6_78 = arith.constant 6 : index
    %c0_79 = arith.constant 0 : index
    %c0_80 = arith.constant 0 : index
    %250 = vector.load %arg14[%c6_78, %c0_79, %c0_80] : memref<8x8x128xbf16, #tpu.memory_space<vmem>>, vector<1x8x128xbf16>
    %251 = vector.shape_cast %250 : vector<1x8x128xbf16> to vector<8x128xbf16>
    %252 = vector.shape_cast %249 : vector<8x128xbf16> to vector<1x8x128xbf16>
    tpu.vector_store %arg14[%c6_78, %c0_79, %c0_80], %252 {strides = array<i32>} : memref<8x8x128xbf16, #tpu.memory_space<vmem>>, vector<1x8x128xbf16>,
    %c7 = arith.constant 7 : index
    %c0_81 = arith.constant 0 : index
    %c0_82 = arith.constant 0 : index
    %253 = vector.load %arg13[%c7, %c0_81, %c0_82] : memref<8x8x512xf32, #tpu.memory_space<vmem>>, vector<1x8x512xf32>
    %254 = vector.shape_cast %253 : vector<1x8x512xf32> to vector<8x512xf32>
    %255 = arith.truncf %248 : vector<8x128xf32> to vector<8x128xbf16>
    %cst_83 = arith.constant dense<0.000000e+00> : vector<8x512xf32>
    %256 = tpu.matmul %255, %2, %cst_83 {dimension_numbers = #tpu.dot_dimension_numbers<[1], [0], [0], [1], [0, 0, 1, 1], [], []>} : vector<8x128xbf16>, vector<128x512xbf16>, vector<8x512xf32> -> vector<8x512xf32>
    %257 = arith.addf %254, %256 : vector<8x512xf32>
    %258 = vector.extract_strided_slice %257 {offsets = [0, 0], sizes = [8, 128], strides = [1, 1]} : vector<8x512xf32> to vector<8x128xf32>
    %259 = arith.negf %258 : vector<8x128xf32>
    %260 = math.exp %259 : vector<8x128xf32>
    %cst_84 = arith.constant 1.000000e+00 : f32
    %261 = vector.broadcast %cst_84 : f32 to vector<8x128xf32>
    %262 = arith.addf %261, %260 : vector<8x128xf32>
    %263 = arith.divf %261, %262 : vector<8x128xf32>
    %264 = vector.extract_strided_slice %257 {offsets = [0, 128], sizes = [8, 128], strides = [1, 1]} : vector<8x512xf32> to vector<8x128xf32>
    %265 = arith.negf %264 : vector<8x128xf32>
    %266 = math.exp %265 : vector<8x128xf32>
    %cst_85 = arith.constant 1.000000e+00 : f32
    %267 = vector.broadcast %cst_85 : f32 to vector<8x128xf32>
    %268 = arith.addf %267, %266 : vector<8x128xf32>
    %269 = arith.divf %267, %268 : vector<8x128xf32>
    %270 = vector.extract_strided_slice %257 {offsets = [0, 256], sizes = [8, 128], strides = [1, 1]} : vector<8x512xf32> to vector<8x128xf32>
    %271 = math.tanh %270 : vector<8x128xf32>
    %272 = vector.extract_strided_slice %257 {offsets = [0, 384], sizes = [8, 128], strides = [1, 1]} : vector<8x512xf32> to vector<8x128xf32>
    %273 = arith.negf %272 : vector<8x128xf32>
    %274 = math.exp %273 : vector<8x128xf32>
    %cst_86 = arith.constant 1.000000e+00 : f32
    %275 = vector.broadcast %cst_86 : f32 to vector<8x128xf32>
    %276 = arith.addf %275, %274 : vector<8x128xf32>
    %277 = arith.divf %275, %276 : vector<8x128xf32>
    %278 = arith.mulf %269, %246 : vector<8x128xf32>
    %279 = arith.mulf %263, %271 : vector<8x128xf32>
    %280 = arith.addf %278, %279 : vector<8x128xf32>
    %281 = math.tanh %280 : vector<8x128xf32>
    %282 = arith.mulf %277, %281 : vector<8x128xf32>
    %283 = arith.truncf %282 : vector<8x128xf32> to vector<8x128xbf16>
    %c7_87 = arith.constant 7 : index
    %c0_88 = arith.constant 0 : index
    %c0_89 = arith.constant 0 : index
    %284 = vector.load %arg14[%c7_87, %c0_88, %c0_89] : memref<8x8x128xbf16, #tpu.memory_space<vmem>>, vector<1x8x128xbf16>
    %285 = vector.shape_cast %284 : vector<1x8x128xbf16> to vector<8x128xbf16>
    %286 = vector.shape_cast %283 : vector<8x128xbf16> to vector<1x8x128xbf16>
    tpu.vector_store %arg14[%c7_87, %c0_88, %c0_89], %286 {strides = array<i32>} : memref<8x8x128xbf16, #tpu.memory_space<vmem>>, vector<1x8x128xbf16>,
    %c0_90 = arith.constant 0 : index
    %c0_91 = arith.constant 0 : index
    %c0_92 = arith.constant 0 : index
    %287 = vector.load %arg11[%c0_90, %c0_91, %c0_92] : memref<2x8x128xf32, #tpu.memory_space<vmem>>, vector<1x8x128xf32>
    %288 = vector.shape_cast %287 : vector<1x8x128xf32> to vector<8x128xf32>
    %289 = vector.shape_cast %282 : vector<8x128xf32> to vector<1x8x128xf32>
    tpu.vector_store %arg11[%c0_90, %c0_91, %c0_92], %289 {strides = array<i32>} : memref<2x8x128xf32, #tpu.memory_space<vmem>>, vector<1x8x128xf32>,
    %c0_93 = arith.constant 0 : index
    %c0_94 = arith.constant 0 : index
    %c0_95 = arith.constant 0 : index
    %290 = vector.load %arg12[%c0_93, %c0_94, %c0_95] : memref<2x8x128xf32, #tpu.memory_space<vmem>>, vector<1x8x128xf32>
    %291 = vector.shape_cast %290 : vector<1x8x128xf32> to vector<8x128xf32>
    %292 = vector.shape_cast %280 : vector<8x128xf32> to vector<1x8x128xf32>
    tpu.vector_store %arg12[%c0_93, %c0_94, %c0_95], %292 {strides = array<i32>} : memref<2x8x128xf32, #tpu.memory_space<vmem>>, vector<1x8x128xf32>,
    %c0_96 = arith.constant 0 : index
    %c0_97 = arith.constant 0 : index
    %293 = vector.load %arg5[%c0_96, %c0_97] : memref<128x512xbf16, #tpu.memory_space<vmem>>, vector<128x512xbf16>
    %c0_98 = arith.constant 0 : index
    %c0_99 = arith.constant 0 : index
    %294 = vector.load %arg6[%c0_98, %c0_99] : memref<128x512xbf16, #tpu.memory_space<vmem>>, vector<128x512xbf16>
    %c1_100 = arith.constant 1 : index
    %c0_101 = arith.constant 0 : index
    %c0_102 = arith.constant 0 : index
    %295 = vector.load %arg8[%c1_100, %c0_101, %c0_102] : memref<2x8x128xf32, #tpu.memory_space<vmem>>, vector<1x8x128xf32>
    %296 = vector.shape_cast %295 : vector<1x8x128xf32> to vector<8x128xf32>
    %c1_103 = arith.constant 1 : index
    %c0_104 = arith.constant 0 : index
    %c0_105 = arith.constant 0 : index
    %297 = vector.load %arg9[%c1_103, %c0_104, %c0_105] : memref<2x8x128xf32, #tpu.memory_space<vmem>>, vector<1x8x128xf32>
    %298 = vector.shape_cast %297 : vector<1x8x128xf32> to vector<8x128xf32>
    %c0_106 = arith.constant 0 : index
    %c0_107 = arith.constant 0 : index
    %c0_108 = arith.constant 0 : index
    %299 = vector.load %arg14[%c0_106, %c0_107, %c0_108] : memref<8x8x128xbf16, #tpu.memory_space<vmem>>, vector<8x8x128xbf16>
    %300 = vector.shape_cast %299 : vector<8x8x128xbf16> to vector<64x128xbf16>
    %cst_109 = arith.constant dense<0.000000e+00> : vector<64x512xf32>
    %301 = tpu.matmul %300, %293, %cst_109 {dimension_numbers = #tpu.dot_dimension_numbers<[1], [0], [0], [1], [0, 0, 1, 1], [], []>} : vector<64x128xbf16>, vector<128x512xbf16>, vector<64x512xf32> -> vector<64x512xf32>
    %c0_110 = arith.constant 0 : index
    %c0_111 = arith.constant 0 : index
    %302 = vector.load %arg7[%c0_110, %c0_111] : memref<1x512xf32, #tpu.memory_space<vmem>>, vector<1x512xf32>
    %303 = vector.broadcast %302 : vector<1x512xf32> to vector<64x512xf32>
    %304 = arith.addf %301, %303 : vector<64x512xf32>
    %305 = vector.shape_cast %304 : vector<64x512xf32> to vector<8x8x512xf32>
    %c0_112 = arith.constant 0 : index
    %c0_113 = arith.constant 0 : index
    %c0_114 = arith.constant 0 : index
    %306 = vector.load %arg13[%c0_112, %c0_113, %c0_114] : memref<8x8x512xf32, #tpu.memory_space<vmem>>, vector<8x8x512xf32>
    tpu.vector_store %arg13[%c0_112, %c0_113, %c0_114], %305 {strides = array<i32>} : memref<8x8x512xf32, #tpu.memory_space<vmem>>, vector<8x8x512xf32>,
    %c0_115 = arith.constant 0 : index
    %c0_116 = arith.constant 0 : index
    %c0_117 = arith.constant 0 : index
    %307 = vector.load %arg13[%c0_115, %c0_116, %c0_117] : memref<8x8x512xf32, #tpu.memory_space<vmem>>, vector<1x8x512xf32>
    %308 = vector.shape_cast %307 : vector<1x8x512xf32> to vector<8x512xf32>
    %309 = arith.truncf %296 : vector<8x128xf32> to vector<8x128xbf16>
    %cst_118 = arith.constant dense<0.000000e+00> : vector<8x512xf32>
    %310 = tpu.matmul %309, %294, %cst_118 {dimension_numbers = #tpu.dot_dimension_numbers<[1], [0], [0], [1], [0, 0, 1, 1], [], []>} : vector<8x128xbf16>, vector<128x512xbf16>, vector<8x512xf32> -> vector<8x512xf32>
    %311 = arith.addf %308, %310 : vector<8x512xf32>
    %312 = vector.extract_strided_slice %311 {offsets = [0, 0], sizes = [8, 128], strides = [1, 1]} : vector<8x512xf32> to vector<8x128xf32>
    %313 = arith.negf %312 : vector<8x128xf32>
    %314 = math.exp %313 : vector<8x128xf32>
    %cst_119 = arith.constant 1.000000e+00 : f32
    %315 = vector.broadcast %cst_119 : f32 to vector<8x128xf32>
    %316 = arith.addf %315, %314 : vector<8x128xf32>
    %317 = arith.divf %315, %316 : vector<8x128xf32>
    %318 = vector.extract_strided_slice %311 {offsets = [0, 128], sizes = [8, 128], strides = [1, 1]} : vector<8x512xf32> to vector<8x128xf32>
    %319 = arith.negf %318 : vector<8x128xf32>
    %320 = math.exp %319 : vector<8x128xf32>
    %cst_120 = arith.constant 1.000000e+00 : f32
    %321 = vector.broadcast %cst_120 : f32 to vector<8x128xf32>
    %322 = arith.addf %321, %320 : vector<8x128xf32>
    %323 = arith.divf %321, %322 : vector<8x128xf32>
    %324 = vector.extract_strided_slice %311 {offsets = [0, 256], sizes = [8, 128], strides = [1, 1]} : vector<8x512xf32> to vector<8x128xf32>
    %325 = math.tanh %324 : vector<8x128xf32>
    %326 = vector.extract_strided_slice %311 {offsets = [0, 384], sizes = [8, 128], strides = [1, 1]} : vector<8x512xf32> to vector<8x128xf32>
    %327 = arith.negf %326 : vector<8x128xf32>
    %328 = math.exp %327 : vector<8x128xf32>
    %cst_121 = arith.constant 1.000000e+00 : f32
    %329 = vector.broadcast %cst_121 : f32 to vector<8x128xf32>
    %330 = arith.addf %329, %328 : vector<8x128xf32>
    %331 = arith.divf %329, %330 : vector<8x128xf32>
    %332 = arith.mulf %323, %298 : vector<8x128xf32>
    %333 = arith.mulf %317, %325 : vector<8x128xf32>
    %334 = arith.addf %332, %333 : vector<8x128xf32>
    %335 = math.tanh %334 : vector<8x128xf32>
    %336 = arith.mulf %331, %335 : vector<8x128xf32>
    %337 = arith.truncf %336 : vector<8x128xf32> to vector<8x128xbf16>
    %c0_122 = arith.constant 0 : index
    %c0_123 = arith.constant 0 : index
    %c0_124 = arith.constant 0 : index
    %338 = vector.load %arg10[%c0_122, %c0_123, %c0_124] : memref<8x8x128xbf16, #tpu.memory_space<vmem>>, vector<1x8x128xbf16>
    %339 = vector.shape_cast %338 : vector<1x8x128xbf16> to vector<8x128xbf16>
    %340 = vector.shape_cast %337 : vector<8x128xbf16> to vector<1x8x128xbf16>
    tpu.vector_store %arg10[%c0_122, %c0_123, %c0_124], %340 {strides = array<i32>} : memref<8x8x128xbf16, #tpu.memory_space<vmem>>, vector<1x8x128xbf16>,
    %c1_125 = arith.constant 1 : index
    %c0_126 = arith.constant 0 : index
    %c0_127 = arith.constant 0 : index
    %341 = vector.load %arg13[%c1_125, %c0_126, %c0_127] : memref<8x8x512xf32, #tpu.memory_space<vmem>>, vector<1x8x512xf32>
    %342 = vector.shape_cast %341 : vector<1x8x512xf32> to vector<8x512xf32>
    %343 = arith.truncf %336 : vector<8x128xf32> to vector<8x128xbf16>
    %cst_128 = arith.constant dense<0.000000e+00> : vector<8x512xf32>
    %344 = tpu.matmul %343, %294, %cst_128 {dimension_numbers = #tpu.dot_dimension_numbers<[1], [0], [0], [1], [0, 0, 1, 1], [], []>} : vector<8x128xbf16>, vector<128x512xbf16>, vector<8x512xf32> -> vector<8x512xf32>
    %345 = arith.addf %342, %344 : vector<8x512xf32>
    %346 = vector.extract_strided_slice %345 {offsets = [0, 0], sizes = [8, 128], strides = [1, 1]} : vector<8x512xf32> to vector<8x128xf32>
    %347 = arith.negf %346 : vector<8x128xf32>
    %348 = math.exp %347 : vector<8x128xf32>
    %cst_129 = arith.constant 1.000000e+00 : f32
    %349 = vector.broadcast %cst_129 : f32 to vector<8x128xf32>
    %350 = arith.addf %349, %348 : vector<8x128xf32>
    %351 = arith.divf %349, %350 : vector<8x128xf32>
    %352 = vector.extract_strided_slice %345 {offsets = [0, 128], sizes = [8, 128], strides = [1, 1]} : vector<8x512xf32> to vector<8x128xf32>
    %353 = arith.negf %352 : vector<8x128xf32>
    %354 = math.exp %353 : vector<8x128xf32>
    %cst_130 = arith.constant 1.000000e+00 : f32
    %355 = vector.broadcast %cst_130 : f32 to vector<8x128xf32>
    %356 = arith.addf %355, %354 : vector<8x128xf32>
    %357 = arith.divf %355, %356 : vector<8x128xf32>
    %358 = vector.extract_strided_slice %345 {offsets = [0, 256], sizes = [8, 128], strides = [1, 1]} : vector<8x512xf32> to vector<8x128xf32>
    %359 = math.tanh %358 : vector<8x128xf32>
    %360 = vector.extract_strided_slice %345 {offsets = [0, 384], sizes = [8, 128], strides = [1, 1]} : vector<8x512xf32> to vector<8x128xf32>
    %361 = arith.negf %360 : vector<8x128xf32>
    %362 = math.exp %361 : vector<8x128xf32>
    %cst_131 = arith.constant 1.000000e+00 : f32
    %363 = vector.broadcast %cst_131 : f32 to vector<8x128xf32>
    %364 = arith.addf %363, %362 : vector<8x128xf32>
    %365 = arith.divf %363, %364 : vector<8x128xf32>
    %366 = arith.mulf %357, %334 : vector<8x128xf32>
    %367 = arith.mulf %351, %359 : vector<8x128xf32>
    %368 = arith.addf %366, %367 : vector<8x128xf32>
    %369 = math.tanh %368 : vector<8x128xf32>
    %370 = arith.mulf %365, %369 : vector<8x128xf32>
    %371 = arith.truncf %370 : vector<8x128xf32> to vector<8x128xbf16>
    %c1_132 = arith.constant 1 : index
    %c0_133 = arith.constant 0 : index
    %c0_134 = arith.constant 0 : index
    %372 = vector.load %arg10[%c1_132, %c0_133, %c0_134] : memref<8x8x128xbf16, #tpu.memory_space<vmem>>, vector<1x8x128xbf16>
    %373 = vector.shape_cast %372 : vector<1x8x128xbf16> to vector<8x128xbf16>
    %374 = vector.shape_cast %371 : vector<8x128xbf16> to vector<1x8x128xbf16>
    tpu.vector_store %arg10[%c1_132, %c0_133, %c0_134], %374 {strides = array<i32>} : memref<8x8x128xbf16, #tpu.memory_space<vmem>>, vector<1x8x128xbf16>,
    %c2_135 = arith.constant 2 : index
    %c0_136 = arith.constant 0 : index
    %c0_137 = arith.constant 0 : index
    %375 = vector.load %arg13[%c2_135, %c0_136, %c0_137] : memref<8x8x512xf32, #tpu.memory_space<vmem>>, vector<1x8x512xf32>
    %376 = vector.shape_cast %375 : vector<1x8x512xf32> to vector<8x512xf32>
    %377 = arith.truncf %370 : vector<8x128xf32> to vector<8x128xbf16>
    %cst_138 = arith.constant dense<0.000000e+00> : vector<8x512xf32>
    %378 = tpu.matmul %377, %294, %cst_138 {dimension_numbers = #tpu.dot_dimension_numbers<[1], [0], [0], [1], [0, 0, 1, 1], [], []>} : vector<8x128xbf16>, vector<128x512xbf16>, vector<8x512xf32> -> vector<8x512xf32>
    %379 = arith.addf %376, %378 : vector<8x512xf32>
    %380 = vector.extract_strided_slice %379 {offsets = [0, 0], sizes = [8, 128], strides = [1, 1]} : vector<8x512xf32> to vector<8x128xf32>
    %381 = arith.negf %380 : vector<8x128xf32>
    %382 = math.exp %381 : vector<8x128xf32>
    %cst_139 = arith.constant 1.000000e+00 : f32
    %383 = vector.broadcast %cst_139 : f32 to vector<8x128xf32>
    %384 = arith.addf %383, %382 : vector<8x128xf32>
    %385 = arith.divf %383, %384 : vector<8x128xf32>
    %386 = vector.extract_strided_slice %379 {offsets = [0, 128], sizes = [8, 128], strides = [1, 1]} : vector<8x512xf32> to vector<8x128xf32>
    %387 = arith.negf %386 : vector<8x128xf32>
    %388 = math.exp %387 : vector<8x128xf32>
    %cst_140 = arith.constant 1.000000e+00 : f32
    %389 = vector.broadcast %cst_140 : f32 to vector<8x128xf32>
    %390 = arith.addf %389, %388 : vector<8x128xf32>
    %391 = arith.divf %389, %390 : vector<8x128xf32>
    %392 = vector.extract_strided_slice %379 {offsets = [0, 256], sizes = [8, 128], strides = [1, 1]} : vector<8x512xf32> to vector<8x128xf32>
    %393 = math.tanh %392 : vector<8x128xf32>
    %394 = vector.extract_strided_slice %379 {offsets = [0, 384], sizes = [8, 128], strides = [1, 1]} : vector<8x512xf32> to vector<8x128xf32>
    %395 = arith.negf %394 : vector<8x128xf32>
    %396 = math.exp %395 : vector<8x128xf32>
    %cst_141 = arith.constant 1.000000e+00 : f32
    %397 = vector.broadcast %cst_141 : f32 to vector<8x128xf32>
    %398 = arith.addf %397, %396 : vector<8x128xf32>
    %399 = arith.divf %397, %398 : vector<8x128xf32>
    %400 = arith.mulf %391, %368 : vector<8x128xf32>
    %401 = arith.mulf %385, %393 : vector<8x128xf32>
    %402 = arith.addf %400, %401 : vector<8x128xf32>
    %403 = math.tanh %402 : vector<8x128xf32>
    %404 = arith.mulf %399, %403 : vector<8x128xf32>
    %405 = arith.truncf %404 : vector<8x128xf32> to vector<8x128xbf16>
    %c2_142 = arith.constant 2 : index
    %c0_143 = arith.constant 0 : index
    %c0_144 = arith.constant 0 : index
    %406 = vector.load %arg10[%c2_142, %c0_143, %c0_144] : memref<8x8x128xbf16, #tpu.memory_space<vmem>>, vector<1x8x128xbf16>
    %407 = vector.shape_cast %406 : vector<1x8x128xbf16> to vector<8x128xbf16>
    %408 = vector.shape_cast %405 : vector<8x128xbf16> to vector<1x8x128xbf16>
    tpu.vector_store %arg10[%c2_142, %c0_143, %c0_144], %408 {strides = array<i32>} : memref<8x8x128xbf16, #tpu.memory_space<vmem>>, vector<1x8x128xbf16>,
    %c3_145 = arith.constant 3 : index
    %c0_146 = arith.constant 0 : index
    %c0_147 = arith.constant 0 : index
    %409 = vector.load %arg13[%c3_145, %c0_146, %c0_147] : memref<8x8x512xf32, #tpu.memory_space<vmem>>, vector<1x8x512xf32>
    %410 = vector.shape_cast %409 : vector<1x8x512xf32> to vector<8x512xf32>
    %411 = arith.truncf %404 : vector<8x128xf32> to vector<8x128xbf16>
    %cst_148 = arith.constant dense<0.000000e+00> : vector<8x512xf32>
    %412 = tpu.matmul %411, %294, %cst_148 {dimension_numbers = #tpu.dot_dimension_numbers<[1], [0], [0], [1], [0, 0, 1, 1], [], []>} : vector<8x128xbf16>, vector<128x512xbf16>, vector<8x512xf32> -> vector<8x512xf32>
    %413 = arith.addf %410, %412 : vector<8x512xf32>
    %414 = vector.extract_strided_slice %413 {offsets = [0, 0], sizes = [8, 128], strides = [1, 1]} : vector<8x512xf32> to vector<8x128xf32>
    %415 = arith.negf %414 : vector<8x128xf32>
    %416 = math.exp %415 : vector<8x128xf32>
    %cst_149 = arith.constant 1.000000e+00 : f32
    %417 = vector.broadcast %cst_149 : f32 to vector<8x128xf32>
    %418 = arith.addf %417, %416 : vector<8x128xf32>
    %419 = arith.divf %417, %418 : vector<8x128xf32>
    %420 = vector.extract_strided_slice %413 {offsets = [0, 128], sizes = [8, 128], strides = [1, 1]} : vector<8x512xf32> to vector<8x128xf32>
    %421 = arith.negf %420 : vector<8x128xf32>
    %422 = math.exp %421 : vector<8x128xf32>
    %cst_150 = arith.constant 1.000000e+00 : f32
    %423 = vector.broadcast %cst_150 : f32 to vector<8x128xf32>
    %424 = arith.addf %423, %422 : vector<8x128xf32>
    %425 = arith.divf %423, %424 : vector<8x128xf32>
    %426 = vector.extract_strided_slice %413 {offsets = [0, 256], sizes = [8, 128], strides = [1, 1]} : vector<8x512xf32> to vector<8x128xf32>
    %427 = math.tanh %426 : vector<8x128xf32>
    %428 = vector.extract_strided_slice %413 {offsets = [0, 384], sizes = [8, 128], strides = [1, 1]} : vector<8x512xf32> to vector<8x128xf32>
    %429 = arith.negf %428 : vector<8x128xf32>
    %430 = math.exp %429 : vector<8x128xf32>
    %cst_151 = arith.constant 1.000000e+00 : f32
    %431 = vector.broadcast %cst_151 : f32 to vector<8x128xf32>
    %432 = arith.addf %431, %430 : vector<8x128xf32>
    %433 = arith.divf %431, %432 : vector<8x128xf32>
    %434 = arith.mulf %425, %402 : vector<8x128xf32>
    %435 = arith.mulf %419, %427 : vector<8x128xf32>
    %436 = arith.addf %434, %435 : vector<8x128xf32>
    %437 = math.tanh %436 : vector<8x128xf32>
    %438 = arith.mulf %433, %437 : vector<8x128xf32>
    %439 = arith.truncf %438 : vector<8x128xf32> to vector<8x128xbf16>
    %c3_152 = arith.constant 3 : index
    %c0_153 = arith.constant 0 : index
    %c0_154 = arith.constant 0 : index
    %440 = vector.load %arg10[%c3_152, %c0_153, %c0_154] : memref<8x8x128xbf16, #tpu.memory_space<vmem>>, vector<1x8x128xbf16>
    %441 = vector.shape_cast %440 : vector<1x8x128xbf16> to vector<8x128xbf16>
    %442 = vector.shape_cast %439 : vector<8x128xbf16> to vector<1x8x128xbf16>
    tpu.vector_store %arg10[%c3_152, %c0_153, %c0_154], %442 {strides = array<i32>} : memref<8x8x128xbf16, #tpu.memory_space<vmem>>, vector<1x8x128xbf16>,
    %c4_155 = arith.constant 4 : index
    %c0_156 = arith.constant 0 : index
    %c0_157 = arith.constant 0 : index
    %443 = vector.load %arg13[%c4_155, %c0_156, %c0_157] : memref<8x8x512xf32, #tpu.memory_space<vmem>>, vector<1x8x512xf32>
    %444 = vector.shape_cast %443 : vector<1x8x512xf32> to vector<8x512xf32>
    %445 = arith.truncf %438 : vector<8x128xf32> to vector<8x128xbf16>
    %cst_158 = arith.constant dense<0.000000e+00> : vector<8x512xf32>
    %446 = tpu.matmul %445, %294, %cst_158 {dimension_numbers = #tpu.dot_dimension_numbers<[1], [0], [0], [1], [0, 0, 1, 1], [], []>} : vector<8x128xbf16>, vector<128x512xbf16>, vector<8x512xf32> -> vector<8x512xf32>
    %447 = arith.addf %444, %446 : vector<8x512xf32>
    %448 = vector.extract_strided_slice %447 {offsets = [0, 0], sizes = [8, 128], strides = [1, 1]} : vector<8x512xf32> to vector<8x128xf32>
    %449 = arith.negf %448 : vector<8x128xf32>
    %450 = math.exp %449 : vector<8x128xf32>
    %cst_159 = arith.constant 1.000000e+00 : f32
    %451 = vector.broadcast %cst_159 : f32 to vector<8x128xf32>
    %452 = arith.addf %451, %450 : vector<8x128xf32>
    %453 = arith.divf %451, %452 : vector<8x128xf32>
    %454 = vector.extract_strided_slice %447 {offsets = [0, 128], sizes = [8, 128], strides = [1, 1]} : vector<8x512xf32> to vector<8x128xf32>
    %455 = arith.negf %454 : vector<8x128xf32>
    %456 = math.exp %455 : vector<8x128xf32>
    %cst_160 = arith.constant 1.000000e+00 : f32
    %457 = vector.broadcast %cst_160 : f32 to vector<8x128xf32>
    %458 = arith.addf %457, %456 : vector<8x128xf32>
    %459 = arith.divf %457, %458 : vector<8x128xf32>
    %460 = vector.extract_strided_slice %447 {offsets = [0, 256], sizes = [8, 128], strides = [1, 1]} : vector<8x512xf32> to vector<8x128xf32>
    %461 = math.tanh %460 : vector<8x128xf32>
    %462 = vector.extract_strided_slice %447 {offsets = [0, 384], sizes = [8, 128], strides = [1, 1]} : vector<8x512xf32> to vector<8x128xf32>
    %463 = arith.negf %462 : vector<8x128xf32>
    %464 = math.exp %463 : vector<8x128xf32>
    %cst_161 = arith.constant 1.000000e+00 : f32
    %465 = vector.broadcast %cst_161 : f32 to vector<8x128xf32>
    %466 = arith.addf %465, %464 : vector<8x128xf32>
    %467 = arith.divf %465, %466 : vector<8x128xf32>
    %468 = arith.mulf %459, %436 : vector<8x128xf32>
    %469 = arith.mulf %453, %461 : vector<8x128xf32>
    %470 = arith.addf %468, %469 : vector<8x128xf32>
    %471 = math.tanh %470 : vector<8x128xf32>
    %472 = arith.mulf %467, %471 : vector<8x128xf32>
    %473 = arith.truncf %472 : vector<8x128xf32> to vector<8x128xbf16>
    %c4_162 = arith.constant 4 : index
    %c0_163 = arith.constant 0 : index
    %c0_164 = arith.constant 0 : index
    %474 = vector.load %arg10[%c4_162, %c0_163, %c0_164] : memref<8x8x128xbf16, #tpu.memory_space<vmem>>, vector<1x8x128xbf16>
    %475 = vector.shape_cast %474 : vector<1x8x128xbf16> to vector<8x128xbf16>
    %476 = vector.shape_cast %473 : vector<8x128xbf16> to vector<1x8x128xbf16>
    tpu.vector_store %arg10[%c4_162, %c0_163, %c0_164], %476 {strides = array<i32>} : memref<8x8x128xbf16, #tpu.memory_space<vmem>>, vector<1x8x128xbf16>,
    %c5_165 = arith.constant 5 : index
    %c0_166 = arith.constant 0 : index
    %c0_167 = arith.constant 0 : index
    %477 = vector.load %arg13[%c5_165, %c0_166, %c0_167] : memref<8x8x512xf32, #tpu.memory_space<vmem>>, vector<1x8x512xf32>
    %478 = vector.shape_cast %477 : vector<1x8x512xf32> to vector<8x512xf32>
    %479 = arith.truncf %472 : vector<8x128xf32> to vector<8x128xbf16>
    %cst_168 = arith.constant dense<0.000000e+00> : vector<8x512xf32>
    %480 = tpu.matmul %479, %294, %cst_168 {dimension_numbers = #tpu.dot_dimension_numbers<[1], [0], [0], [1], [0, 0, 1, 1], [], []>} : vector<8x128xbf16>, vector<128x512xbf16>, vector<8x512xf32> -> vector<8x512xf32>
    %481 = arith.addf %478, %480 : vector<8x512xf32>
    %482 = vector.extract_strided_slice %481 {offsets = [0, 0], sizes = [8, 128], strides = [1, 1]} : vector<8x512xf32> to vector<8x128xf32>
    %483 = arith.negf %482 : vector<8x128xf32>
    %484 = math.exp %483 : vector<8x128xf32>
    %cst_169 = arith.constant 1.000000e+00 : f32
    %485 = vector.broadcast %cst_169 : f32 to vector<8x128xf32>
    %486 = arith.addf %485, %484 : vector<8x128xf32>
    %487 = arith.divf %485, %486 : vector<8x128xf32>
    %488 = vector.extract_strided_slice %481 {offsets = [0, 128], sizes = [8, 128], strides = [1, 1]} : vector<8x512xf32> to vector<8x128xf32>
    %489 = arith.negf %488 : vector<8x128xf32>
    %490 = math.exp %489 : vector<8x128xf32>
    %cst_170 = arith.constant 1.000000e+00 : f32
    %491 = vector.broadcast %cst_170 : f32 to vector<8x128xf32>
    %492 = arith.addf %491, %490 : vector<8x128xf32>
    %493 = arith.divf %491, %492 : vector<8x128xf32>
    %494 = vector.extract_strided_slice %481 {offsets = [0, 256], sizes = [8, 128], strides = [1, 1]} : vector<8x512xf32> to vector<8x128xf32>
    %495 = math.tanh %494 : vector<8x128xf32>
    %496 = vector.extract_strided_slice %481 {offsets = [0, 384], sizes = [8, 128], strides = [1, 1]} : vector<8x512xf32> to vector<8x128xf32>
    %497 = arith.negf %496 : vector<8x128xf32>
    %498 = math.exp %497 : vector<8x128xf32>
    %cst_171 = arith.constant 1.000000e+00 : f32
    %499 = vector.broadcast %cst_171 : f32 to vector<8x128xf32>
    %500 = arith.addf %499, %498 : vector<8x128xf32>
    %501 = arith.divf %499, %500 : vector<8x128xf32>
    %502 = arith.mulf %493, %470 : vector<8x128xf32>
    %503 = arith.mulf %487, %495 : vector<8x128xf32>
    %504 = arith.addf %502, %503 : vector<8x128xf32>
    %505 = math.tanh %504 : vector<8x128xf32>
    %506 = arith.mulf %501, %505 : vector<8x128xf32>
    %507 = arith.truncf %506 : vector<8x128xf32> to vector<8x128xbf16>
    %c5_172 = arith.constant 5 : index
    %c0_173 = arith.constant 0 : index
    %c0_174 = arith.constant 0 : index
    %508 = vector.load %arg10[%c5_172, %c0_173, %c0_174] : memref<8x8x128xbf16, #tpu.memory_space<vmem>>, vector<1x8x128xbf16>
    %509 = vector.shape_cast %508 : vector<1x8x128xbf16> to vector<8x128xbf16>
    %510 = vector.shape_cast %507 : vector<8x128xbf16> to vector<1x8x128xbf16>
    tpu.vector_store %arg10[%c5_172, %c0_173, %c0_174], %510 {strides = array<i32>} : memref<8x8x128xbf16, #tpu.memory_space<vmem>>, vector<1x8x128xbf16>,
    %c6_175 = arith.constant 6 : index
    %c0_176 = arith.constant 0 : index
    %c0_177 = arith.constant 0 : index
    %511 = vector.load %arg13[%c6_175, %c0_176, %c0_177] : memref<8x8x512xf32, #tpu.memory_space<vmem>>, vector<1x8x512xf32>
    %512 = vector.shape_cast %511 : vector<1x8x512xf32> to vector<8x512xf32>
    %513 = arith.truncf %506 : vector<8x128xf32> to vector<8x128xbf16>
    %cst_178 = arith.constant dense<0.000000e+00> : vector<8x512xf32>
    %514 = tpu.matmul %513, %294, %cst_178 {dimension_numbers = #tpu.dot_dimension_numbers<[1], [0], [0], [1], [0, 0, 1, 1], [], []>} : vector<8x128xbf16>, vector<128x512xbf16>, vector<8x512xf32> -> vector<8x512xf32>
    %515 = arith.addf %512, %514 : vector<8x512xf32>
    %516 = vector.extract_strided_slice %515 {offsets = [0, 0], sizes = [8, 128], strides = [1, 1]} : vector<8x512xf32> to vector<8x128xf32>
    %517 = arith.negf %516 : vector<8x128xf32>
    %518 = math.exp %517 : vector<8x128xf32>
    %cst_179 = arith.constant 1.000000e+00 : f32
    %519 = vector.broadcast %cst_179 : f32 to vector<8x128xf32>
    %520 = arith.addf %519, %518 : vector<8x128xf32>
    %521 = arith.divf %519, %520 : vector<8x128xf32>
    %522 = vector.extract_strided_slice %515 {offsets = [0, 128], sizes = [8, 128], strides = [1, 1]} : vector<8x512xf32> to vector<8x128xf32>
    %523 = arith.negf %522 : vector<8x128xf32>
    %524 = math.exp %523 : vector<8x128xf32>
    %cst_180 = arith.constant 1.000000e+00 : f32
    %525 = vector.broadcast %cst_180 : f32 to vector<8x128xf32>
    %526 = arith.addf %525, %524 : vector<8x128xf32>
    %527 = arith.divf %525, %526 : vector<8x128xf32>
    %528 = vector.extract_strided_slice %515 {offsets = [0, 256], sizes = [8, 128], strides = [1, 1]} : vector<8x512xf32> to vector<8x128xf32>
    %529 = math.tanh %528 : vector<8x128xf32>
    %530 = vector.extract_strided_slice %515 {offsets = [0, 384], sizes = [8, 128], strides = [1, 1]} : vector<8x512xf32> to vector<8x128xf32>
    %531 = arith.negf %530 : vector<8x128xf32>
    %532 = math.exp %531 : vector<8x128xf32>
    %cst_181 = arith.constant 1.000000e+00 : f32
    %533 = vector.broadcast %cst_181 : f32 to vector<8x128xf32>
    %534 = arith.addf %533, %532 : vector<8x128xf32>
    %535 = arith.divf %533, %534 : vector<8x128xf32>
    %536 = arith.mulf %527, %504 : vector<8x128xf32>
    %537 = arith.mulf %521, %529 : vector<8x128xf32>
    %538 = arith.addf %536, %537 : vector<8x128xf32>
    %539 = math.tanh %538 : vector<8x128xf32>
    %540 = arith.mulf %535, %539 : vector<8x128xf32>
    %541 = arith.truncf %540 : vector<8x128xf32> to vector<8x128xbf16>
    %c6_182 = arith.constant 6 : index
    %c0_183 = arith.constant 0 : index
    %c0_184 = arith.constant 0 : index
    %542 = vector.load %arg10[%c6_182, %c0_183, %c0_184] : memref<8x8x128xbf16, #tpu.memory_space<vmem>>, vector<1x8x128xbf16>
    %543 = vector.shape_cast %542 : vector<1x8x128xbf16> to vector<8x128xbf16>
    %544 = vector.shape_cast %541 : vector<8x128xbf16> to vector<1x8x128xbf16>
    tpu.vector_store %arg10[%c6_182, %c0_183, %c0_184], %544 {strides = array<i32>} : memref<8x8x128xbf16, #tpu.memory_space<vmem>>, vector<1x8x128xbf16>,
    %c7_185 = arith.constant 7 : index
    %c0_186 = arith.constant 0 : index
    %c0_187 = arith.constant 0 : index
    %545 = vector.load %arg13[%c7_185, %c0_186, %c0_187] : memref<8x8x512xf32, #tpu.memory_space<vmem>>, vector<1x8x512xf32>
    %546 = vector.shape_cast %545 : vector<1x8x512xf32> to vector<8x512xf32>
    %547 = arith.truncf %540 : vector<8x128xf32> to vector<8x128xbf16>
    %cst_188 = arith.constant dense<0.000000e+00> : vector<8x512xf32>
    %548 = tpu.matmul %547, %294, %cst_188 {dimension_numbers = #tpu.dot_dimension_numbers<[1], [0], [0], [1], [0, 0, 1, 1], [], []>} : vector<8x128xbf16>, vector<128x512xbf16>, vector<8x512xf32> -> vector<8x512xf32>
    %549 = arith.addf %546, %548 : vector<8x512xf32>
    %550 = vector.extract_strided_slice %549 {offsets = [0, 0], sizes = [8, 128], strides = [1, 1]} : vector<8x512xf32> to vector<8x128xf32>
    %551 = arith.negf %550 : vector<8x128xf32>
    %552 = math.exp %551 : vector<8x128xf32>
    %cst_189 = arith.constant 1.000000e+00 : f32
    %553 = vector.broadcast %cst_189 : f32 to vector<8x128xf32>
    %554 = arith.addf %553, %552 : vector<8x128xf32>
    %555 = arith.divf %553, %554 : vector<8x128xf32>
    %556 = vector.extract_strided_slice %549 {offsets = [0, 128], sizes = [8, 128], strides = [1, 1]} : vector<8x512xf32> to vector<8x128xf32>
    %557 = arith.negf %556 : vector<8x128xf32>
    %558 = math.exp %557 : vector<8x128xf32>
    %cst_190 = arith.constant 1.000000e+00 : f32
    %559 = vector.broadcast %cst_190 : f32 to vector<8x128xf32>
    %560 = arith.addf %559, %558 : vector<8x128xf32>
    %561 = arith.divf %559, %560 : vector<8x128xf32>
    %562 = vector.extract_strided_slice %549 {offsets = [0, 256], sizes = [8, 128], strides = [1, 1]} : vector<8x512xf32> to vector<8x128xf32>
    %563 = math.tanh %562 : vector<8x128xf32>
    %564 = vector.extract_strided_slice %549 {offsets = [0, 384], sizes = [8, 128], strides = [1, 1]} : vector<8x512xf32> to vector<8x128xf32>
    %565 = arith.negf %564 : vector<8x128xf32>
    %566 = math.exp %565 : vector<8x128xf32>
    %cst_191 = arith.constant 1.000000e+00 : f32
    %567 = vector.broadcast %cst_191 : f32 to vector<8x128xf32>
    %568 = arith.addf %567, %566 : vector<8x128xf32>
    %569 = arith.divf %567, %568 : vector<8x128xf32>
    %570 = arith.mulf %561, %538 : vector<8x128xf32>
    %571 = arith.mulf %555, %563 : vector<8x128xf32>
    %572 = arith.addf %570, %571 : vector<8x128xf32>
    %573 = math.tanh %572 : vector<8x128xf32>
    %574 = arith.mulf %569, %573 : vector<8x128xf32>
    %575 = arith.truncf %574 : vector<8x128xf32> to vector<8x128xbf16>
    %c7_192 = arith.constant 7 : index
    %c0_193 = arith.constant 0 : index
    %c0_194 = arith.constant 0 : index
    %576 = vector.load %arg10[%c7_192, %c0_193, %c0_194] : memref<8x8x128xbf16, #tpu.memory_space<vmem>>, vector<1x8x128xbf16>
    %577 = vector.shape_cast %576 : vector<1x8x128xbf16> to vector<8x128xbf16>
    %578 = vector.shape_cast %575 : vector<8x128xbf16> to vector<1x8x128xbf16>
    tpu.vector_store %arg10[%c7_192, %c0_193, %c0_194], %578 {strides = array<i32>} : memref<8x8x128xbf16, #tpu.memory_space<vmem>>, vector<1x8x128xbf16>,
    %c1_195 = arith.constant 1 : index
    %c0_196 = arith.constant 0 : index
    %c0_197 = arith.constant 0 : index
    %579 = vector.load %arg11[%c1_195, %c0_196, %c0_197] : memref<2x8x128xf32, #tpu.memory_space<vmem>>, vector<1x8x128xf32>
    %580 = vector.shape_cast %579 : vector<1x8x128xf32> to vector<8x128xf32>
    %581 = vector.shape_cast %574 : vector<8x128xf32> to vector<1x8x128xf32>
    tpu.vector_store %arg11[%c1_195, %c0_196, %c0_197], %581 {strides = array<i32>} : memref<2x8x128xf32, #tpu.memory_space<vmem>>, vector<1x8x128xf32>,
    %c1_198 = arith.constant 1 : index
    %c0_199 = arith.constant 0 : index
    %c0_200 = arith.constant 0 : index
    %582 = vector.load %arg12[%c1_198, %c0_199, %c0_200] : memref<2x8x128xf32, #tpu.memory_space<vmem>>, vector<1x8x128xf32>
    %583 = vector.shape_cast %582 : vector<1x8x128xf32> to vector<8x128xf32>
    %584 = vector.shape_cast %572 : vector<8x128xf32> to vector<1x8x128xf32>
    tpu.vector_store %arg12[%c1_198, %c0_199, %c0_200], %584 {strides = array<i32>} : memref<2x8x128xf32, #tpu.memory_space<vmem>>, vector<1x8x128xf32>,
    return
  }
  func.func @transform_0(%arg0: i32) -> (i32, i32, i32) {
    %c0_i32 = arith.constant 0 : i32
    %c0_i32_0 = arith.constant 0 : i32
    %c0_i32_1 = arith.constant 0 : i32
    return %c0_i32, %arg0, %c0_i32_0 : i32, i32, i32
  }
  func.func @transform_1(%arg0: i32) -> (i32, i32) {
    %c0_i32 = arith.constant 0 : i32
    %c0_i32_0 = arith.constant 0 : i32
    return %arg0, %c0_i32 : i32, i32
  }
  func.func @transform_2(%arg0: i32) -> (i32, i32) {
    %c0_i32 = arith.constant 0 : i32
    %c0_i32_0 = arith.constant 0 : i32
    %c0_i32_1 = arith.constant 0 : i32
    return %c0_i32, %c0_i32_0 : i32, i32
  }
  func.func @transform_3(%arg0: i32) -> (i32, i32) {
    %c0_i32 = arith.constant 0 : i32
    %c0_i32_0 = arith.constant 0 : i32
    %c0_i32_1 = arith.constant 0 : i32
    return %c0_i32, %c0_i32_0 : i32, i32
  }
  func.func @transform_4(%arg0: i32) -> (i32, i32) {
    %c0_i32 = arith.constant 0 : i32
    %c0_i32_0 = arith.constant 0 : i32
    %c0_i32_1 = arith.constant 0 : i32
    return %c0_i32, %c0_i32_0 : i32, i32
  }
  func.func @transform_5(%arg0: i32) -> (i32, i32) {
    %c0_i32 = arith.constant 0 : i32
    %c0_i32_0 = arith.constant 0 : i32
    %c0_i32_1 = arith.constant 0 : i32
    return %c0_i32, %c0_i32_0 : i32, i32
  }
  func.func @transform_6(%arg0: i32) -> (i32, i32) {
    %c0_i32 = arith.constant 0 : i32
    %c0_i32_0 = arith.constant 0 : i32
    %c0_i32_1 = arith.constant 0 : i32
    return %c0_i32, %c0_i32_0 : i32, i32
  }
  func.func @transform_7(%arg0: i32) -> (i32, i32, i32) {
    %c0_i32 = arith.constant 0 : i32
    %c0_i32_0 = arith.constant 0 : i32
    %c0_i32_1 = arith.constant 0 : i32
    return %c0_i32, %arg0, %c0_i32_0 : i32, i32, i32
  }
  func.func @transform_8(%arg0: i32) -> (i32, i32, i32) {
    %c0_i32 = arith.constant 0 : i32
    %c0_i32_0 = arith.constant 0 : i32
    %c0_i32_1 = arith.constant 0 : i32
    return %c0_i32, %arg0, %c0_i32_0 : i32, i32, i32
  }
  func.func @transform_9(%arg0: i32) -> (i32, i32, i32) {
    %c0_i32 = arith.constant 0 : i32
    %c0_i32_0 = arith.constant 0 : i32
    %c0_i32_1 = arith.constant 0 : i32
    return %c0_i32, %arg0, %c0_i32_0 : i32, i32, i32
  }
  func.func @transform_10(%arg0: i32) -> (i32, i32, i32) {
    %c0_i32 = arith.constant 0 : i32
    %c0_i32_0 = arith.constant 0 : i32
    %c0_i32_1 = arith.constant 0 : i32
    return %c0_i32, %arg0, %c0_i32_0 : i32, i32, i32
  }
  func.func @transform_11(%arg0: i32) -> (i32, i32, i32) {
    %c0_i32 = arith.constant 0 : i32
    %c0_i32_0 = arith.constant 0 : i32
    %c0_i32_1 = arith.constant 0 : i32
    return %c0_i32, %arg0, %c0_i32_0 : i32, i32, i32
  }
}

</mosaic_0001>

<llo_original>
// kernel: generator_forward.3
$region0: #{generator_forward.3}
  #allocation0 [shape = 'u32[]', space=smem, size = 0x4, offset = 0x4, fixed_abs, tag = 'smem constant byte address 0x4 - core index']
  #allocation1 [shape = 'u32[72,128]{1,0:T(1,128)}', space=vmem, size = 0x9000, scoped, tag = 'internal scratch']
  %s0 = inlined_call_operand.vmem [shape: bf16[64,128], index: 0, kind: input, shape index: {}]
  %s1 = inlined_call_operand.vmem [shape: bf16[128,128], index: 1, kind: input, shape index: {}]
  %s2 = inlined_call_operand.vmem [shape: f32[1,128], index: 2, kind: input, shape index: {}]
  %s3 = inlined_call_operand.vmem [shape: f32[64,128], index: 3, kind: output, shape index: {}]
  %s4 = sld [smem:[#allocation0]]
  $region22: #{generator_forward.3} parent=0
    _
  %s6 = ssub.s32 1, %s4
  %s7 = scalar_select 0, %s6, %s4
  // Predicated region
  $region2: #{generator_forward.3} parent=0 // pred_check
    _
  $region3: #{generator_forward.3} parent=0 // pred_check_branch
    %9 = sbr.rel (0) target = $region5
  $region4: #{generator_forward.3} parent=0 // pred_region
    _
  $region5: #{generator_forward.3} parent=0 // pred_fallthru
    _
  // Predicated region
  $region6: #{generator_forward.3} parent=0 // pred_check
    _
  $region7: #{generator_forward.3} parent=0 // pred_check_branch
    %11 = sbr.rel (0) target = $region9
  $region8: #{generator_forward.3} parent=0 // pred_region
    _
  $region9: #{generator_forward.3} parent=0 // pred_fallthru
    _
  // Predicated region
  $region10: #{generator_forward.3} parent=0 // pred_check
    _
  $region11: #{generator_forward.3} parent=0 // pred_check_branch
    %13 = sbr.rel (0) target = $region13
  $region12: #{generator_forward.3} parent=0 // pred_region
    _
  $region13: #{generator_forward.3} parent=0 // pred_fallthru
    _
  %v14 = vld [vmem:[%s0] sm:$0xf]
  %v15 = vld [vmem:[%s0 + $0x4] sm:$0xf]
  %v16 = vld [vmem:[%s0 + $0x8] sm:$0xf]
  %v17 = vld [vmem:[%s0 + $0xc] sm:$0xf]
  %v18 = vld [vmem:[%s0 + $0x10] sm:$0xf]
  %v19 = vld [vmem:[%s0 + $0x14] sm:$0xf]
  %v20 = vld [vmem:[%s0 + $0x18] sm:$0xf]
  %v21 = vld [vmem:[%s0 + $0x1c] sm:$0xf]
  %v22 = vld [vmem:[%s1] sm:$0xf]
  %v23 = vld [vmem:[%s1 + $0x4] sm:$0xf]
  %v24 = vld [vmem:[%s1 + $0x8] sm:$0xf]
  %v25 = vld [vmem:[%s1 + $0xc] sm:$0xf]
  %v26 = vld [vmem:[%s1 + $0x10] sm:$0xf]
  %v27 = vld [vmem:[%s1 + $0x14] sm:$0xf]
  %v28 = vld [vmem:[%s1 + $0x18] sm:$0xf]
  %v29 = vld [vmem:[%s1 + $0x1c] sm:$0xf]
  %v30 = vld [vmem:[%s1 + $0x20] sm:$0xf]
  %v31 = vld [vmem:[%s1 + $0x24] sm:$0xf]
  %v32 = vld [vmem:[%s1 + $0x28] sm:$0xf]
  %v33 = vld [vmem:[%s1 + $0x2c] sm:$0xf]
  %v34 = vld [vmem:[%s1 + $0x30] sm:$0xf]
  %v35 = vld [vmem:[%s1 + $0x34] sm:$0xf]
  %v36 = vld [vmem:[%s1 + $0x38] sm:$0xf]
  %v37 = vld [vmem:[%s1 + $0x3c] sm:$0xf]
  %v38 = vld [vmem:[%s2] sm:$0x1]
  %v40 = vperm.slane %v38, 0
  %v50 = vunpack.c.l.b16 %v14
  %v51 = vunpack.c.l.b16 %v15
  %v52 = vunpack.c.l.b16 %v16
  %v53 = vunpack.c.l.b16 %v17
  %v54 = vunpack.c.l.b16 %v18
  %v55 = vunpack.c.l.b16 %v19
  %v56 = vunpack.c.l.b16 %v20
  %v57 = vunpack.c.l.b16 %v21
  %v58 = vpack.c.b16 %v51, %v50
  %v59 = vpack.c.b16 %v53, %v52
  %v60 = vpack.c.b16 %v55, %v54
  %v61 = vpack.c.b16 %v57, %v56
  %v82 = vunpack.c.l.b16 %v22
  %v83 = vunpack.c.l.b16 %v23
  %v84 = vunpack.c.l.b16 %v24
  %v85 = vunpack.c.l.b16 %v25
  %v86 = vunpack.c.l.b16 %v26
  %v87 = vunpack.c.l.b16 %v27
  %v88 = vunpack.c.l.b16 %v28
  %v89 = vunpack.c.l.b16 %v29
  %v90 = vunpack.c.l.b16 %v30
  %v91 = vunpack.c.l.b16 %v31
  %v92 = vunpack.c.l.b16 %v32
  %v93 = vunpack.c.l.b16 %v33
  %v94 = vunpack.c.l.b16 %v34
  %v95 = vunpack.c.l.b16 %v35
  %v96 = vunpack.c.l.b16 %v36
  %v97 = vunpack.c.l.b16 %v37
  %v98 = vpack.c.b16 %v83, %v82
  %v99 = vpack.c.b16 %v85, %v84
  %v100 = vpack.c.b16 %v87, %v86
  %v101 = vpack.c.b16 %v89, %v88
  %v102 = vpack.c.b16 %v91, %v90
  %v103 = vpack.c.b16 %v93, %v92
  %v104 = vpack.c.b16 %v95, %v94
  %v105 = vpack.c.b16 %v97, %v96
  %114 = vmatpush.bf16.msra.mxu0 %v105
  %115 = vmatpush.bf16.msra.mxu0 %v104
  %116 = vmatpush.bf16.msra.mxu0 %v103
  %117 = vmatpush.bf16.msra.mxu0 %v102
  %118 = vmatpush.bf16.msra.mxu0 %v101
  %119 = vmatpush.bf16.msra.mxu0 %v100
  %120 = vmatpush.bf16.msra.mxu0 %v99
  %121 = vmatpush.bf16.msra.mxu0 %v98
  %122 = vmatmul.bf16.gmra.mxu0 %v58
  %v123 = vpop.f32.mrf.mxu0
  %v124 = vadd.f32 %v40, %v123
  %v125 = vpop.f32.mrf.mxu0
  %v126 = vadd.f32 %v40, %v125
  %127 = vmatmul.bf16.gmra.mxu0 %v59
  %v128 = vpop.f32.mrf.mxu0
  %v129 = vadd.f32 %v40, %v128
  %v130 = vpop.f32.mrf.mxu0
  %v131 = vadd.f32 %v40, %v130
  %132 = vmatmul.bf16.gmra.mxu0 %v60
  %v133 = vpop.f32.mrf.mxu0
  %v134 = vadd.f32 %v40, %v133
  %v135 = vpop.f32.mrf.mxu0
  %v136 = vadd.f32 %v40, %v135
  %137 = vmatmul.bf16.gmra.mxu0 %v61
  %v138 = vpop.f32.mrf.mxu0
  %v139 = vadd.f32 %v40, %v138
  %v140 = vpop.f32.mrf.mxu0
  %v141 = vadd.f32 %v40, %v140
  %142 = vdwg.mxu0
  %143 = vst [vmem:[%s3] sm:$0xff] %v124
  %144 = vst [vmem:[%s3 + $0x8] sm:$0xff] %v126
  %145 = vst [vmem:[%s3 + $0x10] sm:$0xff] %v129
  %146 = vst [vmem:[%s3 + $0x18] sm:$0xff] %v131
  %147 = vst [vmem:[%s3 + $0x20] sm:$0xff] %v134
  %148 = vst [vmem:[%s3 + $0x28] sm:$0xff] %v136
  %149 = vst [vmem:[%s3 + $0x30] sm:$0xff] %v139
  %150 = vst [vmem:[%s3 + $0x38] sm:$0xff] %v141
  // Predicated region
  $region14: #{generator_forward.3} parent=0 // pred_check
    _
  $region15: #{generator_forward.3} parent=0 // pred_check_branch
    %152 = sbr.rel (0) target = $region17
  $region16: #{generator_forward.3} parent=0 // pred_region
    _
  $region17: #{generator_forward.3} parent=0 // pred_fallthru
    _
  // Predicated region
  $region18: #{generator_forward.3} parent=0 // pred_check
    _
  $region19: #{generator_forward.3} parent=0 // pred_check_branch
    %154 = sbr.rel (0) target = $region21
  $region20: #{generator_forward.3} parent=0 // pred_region
    _
  $region21: #{generator_forward.3} parent=0 // pred_fallthru
    _

// kernel: generator_forward.2
$region0: #{generator_forward.2}
  #allocation0 [shape = 'u32[]', space=smem, size = 0x4, offset = 0x4, fixed_abs, tag = 'smem constant byte address 0x4 - core index']
  #allocation1 [shape = 'u32[72,128]{1,0:T(1,128)}', space=vmem, size = 0x9000, scoped, tag = 'internal scratch']
  #allocation2 [shape = 'f32[8,8,512]{2,1,0:T(8,128)}', space=vmem, size = 0x20000, scoped, tag = 'scratch operand']
  #allocation3 [shape = 'bf16[8,8,128]{2,1,0:T(8,128)(2,1)}', space=vmem, size = 0x4000, scoped, tag = 'scratch operand']
  %s0 = inlined_call_operand.vmem [shape: bf16[8,8,128], index: 0, kind: input, shape index: {}]
  %s1 = inlined_call_operand.vmem [shape: f32[8,512], index: 1, kind: input, shape index: {}]
  %s2 = inlined_call_operand.hbm [shape: bf16[128,512], index: 2, kind: input, shape index: {}]
  %s3 = inlined_call_operand.hbm [shape: bf16[128,512], index: 3, kind: input, shape index: {}]
  %s4 = inlined_call_operand.hbm [shape: bf16[128,512], index: 4, kind: input, shape index: {}]
  %s5 = inlined_call_operand.hbm [shape: bf16[128,512], index: 5, kind: input, shape index: {}]
  %s6 = inlined_call_operand.vmem [shape: f32[1,512], index: 6, kind: input, shape index: {}]
  %s7 = inlined_call_operand.vmem [shape: f32[2,8,128], index: 7, kind: input, shape index: {}, may-alias: {7,8}]
  %s8 = inlined_call_operand.vmem [shape: f32[2,8,128], index: 8, kind: input, shape index: {}, may-alias: {7,8}]
  %s9 = inlined_call_operand.vmem [shape: bf16[8,8,128], index: 9, kind: output, shape index: {0}]
  %s10 = inlined_call_operand.vmem [shape: f32[2,8,128], index: 10, kind: output, shape index: {1}]
  %s11 = inlined_call_operand.vmem [shape: f32[2,8,128], index: 11, kind: output, shape index: {2}]
  %12 = xla_tuple %s9, %s10, %s11
  %s13 = sld [smem:[#allocation0]]
  $region78: #{generator_forward.2} parent=0
    _
  %s15 = ssub.s32 1, %s13
  %s16 = scalar_select 0, %s15, %s13
  $region1: #{generator_forward.2} parent=0
    #allocation4 [shape = 'u8[131072]{0}', space=vmem, size = 0x20000, scoped, tag = 'input window, operand 2, single buffered']
    #allocation5 [shape = 's32[1]{0}', space=sflag, size = 0x4, scoped, tag = 'scoped memory for generator_forward.2']
    #allocation6 [shape = 'u8[131072]{0}', space=vmem, size = 0x20000, scoped, tag = 'input window, operand 3, single buffered']
    #allocation7 [shape = 's32[1]{0}', space=sflag, size = 0x4, scoped, tag = 'scoped memory for generator_forward.2']
    #allocation8 [shape = 'u8[131072]{0}', space=vmem, size = 0x20000, scoped, tag = 'input window, operand 4, single buffered']
    #allocation9 [shape = 'u8[131072]{0}', space=vmem, size = 0x20000, scoped, tag = 'input window, operand 5, single buffered']
    #allocation10 [shape = 's32[1]{0}', space=sflag, size = 0x4, scoped, tag = 'scoped memory for generator_forward.2']
    %17 = vsyncpa [#allocation5], 0
    %18 = vsyncpa [#allocation7], 0
    %19 = vsyncpa [#allocation10], 0
    // Predicated region
    $region2: #{generator_forward.2} parent=1 // pred_check
      _
    $region3: #{generator_forward.2} parent=1 // pred_check_branch
      %21 = sbr.rel (0) target = $region5
    $region4: #{generator_forward.2} parent=1 // pred_region
      _
    $region5: #{generator_forward.2} parent=1 // pred_fallthru
      _
    // Predicated region
    $region6: #{generator_forward.2} parent=1 // pred_check
      _
    $region7: #{generator_forward.2} parent=1 // pred_check_branch
      %23 = sbr.rel (0) target = $region9
    $region8: #{generator_forward.2} parent=1 // pred_region
      _
    $region9: #{generator_forward.2} parent=1 // pred_fallthru
      _
    // Predicated region
    $region10: #{generator_forward.2} parent=1 // pred_check
      _
    $region11: #{generator_forward.2} parent=1 // pred_check_branch
      %25 = sbr.rel (0) target = $region13
    $region12: #{generator_forward.2} parent=1 // pred_region
      %27 = vsyncadd [#allocation5], 0
      %s28 = sshll.u32 %s2, 4
      %s29 = int_to_ptr.hbm [resolvable:$true] %s28
      %s30 = sshll.u32 [#allocation4], 4
      %s31 = int_to_ptr.vmem [resolvable:$true] %s30
      %36 = dma.hbm_to_vmem [thread:$0]  %s29, 4096, %s31, [#allocation5], 256, 256, 16
    $region13: #{generator_forward.2} parent=1 // pred_fallthru
      _
    // Predicated region
    $region14: #{generator_forward.2} parent=1 // pred_check
      _
    $region15: #{generator_forward.2} parent=1 // pred_check_branch
      %38 = sbr.rel (0) target = $region17
    $region16: #{generator_forward.2} parent=1 // pred_region
      %40 = vsyncadd [#allocation7], 0
      %s41 = sshll.u32 %s3, 4
      %s42 = int_to_ptr.hbm [resolvable:$true] %s41
      %s43 = sshll.u32 [#allocation6], 4
      %s44 = int_to_ptr.vmem [resolvable:$true] %s43
      %49 = dma.hbm_to_vmem [thread:$0]  %s42, 4096, %s44, [#allocation7], 256, 256, 16
    $region17: #{generator_forward.2} parent=1 // pred_fallthru
      _
    // Predicated region
    $region18: #{generator_forward.2} parent=1 // pred_check
      _
    $region19: #{generator_forward.2} parent=1 // pred_check_branch
      %51 = sbr.rel (0) target = $region21
    $region20: #{generator_forward.2} parent=1 // pred_region
      %53 = vsyncadd [#allocation7], 0
      %s54 = sshll.u32 %s4, 4
      %s55 = int_to_ptr.hbm [resolvable:$true] %s54
      %s56 = sshll.u32 [#allocation8], 4
      %s57 = int_to_ptr.vmem [resolvable:$true] %s56
      %62 = dma.hbm_to_vmem [thread:$0]  %s55, 4096, %s57, [#allocation7], 256, 256, 16
    $region21: #{generator_forward.2} parent=1 // pred_fallthru
      _
    // Predicated region
    $region22: #{generator_forward.2} parent=1 // pred_check
      _
    $region23: #{generator_forward.2} parent=1 // pred_check_branch
      %64 = sbr.rel (0) target = $region25
    $region24: #{generator_forward.2} parent=1 // pred_region
      %66 = vsyncadd [#allocation10], 0
      %s67 = sshll.u32 %s5, 4
      %s68 = int_to_ptr.hbm [resolvable:$true] %s67
      %s69 = sshll.u32 [#allocation9], 4
      %s70 = int_to_ptr.vmem [resolvable:$true] %s69
      %75 = dma.hbm_to_vmem [thread:$0]  %s68, 4096, %s70, [#allocation10], 256, 256, 16
    $region25: #{generator_forward.2} parent=1 // pred_fallthru
      _
    // Predicated region
    $region26: #{generator_forward.2} parent=1 // pred_check
      _
    $region27: #{generator_forward.2} parent=1 // pred_check_branch
      %77 = sbr.rel (0) target = $region29
    $region28: #{generator_forward.2} parent=1 // pred_region
      _
    $region29: #{generator_forward.2} parent=1 // pred_fallthru
      _
    // Predicated region
    $region30: #{generator_forward.2} parent=1 // pred_check
      _
    $region31: #{generator_forward.2} parent=1 // pred_check_branch
      %79 = sbr.rel (0) target = $region33
    $region32: #{generator_forward.2} parent=1 // pred_region
      _
    $region33: #{generator_forward.2} parent=1 // pred_fallthru
      _
    // Predicated region
    $region34: #{generator_forward.2} parent=1 // pred_check
      _
    $region35: #{generator_forward.2} parent=1 // pred_check_branch
      %81 = sbr.rel (0) target = $region37
    $region36: #{generator_forward.2} parent=1 // pred_region
      _
    $region37: #{generator_forward.2} parent=1 // pred_fallthru
      _
    // Predicated region
    $region38: #{generator_forward.2} parent=1 // pred_check
      _
    $region39: #{generator_forward.2} parent=1 // pred_check_branch
      %83 = sbr.rel (0) target = $region41
    $region40: #{generator_forward.2} parent=1 // pred_region
      %85 = dma.done [#allocation5], 4096
    $region41: #{generator_forward.2} parent=1 // pred_fallthru
      _
    // Predicated region
    $region42: #{generator_forward.2} parent=1 // pred_check
      _
    $region43: #{generator_forward.2} parent=1 // pred_check_branch
      %87 = sbr.rel (0) target = $region45
    $region44: #{generator_forward.2} parent=1 // pred_region
      %89 = dma.done [#allocation7], 4096
    $region45: #{generator_forward.2} parent=1 // pred_fallthru
      _
    // Predicated region
    $region46: #{generator_forward.2} parent=1 // pred_check
      _
    $region47: #{generator_forward.2} parent=1 // pred_check_branch
      %91 = sbr.rel (0) target = $region49
    $region48: #{generator_forward.2} parent=1 // pred_region
      %93 = dma.done [#allocation7], 4096
    $region49: #{generator_forward.2} parent=1 // pred_fallthru
      _
    // Predicated region
    $region50: #{generator_forward.2} parent=1 // pred_check
      _
    $region51: #{generator_forward.2} parent=1 // pred_check_branch
      %95 = sbr.rel (0) target = $region53
    $region52: #{generator_forward.2} parent=1 // pred_region
      %97 = dma.done [#allocation10], 4096
    $region53: #{generator_forward.2} parent=1 // pred_fallthru
      _
    %v98 = vld [vmem:[%s1] sm:$0xff]
    %v99 = vld [vmem:[%s1 + $0x8] sm:$0xff]
    %v100 = vld [vmem:[%s1 + $0x10] sm:$0xff]
    %v101 = vld [vmem:[%s1 + $0x18] sm:$0xff]
    %v102 = vld [vmem:[#allocation4] sm:$0xff]
    %v103 = vld [vmem:[#allocation4 + $0x8] sm:$0xff]
    %v104 = vld [vmem:[#allocation4 + $0x10] sm:$0xff]
    %v105 = vld [vmem:[#allocation4 + $0x18] sm:$0xff]
    %v106 = vld [vmem:[#allocation4 + $0x20] sm:$0xff]
    %v107 = vld [vmem:[#allocation4 + $0x28] sm:$0xff]
    %v108 = vld [vmem:[#allocation4 + $0x30] sm:$0xff]
    %v109 = vld [vmem:[#allocation4 + $0x38] sm:$0xff]
    %v110 = vld [vmem:[#allocation4 + $0x40] sm:$0xff]
    %v111 = vld [vmem:[#allocation4 + $0x48] sm:$0xff]
    %v112 = vld [vmem:[#allocation4 + $0x50] sm:$0xff]
    %v113 = vld [vmem:[#allocation4 + $0x58] sm:$0xff]
    %v114 = vld [vmem:[#allocation4 + $0x60] sm:$0xff]
    %v115 = vld [vmem:[#allocation4 + $0x68] sm:$0xff]
    %v116 = vld [vmem:[#allocation4 + $0x70] sm:$0xff]
    %v117 = vld [vmem:[#allocation4 + $0x78] sm:$0xff]
    %v118 = vld [vmem:[#allocation4 + $0x80] sm:$0xff]
    %v119 = vld [vmem:[#allocation4 + $0x88] sm:$0xff]
    %v120 = vld [vmem:[#allocation4 + $0x90] sm:$0xff]
    %v121 = vld [vmem:[#allocation4 + $0x98] sm:$0xff]
    %v122 = vld [vmem:[#allocation4 + $0xa0] sm:$0xff]
    %v123 = vld [vmem:[#allocation4 + $0xa8] sm:$0xff]
    %v124 = vld [vmem:[#allocation4 + $0xb0] sm:$0xff]
    %v125 = vld [vmem:[#allocation4 + $0xb8] sm:$0xff]
    %v126 = vld [vmem:[#allocation4 + $0xc0] sm:$0xff]
    %v127 = vld [vmem:[#allocation4 + $0xc8] sm:$0xff]
    %v128 = vld [vmem:[#allocation4 + $0xd0] sm:$0xff]
    %v129 = vld [vmem:[#allocation4 + $0xd8] sm:$0xff]
    %v130 = vld [vmem:[#allocation4 + $0xe0] sm:$0xff]
    %v131 = vld [vmem:[#allocation4 + $0xe8] sm:$0xff]
    %v132 = vld [vmem:[#allocation4 + $0xf0] sm:$0xff]
    %v133 = vld [vmem:[#allocation4 + $0xf8] sm:$0xff]
    %v134 = vld [vmem:[#allocation6] sm:$0xff]
    %v135 = vld [vmem:[#allocation6 + $0x8] sm:$0xff]
    %v136 = vld [vmem:[#allocation6 + $0x10] sm:$0xff]
    %v137 = vld [vmem:[#allocation6 + $0x18] sm:$0xff]
    %v138 = vld [vmem:[#allocation6 + $0x20] sm:$0xff]
    %v139 = vld [vmem:[#allocation6 + $0x28] sm:$0xff]
    %v140 = vld [vmem:[#allocation6 + $0x30] sm:$0xff]
    %v141 = vld [vmem:[#allocation6 + $0x38] sm:$0xff]
    %v142 = vld [vmem:[#allocation6 + $0x40] sm:$0xff]
    %v143 = vld [vmem:[#allocation6 + $0x48] sm:$0xff]
    %v144 = vld [vmem:[#allocation6 + $0x50] sm:$0xff]
    %v145 = vld [vmem:[#allocation6 + $0x58] sm:$0xff]
    %v146 = vld [vmem:[#allocation6 + $0x60] sm:$0xff]
    %v147 = vld [vmem:[#allocation6 + $0x68] sm:$0xff]
    %v148 = vld [vmem:[#allocation6 + $0x70] sm:$0xff]
    %v149 = vld [vmem:[#allocation6 + $0x78] sm:$0xff]
    %v150 = vld [vmem:[#allocation6 + $0x80] sm:$0xff]
    %v151 = vld [vmem:[#allocation6 + $0x88] sm:$0xff]
    %v152 = vld [vmem:[#allocation6 + $0x90] sm:$0xff]
    %v153 = vld [vmem:[#allocation6 + $0x98] sm:$0xff]
    %v154 = vld [vmem:[#allocation6 + $0xa0] sm:$0xff]
    %v155 = vld [vmem:[#allocation6 + $0xa8] sm:$0xff]
    %v156 = vld [vmem:[#allocation6 + $0xb0] sm:$0xff]
    %v157 = vld [vmem:[#allocation6 + $0xb8] sm:$0xff]
    %v158 = vld [vmem:[#allocation6 + $0xc0] sm:$0xff]
    %v159 = vld [vmem:[#allocation6 + $0xc8] sm:$0xff]
    %v160 = vld [vmem:[#allocation6 + $0xd0] sm:$0xff]
    %v161 = vld [vmem:[#allocation6 + $0xd8] sm:$0xff]
    %v162 = vld [vmem:[#allocation6 + $0xe0] sm:$0xff]
    %v163 = vld [vmem:[#allocation6 + $0xe8] sm:$0xff]
    %v164 = vld [vmem:[#allocation6 + $0xf0] sm:$0xff]
    %v165 = vld [vmem:[#allocation6 + $0xf8] sm:$0xff]
    %v166 = vld [vmem:[%s7] sm:$0xff]
    %v167 = vld [vmem:[%s8] sm:$0xff]
    %v168 = vld [vmem:[%s0] sm:$0xf]
    %v169 = vld [vmem:[%s0 + $0x4] sm:$0xf]
    %v170 = vld [vmem:[%s0 + $0x8] sm:$0xf]
    %v171 = vld [vmem:[%s0 + $0xc] sm:$0xf]
    %v172 = vld [vmem:[%s0 + $0x10] sm:$0xf]
    %v173 = vld [vmem:[%s0 + $0x14] sm:$0xf]
    %v174 = vld [vmem:[%s0 + $0x18] sm:$0xf]
    %v175 = vld [vmem:[%s0 + $0x1c] sm:$0xf]
    %v184 = vunpack.c.l.b16 %v168
    %v185 = vunpack.c.l.b16 %v169
    %v186 = vunpack.c.l.b16 %v170
    %v187 = vunpack.c.l.b16 %v171
    %v188 = vunpack.c.l.b16 %v172
    %v189 = vunpack.c.l.b16 %v173
    %v190 = vunpack.c.l.b16 %v174
    %v191 = vunpack.c.l.b16 %v175
    %v192 = vpack.c.b16 %v185, %v184
    %v193 = vpack.c.b16 %v187, %v186
    %v194 = vpack.c.b16 %v189, %v188
    %v195 = vpack.c.b16 %v191, %v190
    %v232 = vunpack.c.l.b16 %v102
    %v233 = vunpack.c.h.b16 %v102
    %v234 = vunpack.c.l.b16 %v103
    %v235 = vunpack.c.h.b16 %v103
    %v236 = vunpack.c.l.b16 %v104
    %v237 = vunpack.c.h.b16 %v104
    %v238 = vunpack.c.l.b16 %v105
    %v239 = vunpack.c.h.b16 %v105
    %v240 = vunpack.c.l.b16 %v106
    %v241 = vunpack.c.h.b16 %v106
    %v242 = vunpack.c.l.b16 %v107
    %v243 = vunpack.c.h.b16 %v107
    %v244 = vunpack.c.l.b16 %v108
    %v245 = vunpack.c.h.b16 %v108
    %v246 = vunpack.c.l.b16 %v109
    %v247 = vunpack.c.h.b16 %v109
    %v248 = vunpack.c.l.b16 %v110
    %v249 = vunpack.c.h.b16 %v110
    %v250 = vunpack.c.l.b16 %v111
    %v251 = vunpack.c.h.b16 %v111
    %v252 = vunpack.c.l.b16 %v112
    %v253 = vunpack.c.h.b16 %v112
    %v254 = vunpack.c.l.b16 %v113
    %v255 = vunpack.c.h.b16 %v113
    %v256 = vunpack.c.l.b16 %v114
    %v257 = vunpack.c.h.b16 %v114
    %v258 = vunpack.c.l.b16 %v115
    %v259 = vunpack.c.h.b16 %v115
    %v260 = vunpack.c.l.b16 %v116
    %v261 = vunpack.c.h.b16 %v116
    %v262 = vunpack.c.l.b16 %v117
    %v263 = vunpack.c.h.b16 %v117
    %v264 = vunpack.c.l.b16 %v118
    %v265 = vunpack.c.h.b16 %v118
    %v266 = vunpack.c.l.b16 %v119
    %v267 = vunpack.c.h.b16 %v119
    %v268 = vunpack.c.l.b16 %v120
    %v269 = vunpack.c.h.b16 %v120
    %v270 = vunpack.c.l.b16 %v121
    %v271 = vunpack.c.h.b16 %v121
    %v272 = vunpack.c.l.b16 %v122
    %v273 = vunpack.c.h.b16 %v122
    %v274 = vunpack.c.l.b16 %v123
    %v275 = vunpack.c.h.b16 %v123
    %v276 = vunpack.c.l.b16 %v124
    %v277 = vunpack.c.h.b16 %v124
    %v278 = vunpack.c.l.b16 %v125
    %v279 = vunpack.c.h.b16 %v125
    %v280 = vunpack.c.l.b16 %v126
    %v281 = vunpack.c.h.b16 %v126
    %v282 = vunpack.c.l.b16 %v127
    %v283 = vunpack.c.h.b16 %v127
    %v284 = vunpack.c.l.b16 %v128
    %v285 = vunpack.c.h.b16 %v128
    %v286 = vunpack.c.l.b16 %v129
    %v287 = vunpack.c.h.b16 %v129
    %v288 = vunpack.c.l.b16 %v130
    %v289 = vunpack.c.h.b16 %v130
    %v290 = vunpack.c.l.b16 %v131
    %v291 = vunpack.c.h.b16 %v131
    %v292 = vunpack.c.l.b16 %v132
    %v293 = vunpack.c.h.b16 %v132
    %v294 = vunpack.c.l.b16 %v133
    %v295 = vunpack.c.h.b16 %v133
    %v296 = vpack.c.b16 %v236, %v232
    %v297 = vpack.c.b16 %v237, %v233
    %v298 = vpack.c.b16 %v238, %v234
    %v299 = vpack.c.b16 %v239, %v235
    %v300 = vpack.c.b16 %v244, %v240
    %v301 = vpack.c.b16 %v245, %v241
    %v302 = vpack.c.b16 %v246, %v242
    %v303 = vpack.c.b16 %v247, %v243
    %v304 = vpack.c.b16 %v252, %v248
    %v305 = vpack.c.b16 %v253, %v249
    %v306 = vpack.c.b16 %v254, %v250
    %v307 = vpack.c.b16 %v255, %v251
    %v308 = vpack.c.b16 %v260, %v256
    %v309 = vpack.c.b16 %v261, %v257
    %v310 = vpack.c.b16 %v262, %v258
    %v311 = vpack.c.b16 %v263, %v259
    %v312 = vpack.c.b16 %v268, %v264
    %v313 = vpack.c.b16 %v269, %v265
    %v314 = vpack.c.b16 %v270, %v266
    %v315 = vpack.c.b16 %v271, %v267
    %v316 = vpack.c.b16 %v276, %v272
    %v317 = vpack.c.b16 %v277, %v273
    %v318 = vpack.c.b16 %v278, %v274
    %v319 = vpack.c.b16 %v279, %v275
    %v320 = vpack.c.b16 %v284, %v280
    %v321 = vpack.c.b16 %v285, %v281
    %v322 = vpack.c.b16 %v286, %v282
    %v323 = vpack.c.b16 %v287, %v283
    %v324 = vpack.c.b16 %v292, %v288
    %v325 = vpack.c.b16 %v293, %v289
    %v326 = vpack.c.b16 %v294, %v290
    %v327 = vpack.c.b16 %v295, %v291
    %360 = vmatpush.bf16.msra.mxu0 %v324
    %361 = vmatpush.bf16.msra.mxu0 %v320
    %362 = vmatpush.bf16.msra.mxu0 %v316
    %363 = vmatpush.bf16.msra.mxu0 %v312
    %364 = vmatpush.bf16.msra.mxu0 %v308
    %365 = vmatpush.bf16.msra.mxu0 %v304
    %366 = vmatpush.bf16.msra.mxu0 %v300
    %367 = vmatpush.bf16.msra.mxu0 %v296
    %368 = vmatmul.bf16.gmra.mxu0 %v192
    %v369 = vpop.f32.mrf.mxu0
    %v370 = vadd.f32 0.0, %v369
    %v371 = vpop.f32.mrf.mxu0
    %v372 = vadd.f32 0.0, %v371
    %373 = vmatmul.bf16.gmra.mxu0 %v193
    %v374 = vpop.f32.mrf.mxu0
    %v375 = vadd.f32 0.0, %v374
    %v376 = vpop.f32.mrf.mxu0
    %v377 = vadd.f32 0.0, %v376
    %378 = vmatmul.bf16.gmra.mxu0 %v194
    %v379 = vpop.f32.mrf.mxu0
    %v380 = vadd.f32 0.0, %v379
    %v381 = vpop.f32.mrf.mxu0
    %v382 = vadd.f32 0.0, %v381
    %383 = vmatmul.bf16.gmra.mxu0 %v195
    %v384 = vpop.f32.mrf.mxu0
    %v385 = vadd.f32 0.0, %v384
    %v386 = vpop.f32.mrf.mxu0
    %v387 = vadd.f32 0.0, %v386
    %388 = vdwg.mxu0
    %389 = vmatpush.bf16.msra.mxu0 %v325
    %390 = vmatpush.bf16.msra.mxu0 %v321
    %391 = vmatpush.bf16.msra.mxu0 %v317
    %392 = vmatpush.bf16.msra.mxu0 %v313
    %393 = vmatpush.bf16.msra.mxu0 %v309
    %394 = vmatpush.bf16.msra.mxu0 %v305
    %395 = vmatpush.bf16.msra.mxu0 %v301
    %396 = vmatpush.bf16.msra.mxu0 %v297
    %397 = vmatmul.bf16.gmra.mxu0 %v192
    %v398 = vpop.f32.mrf.mxu0
    %v399 = vadd.f32 0.0, %v398
    %v400 = vpop.f32.mrf.mxu0
    %v401 = vadd.f32 0.0, %v400
    %402 = vmatmul.bf16.gmra.mxu0 %v193
    %v403 = vpop.f32.mrf.mxu0
    %v404 = vadd.f32 0.0, %v403
    %v405 = vpop.f32.mrf.mxu0
    %v406 = vadd.f32 0.0, %v405
    %407 = vmatmul.bf16.gmra.mxu0 %v194
    %v408 = vpop.f32.mrf.mxu0
    %v409 = vadd.f32 0.0, %v408
    %v410 = vpop.f32.mrf.mxu0
    %v411 = vadd.f32 0.0, %v410
    %412 = vmatmul.bf16.gmra.mxu0 %v195
    %v413 = vpop.f32.mrf.mxu0
    %v414 = vadd.f32 0.0, %v413
    %v415 = vpop.f32.mrf.mxu0
    %v416 = vadd.f32 0.0, %v415
    %417 = vdwg.mxu0
    %418 = vmatpush.bf16.msra.mxu0 %v326
    %419 = vmatpush.bf16.msra.mxu0 %v322
    %420 = vmatpush.bf16.msra.mxu0 %v318
    %421 = vmatpush.bf16.msra.mxu0 %v314
    %422 = vmatpush.bf16.msra.mxu0 %v310
    %423 = vmatpush.bf16.msra.mxu0 %v306
    %424 = vmatpush.bf16.msra.mxu0 %v302
    %425 = vmatpush.bf16.msra.mxu0 %v298
    %426 = vmatmul.bf16.gmra.mxu0 %v192
    %v427 = vpop.f32.mrf.mxu0
    %v428 = vadd.f32 0.0, %v427
    %v429 = vpop.f32.mrf.mxu0
    %v430 = vadd.f32 0.0, %v429
    %431 = vmatmul.bf16.gmra.mxu0 %v193
    %v432 = vpop.f32.mrf.mxu0
    %v433 = vadd.f32 0.0, %v432
    %v434 = vpop.f32.mrf.mxu0
    %v435 = vadd.f32 0.0, %v434
    %436 = vmatmul.bf16.gmra.mxu0 %v194
    %v437 = vpop.f32.mrf.mxu0
    %v438 = vadd.f32 0.0, %v437
    %v439 = vpop.f32.mrf.mxu0
    %v440 = vadd.f32 0.0, %v439
    %441 = vmatmul.bf16.gmra.mxu0 %v195
    %v442 = vpop.f32.mrf.mxu0
    %v443 = vadd.f32 0.0, %v442
    %v444 = vpop.f32.mrf.mxu0
    %v445 = vadd.f32 0.0, %v444
    %446 = vdwg.mxu0
    %447 = vmatpush.bf16.msra.mxu0 %v327
    %448 = vmatpush.bf16.msra.mxu0 %v323
    %449 = vmatpush.bf16.msra.mxu0 %v319
    %450 = vmatpush.bf16.msra.mxu0 %v315
    %451 = vmatpush.bf16.msra.mxu0 %v311
    %452 = vmatpush.bf16.msra.mxu0 %v307
    %453 = vmatpush.bf16.msra.mxu0 %v303
    %454 = vmatpush.bf16.msra.mxu0 %v299
    %455 = vmatmul.bf16.gmra.mxu0 %v192
    %v456 = vpop.f32.mrf.mxu0
    %v457 = vadd.f32 0.0, %v456
    %v458 = vpop.f32.mrf.mxu0
    %v459 = vadd.f32 0.0, %v458
    %460 = vmatmul.bf16.gmra.mxu0 %v193
    %v461 = vpop.f32.mrf.mxu0
    %v462 = vadd.f32 0.0, %v461
    %v463 = vpop.f32.mrf.mxu0
    %v464 = vadd.f32 0.0, %v463
    %465 = vmatmul.bf16.gmra.mxu0 %v194
    %v466 = vpop.f32.mrf.mxu0
    %v467 = vadd.f32 0.0, %v466
    %v468 = vpop.f32.mrf.mxu0
    %v469 = vadd.f32 0.0, %v468
    %470 = vmatmul.bf16.gmra.mxu0 %v195
    %v471 = vpop.f32.mrf.mxu0
    %v472 = vadd.f32 0.0, %v471
    %v473 = vpop.f32.mrf.mxu0
    %v474 = vadd.f32 0.0, %v473
    %475 = vdwg.mxu0
    %v476 = vadd.f32 %v370, %v98
    %v477 = vadd.f32 %v399, %v99
    %v478 = vadd.f32 %v428, %v100
    %v479 = vadd.f32 %v457, %v101
    %v480 = vadd.f32 %v372, %v98
    %v481 = vadd.f32 %v401, %v99
    %v482 = vadd.f32 %v430, %v100
    %v483 = vadd.f32 %v459, %v101
    %v484 = vadd.f32 %v375, %v98
    %v485 = vadd.f32 %v404, %v99
    %v486 = vadd.f32 %v433, %v100
    %v487 = vadd.f32 %v462, %v101
    %v488 = vadd.f32 %v377, %v98
    %v489 = vadd.f32 %v406, %v99
    %v490 = vadd.f32 %v435, %v100
    %v491 = vadd.f32 %v464, %v101
    %v492 = vadd.f32 %v380, %v98
    %v493 = vadd.f32 %v409, %v99
    %v494 = vadd.f32 %v438, %v100
    %v495 = vadd.f32 %v467, %v101
    %v496 = vadd.f32 %v382, %v98
    %v497 = vadd.f32 %v411, %v99
    %v498 = vadd.f32 %v440, %v100
    %v499 = vadd.f32 %v469, %v101
    %v500 = vadd.f32 %v385, %v98
    %v501 = vadd.f32 %v414, %v99
    %v502 = vadd.f32 %v443, %v100
    %v503 = vadd.f32 %v472, %v101
    %v504 = vadd.f32 %v387, %v98
    %v505 = vadd.f32 %v416, %v99
    %v506 = vadd.f32 %v445, %v100
    %v507 = vadd.f32 %v474, %v101
    %508 = vst [vmem:[#allocation2] sm:$0xff] %v476
    %509 = vst [vmem:[#allocation2 + $0x8] sm:$0xff] %v477
    %510 = vst [vmem:[#allocation2 + $0x10] sm:$0xff] %v478
    %511 = vst [vmem:[#allocation2 + $0x18] sm:$0xff] %v479
    %512 = vst [vmem:[#allocation2 + $0x20] sm:$0xff] %v480
    %513 = vst [vmem:[#allocation2 + $0x28] sm:$0xff] %v481
    %514 = vst [vmem:[#allocation2 + $0x30] sm:$0xff] %v482
    %515 = vst [vmem:[#allocation2 + $0x38] sm:$0xff] %v483
    %516 = vst [vmem:[#allocation2 + $0x40] sm:$0xff] %v484
    %517 = vst [vmem:[#allocation2 + $0x48] sm:$0xff] %v485
    %518 = vst [vmem:[#allocation2 + $0x50] sm:$0xff] %v486
    %519 = vst [vmem:[#allocation2 + $0x58] sm:$0xff] %v487
    %520 = vst [vmem:[#allocation2 + $0x60] sm:$0xff] %v488
    %521 = vst [vmem:[#allocation2 + $0x68] sm:$0xff] %v489
    %522 = vst [vmem:[#allocation2 + $0x70] sm:$0xff] %v490
    %523 = vst [vmem:[#allocation2 + $0x78] sm:$0xff] %v491
    %524 = vst [vmem:[#allocation2 + $0x80] sm:$0xff] %v492
    %525 = vst [vmem:[#allocation2 + $0x88] sm:$0xff] %v493
    %526 = vst [vmem:[#allocation2 + $0x90] sm:$0xff] %v494
    %527 = vst [vmem:[#allocation2 + $0x98] sm:$0xff] %v495
    %528 = vst [vmem:[#allocation2 + $0xa0] sm:$0xff] %v496
    %529 = vst [vmem:[#allocation2 + $0xa8] sm:$0xff] %v497
    %530 = vst [vmem:[#allocation2 + $0xb0] sm:$0xff] %v498
    %531 = vst [vmem:[#allocation2 + $0xb8] sm:$0xff] %v499
    %532 = vst [vmem:[#allocation2 + $0xc0] sm:$0xff] %v500
    %533 = vst [vmem:[#allocation2 + $0xc8] sm:$0xff] %v501
    %534 = vst [vmem:[#allocation2 + $0xd0] sm:$0xff] %v502
    %535 = vst [vmem:[#allocation2 + $0xd8] sm:$0xff] %v503
    %536 = vst [vmem:[#allocation2 + $0xe0] sm:$0xff] %v504
    %537 = vst [vmem:[#allocation2 + $0xe8] sm:$0xff] %v505
    %538 = vst [vmem:[#allocation2 + $0xf0] sm:$0xff] %v506
    %539 = vst [vmem:[#allocation2 + $0xf8] sm:$0xff] %v507
    %v540 = vld [vmem:[#allocation2] sm:$0xff]
    %v541 = vld [vmem:[#allocation2 + $0x8] sm:$0xff]
    %v542 = vld [vmem:[#allocation2 + $0x10] sm:$0xff]
    %v543 = vld [vmem:[#allocation2 + $0x18] sm:$0xff]
    %v544 = vpack.c.bf16 %v166, %v166
    %v577 = vunpack.c.l.b16 %v134
    %v578 = vunpack.c.h.b16 %v134
    %v579 = vunpack.c.l.b16 %v135
    %v580 = vunpack.c.h.b16 %v135
    %v581 = vunpack.c.l.b16 %v136
    %v582 = vunpack.c.h.b16 %v136
    %v583 = vunpack.c.l.b16 %v137
    %v584 = vunpack.c.h.b16 %v137
    %v585 = vunpack.c.l.b16 %v138
    %v586 = vunpack.c.h.b16 %v138
    %v587 = vunpack.c.l.b16 %v139
    %v588 = vunpack.c.h.b16 %v139
    %v589 = vunpack.c.l.b16 %v140
    %v590 = vunpack.c.h.b16 %v140
    %v591 = vunpack.c.l.b16 %v141
    %v592 = vunpack.c.h.b16 %v141
    %v593 = vunpack.c.l.b16 %v142
    %v594 = vunpack.c.h.b16 %v142
    %v595 = vunpack.c.l.b16 %v143
    %v596 = vunpack.c.h.b16 %v143
    %v597 = vunpack.c.l.b16 %v144
    %v598 = vunpack.c.h.b16 %v144
    %v599 = vunpack.c.l.b16 %v145
    %v600 = vunpack.c.h.b16 %v145
    %v601 = vunpack.c.l.b16 %v146
    %v602 = vunpack.c.h.b16 %v146
    %v603 = vunpack.c.l.b16 %v147
    %v604 = vunpack.c.h.b16 %v147
    %v605 = vunpack.c.l.b16 %v148
    %v606 = vunpack.c.h.b16 %v148
    %v607 = vunpack.c.l.b16 %v149
    %v608 = vunpack.c.h.b16 %v149
    %v609 = vunpack.c.l.b16 %v150
    %v610 = vunpack.c.h.b16 %v150
    %v611 = vunpack.c.l.b16 %v151
    %v612 = vunpack.c.h.b16 %v151
    %v613 = vunpack.c.l.b16 %v152
    %v614 = vunpack.c.h.b16 %v152
    %v615 = vunpack.c.l.b16 %v153
    %v616 = vunpack.c.h.b16 %v153
    %v617 = vunpack.c.l.b16 %v154
    %v618 = vunpack.c.h.b16 %v154
    %v619 = vunpack.c.l.b16 %v155
    %v620 = vunpack.c.h.b16 %v155
    %v621 = vunpack.c.l.b16 %v156
    %v622 = vunpack.c.h.b16 %v156
    %v623 = vunpack.c.l.b16 %v157
    %v624 = vunpack.c.h.b16 %v157
    %v625 = vunpack.c.l.b16 %v158
    %v626 = vunpack.c.h.b16 %v158
    %v627 = vunpack.c.l.b16 %v159
    %v628 = vunpack.c.h.b16 %v159
    %v629 = vunpack.c.l.b16 %v160
    %v630 = vunpack.c.h.b16 %v160
    %v631 = vunpack.c.l.b16 %v161
    %v632 = vunpack.c.h.b16 %v161
    %v633 = vunpack.c.l.b16 %v162
    %v634 = vunpack.c.h.b16 %v162
    %v635 = vunpack.c.l.b16 %v163
    %v636 = vunpack.c.h.b16 %v163
    %v637 = vunpack.c.l.b16 %v164
    %v638 = vunpack.c.h.b16 %v164
    %v639 = vunpack.c.l.b16 %v165
    %v640 = vunpack.c.h.b16 %v165
    %v641 = vpack.c.b16 %v581, %v577
    %v642 = vpack.c.b16 %v582, %v578
    %v643 = vpack.c.b16 %v583, %v579
    %v644 = vpack.c.b16 %v584, %v580
    %v645 = vpack.c.b16 %v589, %v585
    %v646 = vpack.c.b16 %v590, %v586
    %v647 = vpack.c.b16 %v591, %v587
    %v648 = vpack.c.b16 %v592, %v588
    %v649 = vpack.c.b16 %v597, %v593
    %v650 = vpack.c.b16 %v598, %v594
    %v651 = vpack.c.b16 %v599, %v595
    %v652 = vpack.c.b16 %v600, %v596
    %v653 = vpack.c.b16 %v605, %v601
    %v654 = vpack.c.b16 %v606, %v602
    %v655 = vpack.c.b16 %v607, %v603
    %v656 = vpack.c.b16 %v608, %v604
    %v657 = vpack.c.b16 %v613, %v609
    %v658 = vpack.c.b16 %v614, %v610
    %v659 = vpack.c.b16 %v615, %v611
    %v660 = vpack.c.b16 %v616, %v612
    %v661 = vpack.c.b16 %v621, %v617
    %v662 = vpack.c.b16 %v622, %v618
    %v663 = vpack.c.b16 %v623, %v619
    %v664 = vpack.c.b16 %v624, %v620
    %v665 = vpack.c.b16 %v629, %v625
    %v666 = vpack.c.b16 %v630, %v626
    %v667 = vpack.c.b16 %v631, %v627
    %v668 = vpack.c.b16 %v632, %v628
    %v669 = vpack.c.b16 %v637, %v633
    %v670 = vpack.c.b16 %v638, %v634
    %v671 = vpack.c.b16 %v639, %v635
    %v672 = vpack.c.b16 %v640, %v636
    %705 = vmatpush.bf16.msra.mxu0 %v669
    %706 = vmatpush.bf16.msra.mxu0 %v665
    %707 = vmatpush.bf16.msra.mxu0 %v661
    %708 = vmatpush.bf16.msra.mxu0 %v657
    %709 = vmatpush.bf16.msra.mxu0 %v653
    %710 = vmatpush.bf16.msra.mxu0 %v649
    %711 = vmatpush.bf16.msra.mxu0 %v645
    %712 = vmatpush.bf16.msra.mxu0 %v641
    %713 = vmatmul.bf16.gmra.mxu0 %v544
    %v714 = vpop.f32.mrf.mxu0
    %v715 = vadd.f32 0.0, %v714
    %v716 = vpop.f32.mrf.mxu0
    %717 = vdwg.mxu0
    %718 = vmatpush.bf16.msra.mxu0 %v670
    %719 = vmatpush.bf16.msra.mxu0 %v666
    %720 = vmatpush.bf16.msra.mxu0 %v662
    %721 = vmatpush.bf16.msra.mxu0 %v658
    %722 = vmatpush.bf16.msra.mxu0 %v654
    %723 = vmatpush.bf16.msra.mxu0 %v650
    %724 = vmatpush.bf16.msra.mxu0 %v646
    %725 = vmatpush.bf16.msra.mxu0 %v642
    %726 = vmatmul.bf16.gmra.mxu0 %v544
    %v727 = vpop.f32.mrf.mxu0
    %v728 = vadd.f32 0.0, %v727
    %v729 = vpop.f32.mrf.mxu0
    %730 = vdwg.mxu0
    %731 = vmatpush.bf16.msra.mxu0 %v671
    %732 = vmatpush.bf16.msra.mxu0 %v667
    %733 = vmatpush.bf16.msra.mxu0 %v663
    %734 = vmatpush.bf16.msra.mxu0 %v659
    %735 = vmatpush.bf16.msra.mxu0 %v655
    %736 = vmatpush.bf16.msra.mxu0 %v651
    %737 = vmatpush.bf16.msra.mxu0 %v647
    %738 = vmatpush.bf16.msra.mxu0 %v643
    %739 = vmatmul.bf16.gmra.mxu0 %v544
    %v740 = vpop.f32.mrf.mxu0
    %v741 = vadd.f32 0.0, %v740
    %v742 = vpop.f32.mrf.mxu0
    %743 = vdwg.mxu0
    %744 = vmatpush.bf16.msra.mxu0 %v672
    %745 = vmatpush.bf16.msra.mxu0 %v668
    %746 = vmatpush.bf16.msra.mxu0 %v664
    %747 = vmatpush.bf16.msra.mxu0 %v660
    %748 = vmatpush.bf16.msra.mxu0 %v656
    %749 = vmatpush.bf16.msra.mxu0 %v652
    %750 = vmatpush.bf16.msra.mxu0 %v648
    %751 = vmatpush.bf16.msra.mxu0 %v644
    %752 = vmatmul.bf16.gmra.mxu0 %v544
    %v753 = vpop.f32.mrf.mxu0
    %v754 = vadd.f32 0.0, %v753
    %v755 = vpop.f32.mrf.mxu0
    %756 = vdwg.mxu0
    %v757 = vadd.f32 %v540, %v715
    %v758 = vadd.f32 %v541, %v728
    %v759 = vadd.f32 %v542, %v741
    %v760 = vadd.f32 %v543, %v754
    %v761 = vxor.u32 %v757, 2147483648
    %v762 = vmul.f32 %v761, 1.442695
    %v763 = vpow.pop %v762
    %v764 = vadd.f32 %v763, 1.0
    %v765 = vrcp.pop %v764
    %v766 = vmul.f32 %v764, %v765
    %v767 = vsub.f32 1.0, %v766
    %v768 = vmul.f32 %v765, %v767
    %v769 = vadd.f32 %v765, %v768
    %vm770 = vweird.f32 %v764
    %vm771 = vweird.f32 %v765
    %vm772 = vmor %vm770, %vm771
    %v773 = vsel %vm772, %v765, %v769
    %v774 = vand.u32 2147483647, %v764
    %vm775 = vcmp.eq.f32.partialorder %v774, 8.507059e+37
    %v776 = vand.u32 %v764, 2147483648
    %v777 = vor.u32 1.1754944e-38, %v776
    %v778 = vsel %vm775, %v777, %v773
    %v779 = vmul.f32 1.0, %v778
    %v780 = vxor.u32 %v758, 2147483648
    %v781 = vmul.f32 %v780, 1.442695
    %v782 = vpow.pop %v781
    %v783 = vadd.f32 %v782, 1.0
    %v784 = vrcp.pop %v783
    %v785 = vmul.f32 %v783, %v784
    %v786 = vsub.f32 1.0, %v785
    %v787 = vmul.f32 %v784, %v786
    %v788 = vadd.f32 %v784, %v787
    %vm789 = vweird.f32 %v783
    %vm790 = vweird.f32 %v784
    %vm791 = vmor %vm789, %vm790
    %v792 = vsel %vm791, %v784, %v788
    %v793 = vand.u32 2147483647, %v783
    %vm794 = vcmp.eq.f32.partialorder %v793, 8.507059e+37
    %v795 = vand.u32 %v783, 2147483648
    %v796 = vor.u32 1.1754944e-38, %v795
    %v797 = vsel %vm794, %v796, %v792
    %v798 = vmul.f32 1.0, %v797
    %v799 = vtanh.pop %v759
    %v800 = vxor.u32 %v760, 2147483648
    %v801 = vmul.f32 %v800, 1.442695
    %v802 = vpow.pop %v801
    %v803 = vadd.f32 %v802, 1.0
    %v804 = vrcp.pop %v803
    %v805 = vmul.f32 %v803, %v804
    %v806 = vsub.f32 1.0, %v805
    %v807 = vmul.f32 %v804, %v806
    %v808 = vadd.f32 %v804, %v807
    %vm809 = vweird.f32 %v803
    %vm810 = vweird.f32 %v804
    %vm811 = vmor %vm809, %vm810
    %v812 = vsel %vm811, %v804, %v808
    %v813 = vand.u32 2147483647, %v803
    %vm814 = vcmp.eq.f32.partialorder %v813, 8.507059e+37
    %v815 = vand.u32 %v803, 2147483648
    %v816 = vor.u32 1.1754944e-38, %v815
    %v817 = vsel %vm814, %v816, %v812
    %v818 = vmul.f32 1.0, %v817
    %v819 = vmul.f32 %v798, %v167
    %v820 = vmul.f32 %v779, %v799
    %v821 = vadd.f32 %v819, %v820
    %v822 = vtanh.pop %v821
    %v823 = vmul.f32 %v818, %v822
    %v824 = vpack.c.bf16 %v823, %v823
    %825 = vst [vmem:[#allocation3] sm:$0xf] %v824
    %s826 = scalar_lea.vmem [#allocation2], 32
    %v827 = vld [vmem:[%s826] sm:$0xff]
    %v828 = vld [vmem:[%s826 + $0x8] sm:$0xff]
    %v829 = vld [vmem:[%s826 + $0x10] sm:$0xff]
    %v830 = vld [vmem:[%s826 + $0x18] sm:$0xff]
    %831 = vmatpush.bf16.msra.mxu0 %v669
    %832 = vmatpush.bf16.msra.mxu0 %v665
    %833 = vmatpush.bf16.msra.mxu0 %v661
    %834 = vmatpush.bf16.msra.mxu0 %v657
    %835 = vmatpush.bf16.msra.mxu0 %v653
    %836 = vmatpush.bf16.msra.mxu0 %v649
    %837 = vmatpush.bf16.msra.mxu0 %v645
    %838 = vmatpush.bf16.msra.mxu0 %v641
    %839 = vmatmul.bf16.gmra.mxu0 %v824
    %v840 = vpop.f32.mrf.mxu0
    %v841 = vadd.f32 0.0, %v840
    %v842 = vpop.f32.mrf.mxu0
    %843 = vdwg.mxu0
    %844 = vmatpush.bf16.msra.mxu0 %v670
    %845 = vmatpush.bf16.msra.mxu0 %v666
    %846 = vmatpush.bf16.msra.mxu0 %v662
    %847 = vmatpush.bf16.msra.mxu0 %v658
    %848 = vmatpush.bf16.msra.mxu0 %v654
    %849 = vmatpush.bf16.msra.mxu0 %v650
    %850 = vmatpush.bf16.msra.mxu0 %v646
    %851 = vmatpush.bf16.msra.mxu0 %v642
    %852 = vmatmul.bf16.gmra.mxu0 %v824
    %v853 = vpop.f32.mrf.mxu0
    %v854 = vadd.f32 0.0, %v853
    %v855 = vpop.f32.mrf.mxu0
    %856 = vdwg.mxu0
    %857 = vmatpush.bf16.msra.mxu0 %v671
    %858 = vmatpush.bf16.msra.mxu0 %v667
    %859 = vmatpush.bf16.msra.mxu0 %v663
    %860 = vmatpush.bf16.msra.mxu0 %v659
    %861 = vmatpush.bf16.msra.mxu0 %v655
    %862 = vmatpush.bf16.msra.mxu0 %v651
    %863 = vmatpush.bf16.msra.mxu0 %v647
    %864 = vmatpush.bf16.msra.mxu0 %v643
    %865 = vmatmul.bf16.gmra.mxu0 %v824
    %v866 = vpop.f32.mrf.mxu0
    %v867 = vadd.f32 0.0, %v866
    %v868 = vpop.f32.mrf.mxu0
    %869 = vdwg.mxu0
    %870 = vmatpush.bf16.msra.mxu0 %v672
    %871 = vmatpush.bf16.msra.mxu0 %v668
    %872 = vmatpush.bf16.msra.mxu0 %v664
    %873 = vmatpush.bf16.msra.mxu0 %v660
    %874 = vmatpush.bf16.msra.mxu0 %v656
    %875 = vmatpush.bf16.msra.mxu0 %v652
    %876 = vmatpush.bf16.msra.mxu0 %v648
    %877 = vmatpush.bf16.msra.mxu0 %v644
    %878 = vmatmul.bf16.gmra.mxu0 %v824
    %v879 = vpop.f32.mrf.mxu0
    %v880 = vadd.f32 0.0, %v879
    %v881 = vpop.f32.mrf.mxu0
    %882 = vdwg.mxu0
    %v883 = vadd.f32 %v827, %v841
    %v884 = vadd.f32 %v828, %v854
    %v885 = vadd.f32 %v829, %v867
    %v886 = vadd.f32 %v830, %v880
    %v887 = vxor.u32 %v883, 2147483648
    %v888 = vmul.f32 %v887, 1.442695
    %v889 = vpow.pop %v888
    %v890 = vadd.f32 %v889, 1.0
    %v891 = vrcp.pop %v890
    %v892 = vmul.f32 %v890, %v891
    %v893 = vsub.f32 1.0, %v892
    %v894 = vmul.f32 %v891, %v893
    %v895 = vadd.f32 %v891, %v894
    %vm896 = vweird.f32 %v890
    %vm897 = vweird.f32 %v891
    %vm898 = vmor %vm896, %vm897
    %v899 = vsel %vm898, %v891, %v895
    %v900 = vand.u32 2147483647, %v890
    %vm901 = vcmp.eq.f32.partialorder %v900, 8.507059e+37
    %v902 = vand.u32 %v890, 2147483648
    %v903 = vor.u32 1.1754944e-38, %v902
    %v904 = vsel %vm901, %v903, %v899
    %v905 = vmul.f32 1.0, %v904
    %v906 = vxor.u32 %v884, 2147483648
    %v907 = vmul.f32 %v906, 1.442695
    %v908 = vpow.pop %v907
    %v909 = vadd.f32 %v908, 1.0
    %v910 = vrcp.pop %v909
    %v911 = vmul.f32 %v909, %v910
    %v912 = vsub.f32 1.0, %v911
    %v913 = vmul.f32 %v910, %v912
    %v914 = vadd.f32 %v910, %v913
    %vm915 = vweird.f32 %v909
    %vm916 = vweird.f32 %v910
    %vm917 = vmor %vm915, %vm916
    %v918 = vsel %vm917, %v910, %v914
    %v919 = vand.u32 2147483647, %v909
    %vm920 = vcmp.eq.f32.partialorder %v919, 8.507059e+37
    %v921 = vand.u32 %v909, 2147483648
    %v922 = vor.u32 1.1754944e-38, %v921
    %v923 = vsel %vm920, %v922, %v918
    %v924 = vmul.f32 1.0, %v923
    %v925 = vtanh.pop %v885
    %v926 = vxor.u32 %v886, 2147483648
    %v927 = vmul.f32 %v926, 1.442695
    %v928 = vpow.pop %v927
    %v929 = vadd.f32 %v928, 1.0
    %v930 = vrcp.pop %v929
    %v931 = vmul.f32 %v929, %v930
    %v932 = vsub.f32 1.0, %v931
    %v933 = vmul.f32 %v930, %v932
    %v934 = vadd.f32 %v930, %v933
    %vm935 = vweird.f32 %v929
    %vm936 = vweird.f32 %v930
    %vm937 = vmor %vm935, %vm936
    %v938 = vsel %vm937, %v930, %v934
    %v939 = vand.u32 2147483647, %v929
    %vm940 = vcmp.eq.f32.partialorder %v939, 8.507059e+37
    %v941 = vand.u32 %v929, 2147483648
    %v942 = vor.u32 1.1754944e-38, %v941
    %v943 = vsel %vm940, %v942, %v938
    %v944 = vmul.f32 1.0, %v943
    %v945 = vmul.f32 %v924, %v821
    %v946 = vmul.f32 %v905, %v925
    %v947 = vadd.f32 %v945, %v946
    %v948 = vtanh.pop %v947
    %v949 = vmul.f32 %v944, %v948
    %v950 = vpack.c.bf16 %v949, %v949
    %s951 = scalar_lea.vmem [#allocation3], 4
    %952 = vst [vmem:[%s951] sm:$0xf] %v950
    %s953 = scalar_lea.vmem [#allocation2], 64
    %v954 = vld [vmem:[%s953] sm:$0xff]
    %v955 = vld [vmem:[%s953 + $0x8] sm:$0xff]
    %v956 = vld [vmem:[%s953 + $0x10] sm:$0xff]
    %v957 = vld [vmem:[%s953 + $0x18] sm:$0xff]
    %958 = vmatpush.bf16.msra.mxu0 %v669
    %959 = vmatpush.bf16.msra.mxu0 %v665
    %960 = vmatpush.bf16.msra.mxu0 %v661
    %961 = vmatpush.bf16.msra.mxu0 %v657
    %962 = vmatpush.bf16.msra.mxu0 %v653
    %963 = vmatpush.bf16.msra.mxu0 %v649
    %964 = vmatpush.bf16.msra.mxu0 %v645
    %965 = vmatpush.bf16.msra.mxu0 %v641
    %966 = vmatmul.bf16.gmra.mxu0 %v950
    %v967 = vpop.f32.mrf.mxu0
    %v968 = vadd.f32 0.0, %v967
    %v969 = vpop.f32.mrf.mxu0
    %970 = vdwg.mxu0
    %971 = vmatpush.bf16.msra.mxu0 %v670
    %972 = vmatpush.bf16.msra.mxu0 %v666
    %973 = vmatpush.bf16.msra.mxu0 %v662
    %974 = vmatpush.bf16.msra.mxu0 %v658
    %975 = vmatpush.bf16.msra.mxu0 %v654
    %976 = vmatpush.bf16.msra.mxu0 %v650
    %977 = vmatpush.bf16.msra.mxu0 %v646
    %978 = vmatpush.bf16.msra.mxu0 %v642
    %979 = vmatmul.bf16.gmra.mxu0 %v950
    %v980 = vpop.f32.mrf.mxu0
    %v981 = vadd.f32 0.0, %v980
    %v982 = vpop.f32.mrf.mxu0
    %983 = vdwg.mxu0
    %984 = vmatpush.bf16.msra.mxu0 %v671
    %985 = vmatpush.bf16.msra.mxu0 %v667
    %986 = vmatpush.bf16.msra.mxu0 %v663
    %987 = vmatpush.bf16.msra.mxu0 %v659
    %988 = vmatpush.bf16.msra.mxu0 %v655
    %989 = vmatpush.bf16.msra.mxu0 %v651
    %990 = vmatpush.bf16.msra.mxu0 %v647
    %991 = vmatpush.bf16.msra.mxu0 %v643
    %992 = vmatmul.bf16.gmra.mxu0 %v950
    %v993 = vpop.f32.mrf.mxu0
    %v994 = vadd.f32 0.0, %v993
    %v995 = vpop.f32.mrf.mxu0
    %996 = vdwg.mxu0
    %997 = vmatpush.bf16.msra.mxu0 %v672
    %998 = vmatpush.bf16.msra.mxu0 %v668
    %999 = vmatpush.bf16.msra.mxu0 %v664
    %1000 = vmatpush.bf16.msra.mxu0 %v660
    %1001 = vmatpush.bf16.msra.mxu0 %v656
    %1002 = vmatpush.bf16.msra.mxu0 %v652
    %1003 = vmatpush.bf16.msra.mxu0 %v648
    %1004 = vmatpush.bf16.msra.mxu0 %v644
    %1005 = vmatmul.bf16.gmra.mxu0 %v950
    %v1006 = vpop.f32.mrf.mxu0
    %v1007 = vadd.f32 0.0, %v1006
    %v1008 = vpop.f32.mrf.mxu0
    %1009 = vdwg.mxu0
    %v1010 = vadd.f32 %v954, %v968
    %v1011 = vadd.f32 %v955, %v981
    %v1012 = vadd.f32 %v956, %v994
    %v1013 = vadd.f32 %v957, %v1007
    %v1014 = vxor.u32 %v1010, 2147483648
    %v1015 = vmul.f32 %v1014, 1.442695
    %v1016 = vpow.pop %v1015
    %v1017 = vadd.f32 %v1016, 1.0
    %v1018 = vrcp.pop %v1017
    %v1019 = vmul.f32 %v1017, %v1018
    %v1020 = vsub.f32 1.0, %v1019
    %v1021 = vmul.f32 %v1018, %v1020
    %v1022 = vadd.f32 %v1018, %v1021
    %vm1023 = vweird.f32 %v1017
    %vm1024 = vweird.f32 %v1018
    %vm1025 = vmor %vm1023, %vm1024
    %v1026 = vsel %vm1025, %v1018, %v1022
    %v1027 = vand.u32 2147483647, %v1017
    %vm1028 = vcmp.eq.f32.partialorder %v1027, 8.507059e+37
    %v1029 = vand.u32 %v1017, 2147483648
    %v1030 = vor.u32 1.1754944e-38, %v1029
    %v1031 = vsel %vm1028, %v1030, %v1026
    %v1032 = vmul.f32 1.0, %v1031
    %v1033 = vxor.u32 %v1011, 2147483648
    %v1034 = vmul.f32 %v1033, 1.442695
    %v1035 = vpow.pop %v1034
    %v1036 = vadd.f32 %v1035, 1.0
    %v1037 = vrcp.pop %v1036
    %v1038 = vmul.f32 %v1036, %v1037
    %v1039 = vsub.f32 1.0, %v1038
    %v1040 = vmul.f32 %v1037, %v1039
    %v1041 = vadd.f32 %v1037, %v1040
    %vm1042 = vweird.f32 %v1036
    %vm1043 = vweird.f32 %v1037
    %vm1044 = vmor %vm1042, %vm1043
    %v1045 = vsel %vm1044, %v1037, %v1041
    %v1046 = vand.u32 2147483647, %v1036
    %vm1047 = vcmp.eq.f32.partialorder %v1046, 8.507059e+37
    %v1048 = vand.u32 %v1036, 2147483648
    %v1049 = vor.u32 1.1754944e-38, %v1048
    %v1050 = vsel %vm1047, %v1049, %v1045
    %v1051 = vmul.f32 1.0, %v1050
    %v1052 = vtanh.pop %v1012
    %v1053 = vxor.u32 %v1013, 2147483648
    %v1054 = vmul.f32 %v1053, 1.442695
    %v1055 = vpow.pop %v1054
    %v1056 = vadd.f32 %v1055, 1.0
    %v1057 = vrcp.pop %v1056
    %v1058 = vmul.f32 %v1056, %v1057
    %v1059 = vsub.f32 1.0, %v1058
    %v1060 = vmul.f32 %v1057, %v1059
    %v1061 = vadd.f32 %v1057, %v1060
    %vm1062 = vweird.f32 %v1056
    %vm1063 = vweird.f32 %v1057
    %vm1064 = vmor %vm1062, %vm1063
    %v1065 = vsel %vm1064, %v1057, %v1061
    %v1066 = vand.u32 2147483647, %v1056
    %vm1067 = vcmp.eq.f32.partialorder %v1066, 8.507059e+37
    %v1068 = vand.u32 %v1056, 2147483648
    %v1069 = vor.u32 1.1754944e-38, %v1068
    %v1070 = vsel %vm1067, %v1069, %v1065
    %v1071 = vmul.f32 1.0, %v1070
    %v1072 = vmul.f32 %v1051, %v947
    %v1073 = vmul.f32 %v1032, %v1052
    %v1074 = vadd.f32 %v1072, %v1073
    %v1075 = vtanh.pop %v1074
    %v1076 = vmul.f32 %v1071, %v1075
    %v1077 = vpack.c.bf16 %v1076, %v1076
    %s1078 = scalar_lea.vmem [#allocation3], 8
    %1079 = vst [vmem:[%s1078] sm:$0xf] %v1077
    %s1080 = scalar_lea.vmem [#allocation2], 96
    %v1081 = vld [vmem:[%s1080] sm:$0xff]
    %v1082 = vld [vmem:[%s1080 + $0x8] sm:$0xff]
    %v1083 = vld [vmem:[%s1080 + $0x10] sm:$0xff]
    %v1084 = vld [vmem:[%s1080 + $0x18] sm:$0xff]
    %1085 = vmatpush.bf16.msra.mxu0 %v669
    %1086 = vmatpush.bf16.msra.mxu0 %v665
    %1087 = vmatpush.bf16.msra.mxu0 %v661
    %1088 = vmatpush.bf16.msra.mxu0 %v657
    %1089 = vmatpush.bf16.msra.mxu0 %v653
    %1090 = vmatpush.bf16.msra.mxu0 %v649
    %1091 = vmatpush.bf16.msra.mxu0 %v645
    %1092 = vmatpush.bf16.msra.mxu0 %v641
    %1093 = vmatmul.bf16.gmra.mxu0 %v1077
    %v1094 = vpop.f32.mrf.mxu0
    %v1095 = vadd.f32 0.0, %v1094
    %v1096 = vpop.f32.mrf.mxu0
    %1097 = vdwg.mxu0
    %1098 = vmatpush.bf16.msra.mxu0 %v670
    %1099 = vmatpush.bf16.msra.mxu0 %v666
    %1100 = vmatpush.bf16.msra.mxu0 %v662
    %1101 = vmatpush.bf16.msra.mxu0 %v658
    %1102 = vmatpush.bf16.msra.mxu0 %v654
    %1103 = vmatpush.bf16.msra.mxu0 %v650
    %1104 = vmatpush.bf16.msra.mxu0 %v646
    %1105 = vmatpush.bf16.msra.mxu0 %v642
    %1106 = vmatmul.bf16.gmra.mxu0 %v1077
    %v1107 = vpop.f32.mrf.mxu0
    %v1108 = vadd.f32 0.0, %v1107
    %v1109 = vpop.f32.mrf.mxu0
    %1110 = vdwg.mxu0
    %1111 = vmatpush.bf16.msra.mxu0 %v671
    %1112 = vmatpush.bf16.msra.mxu0 %v667
    %1113 = vmatpush.bf16.msra.mxu0 %v663
    %1114 = vmatpush.bf16.msra.mxu0 %v659
    %1115 = vmatpush.bf16.msra.mxu0 %v655
    %1116 = vmatpush.bf16.msra.mxu0 %v651
    %1117 = vmatpush.bf16.msra.mxu0 %v647
    %1118 = vmatpush.bf16.msra.mxu0 %v643
    %1119 = vmatmul.bf16.gmra.mxu0 %v1077
    %v1120 = vpop.f32.mrf.mxu0
    %v1121 = vadd.f32 0.0, %v1120
    %v1122 = vpop.f32.mrf.mxu0
    %1123 = vdwg.mxu0
    %1124 = vmatpush.bf16.msra.mxu0 %v672
    %1125 = vmatpush.bf16.msra.mxu0 %v668
    %1126 = vmatpush.bf16.msra.mxu0 %v664
    %1127 = vmatpush.bf16.msra.mxu0 %v660
    %1128 = vmatpush.bf16.msra.mxu0 %v656
    %1129 = vmatpush.bf16.msra.mxu0 %v652
    %1130 = vmatpush.bf16.msra.mxu0 %v648
    %1131 = vmatpush.bf16.msra.mxu0 %v644
    %1132 = vmatmul.bf16.gmra.mxu0 %v1077
    %v1133 = vpop.f32.mrf.mxu0
    %v1134 = vadd.f32 0.0, %v1133
    %v1135 = vpop.f32.mrf.mxu0
    %1136 = vdwg.mxu0
    %v1137 = vadd.f32 %v1081, %v1095
    %v1138 = vadd.f32 %v1082, %v1108
    %v1139 = vadd.f32 %v1083, %v1121
    %v1140 = vadd.f32 %v1084, %v1134
    %v1141 = vxor.u32 %v1137, 2147483648
    %v1142 = vmul.f32 %v1141, 1.442695
    %v1143 = vpow.pop %v1142
    %v1144 = vadd.f32 %v1143, 1.0
    %v1145 = vrcp.pop %v1144
    %v1146 = vmul.f32 %v1144, %v1145
    %v1147 = vsub.f32 1.0, %v1146
    %v1148 = vmul.f32 %v1145, %v1147
    %v1149 = vadd.f32 %v1145, %v1148
    %vm1150 = vweird.f32 %v1144
    %vm1151 = vweird.f32 %v1145
    %vm1152 = vmor %vm1150, %vm1151
    %v1153 = vsel %vm1152, %v1145, %v1149
    %v1154 = vand.u32 2147483647, %v1144
    %vm1155 = vcmp.eq.f32.partialorder %v1154, 8.507059e+37
    %v1156 = vand.u32 %v1144, 2147483648
    %v1157 = vor.u32 1.1754944e-38, %v1156
    %v1158 = vsel %vm1155, %v1157, %v1153
    %v1159 = vmul.f32 1.0, %v1158
    %v1160 = vxor.u32 %v1138, 2147483648
    %v1161 = vmul.f32 %v1160, 1.442695
    %v1162 = vpow.pop %v1161
    %v1163 = vadd.f32 %v1162, 1.0
    %v1164 = vrcp.pop %v1163
    %v1165 = vmul.f32 %v1163, %v1164
    %v1166 = vsub.f32 1.0, %v1165
    %v1167 = vmul.f32 %v1164, %v1166
    %v1168 = vadd.f32 %v1164, %v1167
    %vm1169 = vweird.f32 %v1163
    %vm1170 = vweird.f32 %v1164
    %vm1171 = vmor %vm1169, %vm1170
    %v1172 = vsel %vm1171, %v1164, %v1168
    %v1173 = vand.u32 2147483647, %v1163
    %vm1174 = vcmp.eq.f32.partialorder %v1173, 8.507059e+37
    %v1175 = vand.u32 %v1163, 2147483648
    %v1176 = vor.u32 1.1754944e-38, %v1175
    %v1177 = vsel %vm1174, %v1176, %v1172
    %v1178 = vmul.f32 1.0, %v1177
    %v1179 = vtanh.pop %v1139
    %v1180 = vxor.u32 %v1140, 2147483648
    %v1181 = vmul.f32 %v1180, 1.442695
    %v1182 = vpow.pop %v1181
    %v1183 = vadd.f32 %v1182, 1.0
    %v1184 = vrcp.pop %v1183
    %v1185 = vmul.f32 %v1183, %v1184
    %v1186 = vsub.f32 1.0, %v1185
    %v1187 = vmul.f32 %v1184, %v1186
    %v1188 = vadd.f32 %v1184, %v1187
    %vm1189 = vweird.f32 %v1183
    %vm1190 = vweird.f32 %v1184
    %vm1191 = vmor %vm1189, %vm1190
    %v1192 = vsel %vm1191, %v1184, %v1188
    %v1193 = vand.u32 2147483647, %v1183
    %vm1194 = vcmp.eq.f32.partialorder %v1193, 8.507059e+37
    %v1195 = vand.u32 %v1183, 2147483648
    %v1196 = vor.u32 1.1754944e-38, %v1195
    %v1197 = vsel %vm1194, %v1196, %v1192
    %v1198 = vmul.f32 1.0, %v1197
    %v1199 = vmul.f32 %v1178, %v1074
    %v1200 = vmul.f32 %v1159, %v1179
    %v1201 = vadd.f32 %v1199, %v1200
    %v1202 = vtanh.pop %v1201
    %v1203 = vmul.f32 %v1198, %v1202
    %v1204 = vpack.c.bf16 %v1203, %v1203
    %s1205 = scalar_lea.vmem [#allocation3], 12
    %1206 = vst [vmem:[%s1205] sm:$0xf] %v1204
    %s1207 = scalar_lea.vmem [#allocation2], 128
    %v1208 = vld [vmem:[%s1207] sm:$0xff]
    %v1209 = vld [vmem:[%s1207 + $0x8] sm:$0xff]
    %v1210 = vld [vmem:[%s1207 + $0x10] sm:$0xff]
    %v1211 = vld [vmem:[%s1207 + $0x18] sm:$0xff]
    %1212 = vmatpush.bf16.msra.mxu0 %v669
    %1213 = vmatpush.bf16.msra.mxu0 %v665
    %1214 = vmatpush.bf16.msra.mxu0 %v661
    %1215 = vmatpush.bf16.msra.mxu0 %v657
    %1216 = vmatpush.bf16.msra.mxu0 %v653
    %1217 = vmatpush.bf16.msra.mxu0 %v649
    %1218 = vmatpush.bf16.msra.mxu0 %v645
    %1219 = vmatpush.bf16.msra.mxu0 %v641
    %1220 = vmatmul.bf16.gmra.mxu0 %v1204
    %v1221 = vpop.f32.mrf.mxu0
    %v1222 = vadd.f32 0.0, %v1221
    %v1223 = vpop.f32.mrf.mxu0
    %1224 = vdwg.mxu0
    %1225 = vmatpush.bf16.msra.mxu0 %v670
    %1226 = vmatpush.bf16.msra.mxu0 %v666
    %1227 = vmatpush.bf16.msra.mxu0 %v662
    %1228 = vmatpush.bf16.msra.mxu0 %v658
    %1229 = vmatpush.bf16.msra.mxu0 %v654
    %1230 = vmatpush.bf16.msra.mxu0 %v650
    %1231 = vmatpush.bf16.msra.mxu0 %v646
    %1232 = vmatpush.bf16.msra.mxu0 %v642
    %1233 = vmatmul.bf16.gmra.mxu0 %v1204
    %v1234 = vpop.f32.mrf.mxu0
    %v1235 = vadd.f32 0.0, %v1234
    %v1236 = vpop.f32.mrf.mxu0
    %1237 = vdwg.mxu0
    %1238 = vmatpush.bf16.msra.mxu0 %v671
    %1239 = vmatpush.bf16.msra.mxu0 %v667
    %1240 = vmatpush.bf16.msra.mxu0 %v663
    %1241 = vmatpush.bf16.msra.mxu0 %v659
    %1242 = vmatpush.bf16.msra.mxu0 %v655
    %1243 = vmatpush.bf16.msra.mxu0 %v651
    %1244 = vmatpush.bf16.msra.mxu0 %v647
    %1245 = vmatpush.bf16.msra.mxu0 %v643
    %1246 = vmatmul.bf16.gmra.mxu0 %v1204
    %v1247 = vpop.f32.mrf.mxu0
    %v1248 = vadd.f32 0.0, %v1247
    %v1249 = vpop.f32.mrf.mxu0
    %1250 = vdwg.mxu0
    %1251 = vmatpush.bf16.msra.mxu0 %v672
    %1252 = vmatpush.bf16.msra.mxu0 %v668
    %1253 = vmatpush.bf16.msra.mxu0 %v664
    %1254 = vmatpush.bf16.msra.mxu0 %v660
    %1255 = vmatpush.bf16.msra.mxu0 %v656
    %1256 = vmatpush.bf16.msra.mxu0 %v652
    %1257 = vmatpush.bf16.msra.mxu0 %v648
    %1258 = vmatpush.bf16.msra.mxu0 %v644
    %1259 = vmatmul.bf16.gmra.mxu0 %v1204
    %v1260 = vpop.f32.mrf.mxu0
    %v1261 = vadd.f32 0.0, %v1260
    %v1262 = vpop.f32.mrf.mxu0
    %1263 = vdwg.mxu0
    %v1264 = vadd.f32 %v1208, %v1222
    %v1265 = vadd.f32 %v1209, %v1235
    %v1266 = vadd.f32 %v1210, %v1248
    %v1267 = vadd.f32 %v1211, %v1261
    %v1268 = vxor.u32 %v1264, 2147483648
    %v1269 = vmul.f32 %v1268, 1.442695
    %v1270 = vpow.pop %v1269
    %v1271 = vadd.f32 %v1270, 1.0
    %v1272 = vrcp.pop %v1271
    %v1273 = vmul.f32 %v1271, %v1272
    %v1274 = vsub.f32 1.0, %v1273
    %v1275 = vmul.f32 %v1272, %v1274
    %v1276 = vadd.f32 %v1272, %v1275
    %vm1277 = vweird.f32 %v1271
    %vm1278 = vweird.f32 %v1272
    %vm1279 = vmor %vm1277, %vm1278
    %v1280 = vsel %vm1279, %v1272, %v1276
    %v1281 = vand.u32 2147483647, %v1271
    %vm1282 = vcmp.eq.f32.partialorder %v1281, 8.507059e+37
    %v1283 = vand.u32 %v1271, 2147483648
    %v1284 = vor.u32 1.1754944e-38, %v1283
    %v1285 = vsel %vm1282, %v1284, %v1280
    %v1286 = vmul.f32 1.0, %v1285
    %v1287 = vxor.u32 %v1265, 2147483648
    %v1288 = vmul.f32 %v1287, 1.442695
    %v1289 = vpow.pop %v1288
    %v1290 = vadd.f32 %v1289, 1.0
    %v1291 = vrcp.pop %v1290
    %v1292 = vmul.f32 %v1290, %v1291
    %v1293 = vsub.f32 1.0, %v1292
    %v1294 = vmul.f32 %v1291, %v1293
    %v1295 = vadd.f32 %v1291, %v1294
    %vm1296 = vweird.f32 %v1290
    %vm1297 = vweird.f32 %v1291
    %vm1298 = vmor %vm1296, %vm1297
    %v1299 = vsel %vm1298, %v1291, %v1295
    %v1300 = vand.u32 2147483647, %v1290
    %vm1301 = vcmp.eq.f32.partialorder %v1300, 8.507059e+37
    %v1302 = vand.u32 %v1290, 2147483648
    %v1303 = vor.u32 1.1754944e-38, %v1302
    %v1304 = vsel %vm1301, %v1303, %v1299
    %v1305 = vmul.f32 1.0, %v1304
    %v1306 = vtanh.pop %v1266
    %v1307 = vxor.u32 %v1267, 2147483648
    %v1308 = vmul.f32 %v1307, 1.442695
    %v1309 = vpow.pop %v1308
    %v1310 = vadd.f32 %v1309, 1.0
    %v1311 = vrcp.pop %v1310
    %v1312 = vmul.f32 %v1310, %v1311
    %v1313 = vsub.f32 1.0, %v1312
    %v1314 = vmul.f32 %v1311, %v1313
    %v1315 = vadd.f32 %v1311, %v1314
    %vm1316 = vweird.f32 %v1310
    %vm1317 = vweird.f32 %v1311
    %vm1318 = vmor %vm1316, %vm1317
    %v1319 = vsel %vm1318, %v1311, %v1315
    %v1320 = vand.u32 2147483647, %v1310
    %vm1321 = vcmp.eq.f32.partialorder %v1320, 8.507059e+37
    %v1322 = vand.u32 %v1310, 2147483648
    %v1323 = vor.u32 1.1754944e-38, %v1322
    %v1324 = vsel %vm1321, %v1323, %v1319
    %v1325 = vmul.f32 1.0, %v1324
    %v1326 = vmul.f32 %v1305, %v1201
    %v1327 = vmul.f32 %v1286, %v1306
    %v1328 = vadd.f32 %v1326, %v1327
    %v1329 = vtanh.pop %v1328
    %v1330 = vmul.f32 %v1325, %v1329
    %v1331 = vpack.c.bf16 %v1330, %v1330
    %s1332 = scalar_lea.vmem [#allocation3], 16
    %1333 = vst [vmem:[%s1332] sm:$0xf] %v1331
    %s1334 = scalar_lea.vmem [#allocation2], 160
    %v1335 = vld [vmem:[%s1334] sm:$0xff]
    %v1336 = vld [vmem:[%s1334 + $0x8] sm:$0xff]
    %v1337 = vld [vmem:[%s1334 + $0x10] sm:$0xff]
    %v1338 = vld [vmem:[%s1334 + $0x18] sm:$0xff]
    %1339 = vmatpush.bf16.msra.mxu0 %v669
    %1340 = vmatpush.bf16.msra.mxu0 %v665
    %1341 = vmatpush.bf16.msra.mxu0 %v661
    %1342 = vmatpush.bf16.msra.mxu0 %v657
    %1343 = vmatpush.bf16.msra.mxu0 %v653
    %1344 = vmatpush.bf16.msra.mxu0 %v649
    %1345 = vmatpush.bf16.msra.mxu0 %v645
    %1346 = vmatpush.bf16.msra.mxu0 %v641
    %1347 = vmatmul.bf16.gmra.mxu0 %v1331
    %v1348 = vpop.f32.mrf.mxu0
    %v1349 = vadd.f32 0.0, %v1348
    %v1350 = vpop.f32.mrf.mxu0
    %1351 = vdwg.mxu0
    %1352 = vmatpush.bf16.msra.mxu0 %v670
    %1353 = vmatpush.bf16.msra.mxu0 %v666
    %1354 = vmatpush.bf16.msra.mxu0 %v662
    %1355 = vmatpush.bf16.msra.mxu0 %v658
    %1356 = vmatpush.bf16.msra.mxu0 %v654
    %1357 = vmatpush.bf16.msra.mxu0 %v650
    %1358 = vmatpush.bf16.msra.mxu0 %v646
    %1359 = vmatpush.bf16.msra.mxu0 %v642
    %1360 = vmatmul.bf16.gmra.mxu0 %v1331
    %v1361 = vpop.f32.mrf.mxu0
    %v1362 = vadd.f32 0.0, %v1361
    %v1363 = vpop.f32.mrf.mxu0
    %1364 = vdwg.mxu0
    %1365 = vmatpush.bf16.msra.mxu0 %v671
    %1366 = vmatpush.bf16.msra.mxu0 %v667
    %1367 = vmatpush.bf16.msra.mxu0 %v663
    %1368 = vmatpush.bf16.msra.mxu0 %v659
    %1369 = vmatpush.bf16.msra.mxu0 %v655
    %1370 = vmatpush.bf16.msra.mxu0 %v651
    %1371 = vmatpush.bf16.msra.mxu0 %v647
    %1372 = vmatpush.bf16.msra.mxu0 %v643
    %1373 = vmatmul.bf16.gmra.mxu0 %v1331
    %v1374 = vpop.f32.mrf.mxu0
    %v1375 = vadd.f32 0.0, %v1374
    %v1376 = vpop.f32.mrf.mxu0
    %1377 = vdwg.mxu0
    %1378 = vmatpush.bf16.msra.mxu0 %v672
    %1379 = vmatpush.bf16.msra.mxu0 %v668
    %1380 = vmatpush.bf16.msra.mxu0 %v664
    %1381 = vmatpush.bf16.msra.mxu0 %v660
    %1382 = vmatpush.bf16.msra.mxu0 %v656
    %1383 = vmatpush.bf16.msra.mxu0 %v652
    %1384 = vmatpush.bf16.msra.mxu0 %v648
    %1385 = vmatpush.bf16.msra.mxu0 %v644
    %1386 = vmatmul.bf16.gmra.mxu0 %v1331
    %v1387 = vpop.f32.mrf.mxu0
    %v1388 = vadd.f32 0.0, %v1387
    %v1389 = vpop.f32.mrf.mxu0
    %1390 = vdwg.mxu0
    %v1391 = vadd.f32 %v1335, %v1349
    %v1392 = vadd.f32 %v1336, %v1362
    %v1393 = vadd.f32 %v1337, %v1375
    %v1394 = vadd.f32 %v1338, %v1388
    %v1395 = vxor.u32 %v1391, 2147483648
    %v1396 = vmul.f32 %v1395, 1.442695
    %v1397 = vpow.pop %v1396
    %v1398 = vadd.f32 %v1397, 1.0
    %v1399 = vrcp.pop %v1398
    %v1400 = vmul.f32 %v1398, %v1399
    %v1401 = vsub.f32 1.0, %v1400
    %v1402 = vmul.f32 %v1399, %v1401
    %v1403 = vadd.f32 %v1399, %v1402
    %vm1404 = vweird.f32 %v1398
    %vm1405 = vweird.f32 %v1399
    %vm1406 = vmor %vm1404, %vm1405
    %v1407 = vsel %vm1406, %v1399, %v1403
    %v1408 = vand.u32 2147483647, %v1398
    %vm1409 = vcmp.eq.f32.partialorder %v1408, 8.507059e+37
    %v1410 = vand.u32 %v1398, 2147483648
    %v1411 = vor.u32 1.1754944e-38, %v1410
    %v1412 = vsel %vm1409, %v1411, %v1407
    %v1413 = vmul.f32 1.0, %v1412
    %v1414 = vxor.u32 %v1392, 2147483648
    %v1415 = vmul.f32 %v1414, 1.442695
    %v1416 = vpow.pop %v1415
    %v1417 = vadd.f32 %v1416, 1.0
    %v1418 = vrcp.pop %v1417
    %v1419 = vmul.f32 %v1417, %v1418
    %v1420 = vsub.f32 1.0, %v1419
    %v1421 = vmul.f32 %v1418, %v1420
    %v1422 = vadd.f32 %v1418, %v1421
    %vm1423 = vweird.f32 %v1417
    %vm1424 = vweird.f32 %v1418
    %vm1425 = vmor %vm1423, %vm1424
    %v1426 = vsel %vm1425, %v1418, %v1422
    %v1427 = vand.u32 2147483647, %v1417
    %vm1428 = vcmp.eq.f32.partialorder %v1427, 8.507059e+37
    %v1429 = vand.u32 %v1417, 2147483648
    %v1430 = vor.u32 1.1754944e-38, %v1429
    %v1431 = vsel %vm1428, %v1430, %v1426
    %v1432 = vmul.f32 1.0, %v1431
    %v1433 = vtanh.pop %v1393
    %v1434 = vxor.u32 %v1394, 2147483648
    %v1435 = vmul.f32 %v1434, 1.442695
    %v1436 = vpow.pop %v1435
    %v1437 = vadd.f32 %v1436, 1.0
    %v1438 = vrcp.pop %v1437
    %v1439 = vmul.f32 %v1437, %v1438
    %v1440 = vsub.f32 1.0, %v1439
    %v1441 = vmul.f32 %v1438, %v1440
    %v1442 = vadd.f32 %v1438, %v1441
    %vm1443 = vweird.f32 %v1437
    %vm1444 = vweird.f32 %v1438
    %vm1445 = vmor %vm1443, %vm1444
    %v1446 = vsel %vm1445, %v1438, %v1442
    %v1447 = vand.u32 2147483647, %v1437
    %vm1448 = vcmp.eq.f32.partialorder %v1447, 8.507059e+37
    %v1449 = vand.u32 %v1437, 2147483648
    %v1450 = vor.u32 1.1754944e-38, %v1449
    %v1451 = vsel %vm1448, %v1450, %v1446
    %v1452 = vmul.f32 1.0, %v1451
    %v1453 = vmul.f32 %v1432, %v1328
    %v1454 = vmul.f32 %v1413, %v1433
    %v1455 = vadd.f32 %v1453, %v1454
    %v1456 = vtanh.pop %v1455
    %v1457 = vmul.f32 %v1452, %v1456
    %v1458 = vpack.c.bf16 %v1457, %v1457
    %s1459 = scalar_lea.vmem [#allocation3], 20
    %1460 = vst [vmem:[%s1459] sm:$0xf] %v1458
    %s1461 = scalar_lea.vmem [#allocation2], 192
    %v1462 = vld [vmem:[%s1461] sm:$0xff]
    %v1463 = vld [vmem:[%s1461 + $0x8] sm:$0xff]
    %v1464 = vld [vmem:[%s1461 + $0x10] sm:$0xff]
    %v1465 = vld [vmem:[%s1461 + $0x18] sm:$0xff]
    %1466 = vmatpush.bf16.msra.mxu0 %v669
    %1467 = vmatpush.bf16.msra.mxu0 %v665
    %1468 = vmatpush.bf16.msra.mxu0 %v661
    %1469 = vmatpush.bf16.msra.mxu0 %v657
    %1470 = vmatpush.bf16.msra.mxu0 %v653
    %1471 = vmatpush.bf16.msra.mxu0 %v649
    %1472 = vmatpush.bf16.msra.mxu0 %v645
    %1473 = vmatpush.bf16.msra.mxu0 %v641
    %1474 = vmatmul.bf16.gmra.mxu0 %v1458
    %v1475 = vpop.f32.mrf.mxu0
    %v1476 = vadd.f32 0.0, %v1475
    %v1477 = vpop.f32.mrf.mxu0
    %1478 = vdwg.mxu0
    %1479 = vmatpush.bf16.msra.mxu0 %v670
    %1480 = vmatpush.bf16.msra.mxu0 %v666
    %1481 = vmatpush.bf16.msra.mxu0 %v662
    %1482 = vmatpush.bf16.msra.mxu0 %v658
    %1483 = vmatpush.bf16.msra.mxu0 %v654
    %1484 = vmatpush.bf16.msra.mxu0 %v650
    %1485 = vmatpush.bf16.msra.mxu0 %v646
    %1486 = vmatpush.bf16.msra.mxu0 %v642
    %1487 = vmatmul.bf16.gmra.mxu0 %v1458
    %v1488 = vpop.f32.mrf.mxu0
    %v1489 = vadd.f32 0.0, %v1488
    %v1490 = vpop.f32.mrf.mxu0
    %1491 = vdwg.mxu0
    %1492 = vmatpush.bf16.msra.mxu0 %v671
    %1493 = vmatpush.bf16.msra.mxu0 %v667
    %1494 = vmatpush.bf16.msra.mxu0 %v663
    %1495 = vmatpush.bf16.msra.mxu0 %v659
    %1496 = vmatpush.bf16.msra.mxu0 %v655
    %1497 = vmatpush.bf16.msra.mxu0 %v651
    %1498 = vmatpush.bf16.msra.mxu0 %v647
    %1499 = vmatpush.bf16.msra.mxu0 %v643
    %1500 = vmatmul.bf16.gmra.mxu0 %v1458
    %v1501 = vpop.f32.mrf.mxu0
    %v1502 = vadd.f32 0.0, %v1501
    %v1503 = vpop.f32.mrf.mxu0
    %1504 = vdwg.mxu0
    %1505 = vmatpush.bf16.msra.mxu0 %v672
    %1506 = vmatpush.bf16.msra.mxu0 %v668
    %1507 = vmatpush.bf16.msra.mxu0 %v664
    %1508 = vmatpush.bf16.msra.mxu0 %v660
    %1509 = vmatpush.bf16.msra.mxu0 %v656
    %1510 = vmatpush.bf16.msra.mxu0 %v652
    %1511 = vmatpush.bf16.msra.mxu0 %v648
    %1512 = vmatpush.bf16.msra.mxu0 %v644
    %1513 = vmatmul.bf16.gmra.mxu0 %v1458
    %v1514 = vpop.f32.mrf.mxu0
    %v1515 = vadd.f32 0.0, %v1514
    %v1516 = vpop.f32.mrf.mxu0
    %1517 = vdwg.mxu0
    %v1518 = vadd.f32 %v1462, %v1476
    %v1519 = vadd.f32 %v1463, %v1489
    %v1520 = vadd.f32 %v1464, %v1502
    %v1521 = vadd.f32 %v1465, %v1515
    %v1522 = vxor.u32 %v1518, 2147483648
    %v1523 = vmul.f32 %v1522, 1.442695
    %v1524 = vpow.pop %v1523
    %v1525 = vadd.f32 %v1524, 1.0
    %v1526 = vrcp.pop %v1525
    %v1527 = vmul.f32 %v1525, %v1526
    %v1528 = vsub.f32 1.0, %v1527
    %v1529 = vmul.f32 %v1526, %v1528
    %v1530 = vadd.f32 %v1526, %v1529
    %vm1531 = vweird.f32 %v1525
    %vm1532 = vweird.f32 %v1526
    %vm1533 = vmor %vm1531, %vm1532
    %v1534 = vsel %vm1533, %v1526, %v1530
    %v1535 = vand.u32 2147483647, %v1525
    %vm1536 = vcmp.eq.f32.partialorder %v1535, 8.507059e+37
    %v1537 = vand.u32 %v1525, 2147483648
    %v1538 = vor.u32 1.1754944e-38, %v1537
    %v1539 = vsel %vm1536, %v1538, %v1534
    %v1540 = vmul.f32 1.0, %v1539
    %v1541 = vxor.u32 %v1519, 2147483648
    %v1542 = vmul.f32 %v1541, 1.442695
    %v1543 = vpow.pop %v1542
    %v1544 = vadd.f32 %v1543, 1.0
    %v1545 = vrcp.pop %v1544
    %v1546 = vmul.f32 %v1544, %v1545
    %v1547 = vsub.f32 1.0, %v1546
    %v1548 = vmul.f32 %v1545, %v1547
    %v1549 = vadd.f32 %v1545, %v1548
    %vm1550 = vweird.f32 %v1544
    %vm1551 = vweird.f32 %v1545
    %vm1552 = vmor %vm1550, %vm1551
    %v1553 = vsel %vm1552, %v1545, %v1549
    %v1554 = vand.u32 2147483647, %v1544
    %vm1555 = vcmp.eq.f32.partialorder %v1554, 8.507059e+37
    %v1556 = vand.u32 %v1544, 2147483648
    %v1557 = vor.u32 1.1754944e-38, %v1556
    %v1558 = vsel %vm1555, %v1557, %v1553
    %v1559 = vmul.f32 1.0, %v1558
    %v1560 = vtanh.pop %v1520
    %v1561 = vxor.u32 %v1521, 2147483648
    %v1562 = vmul.f32 %v1561, 1.442695
    %v1563 = vpow.pop %v1562
    %v1564 = vadd.f32 %v1563, 1.0
    %v1565 = vrcp.pop %v1564
    %v1566 = vmul.f32 %v1564, %v1565
    %v1567 = vsub.f32 1.0, %v1566
    %v1568 = vmul.f32 %v1565, %v1567
    %v1569 = vadd.f32 %v1565, %v1568
    %vm1570 = vweird.f32 %v1564
    %vm1571 = vweird.f32 %v1565
    %vm1572 = vmor %vm1570, %vm1571
    %v1573 = vsel %vm1572, %v1565, %v1569
    %v1574 = vand.u32 2147483647, %v1564
    %vm1575 = vcmp.eq.f32.partialorder %v1574, 8.507059e+37
    %v1576 = vand.u32 %v1564, 2147483648
    %v1577 = vor.u32 1.1754944e-38, %v1576
    %v1578 = vsel %vm1575, %v1577, %v1573
    %v1579 = vmul.f32 1.0, %v1578
    %v1580 = vmul.f32 %v1559, %v1455
    %v1581 = vmul.f32 %v1540, %v1560
    %v1582 = vadd.f32 %v1580, %v1581
    %v1583 = vtanh.pop %v1582
    %v1584 = vmul.f32 %v1579, %v1583
    %v1585 = vpack.c.bf16 %v1584, %v1584
    %s1586 = scalar_lea.vmem [#allocation3], 24
    %1587 = vst [vmem:[%s1586] sm:$0xf] %v1585
    %s1588 = scalar_lea.vmem [#allocation2], 224
    %v1589 = vld [vmem:[%s1588] sm:$0xff]
    %v1590 = vld [vmem:[%s1588 + $0x8] sm:$0xff]
    %v1591 = vld [vmem:[%s1588 + $0x10] sm:$0xff]
    %v1592 = vld [vmem:[%s1588 + $0x18] sm:$0xff]
    %1593 = vmatpush.bf16.msra.mxu0 %v669
    %1594 = vmatpush.bf16.msra.mxu0 %v665
    %1595 = vmatpush.bf16.msra.mxu0 %v661
    %1596 = vmatpush.bf16.msra.mxu0 %v657
    %1597 = vmatpush.bf16.msra.mxu0 %v653
    %1598 = vmatpush.bf16.msra.mxu0 %v649
    %1599 = vmatpush.bf16.msra.mxu0 %v645
    %1600 = vmatpush.bf16.msra.mxu0 %v641
    %1601 = vmatmul.bf16.gmra.mxu0 %v1585
    %v1602 = vpop.f32.mrf.mxu0
    %v1603 = vadd.f32 0.0, %v1602
    %v1604 = vpop.f32.mrf.mxu0
    %1605 = vdwg.mxu0
    %1606 = vmatpush.bf16.msra.mxu0 %v670
    %1607 = vmatpush.bf16.msra.mxu0 %v666
    %1608 = vmatpush.bf16.msra.mxu0 %v662
    %1609 = vmatpush.bf16.msra.mxu0 %v658
    %1610 = vmatpush.bf16.msra.mxu0 %v654
    %1611 = vmatpush.bf16.msra.mxu0 %v650
    %1612 = vmatpush.bf16.msra.mxu0 %v646
    %1613 = vmatpush.bf16.msra.mxu0 %v642
    %1614 = vmatmul.bf16.gmra.mxu0 %v1585
    %v1615 = vpop.f32.mrf.mxu0
    %v1616 = vadd.f32 0.0, %v1615
    %v1617 = vpop.f32.mrf.mxu0
    %1618 = vdwg.mxu0
    %1619 = vmatpush.bf16.msra.mxu0 %v671
    %1620 = vmatpush.bf16.msra.mxu0 %v667
    %1621 = vmatpush.bf16.msra.mxu0 %v663
    %1622 = vmatpush.bf16.msra.mxu0 %v659
    %1623 = vmatpush.bf16.msra.mxu0 %v655
    %1624 = vmatpush.bf16.msra.mxu0 %v651
    %1625 = vmatpush.bf16.msra.mxu0 %v647
    %1626 = vmatpush.bf16.msra.mxu0 %v643
    %1627 = vmatmul.bf16.gmra.mxu0 %v1585
    %v1628 = vpop.f32.mrf.mxu0
    %v1629 = vadd.f32 0.0, %v1628
    %v1630 = vpop.f32.mrf.mxu0
    %1631 = vdwg.mxu0
    %1632 = vmatpush.bf16.msra.mxu0 %v672
    %1633 = vmatpush.bf16.msra.mxu0 %v668
    %1634 = vmatpush.bf16.msra.mxu0 %v664
    %1635 = vmatpush.bf16.msra.mxu0 %v660
    %1636 = vmatpush.bf16.msra.mxu0 %v656
    %1637 = vmatpush.bf16.msra.mxu0 %v652
    %1638 = vmatpush.bf16.msra.mxu0 %v648
    %1639 = vmatpush.bf16.msra.mxu0 %v644
    %1640 = vmatmul.bf16.gmra.mxu0 %v1585
    %v1641 = vpop.f32.mrf.mxu0
    %v1642 = vadd.f32 0.0, %v1641
    %v1643 = vpop.f32.mrf.mxu0
    %1644 = vdwg.mxu0
    %v1645 = vadd.f32 %v1589, %v1603
    %v1646 = vadd.f32 %v1590, %v1616
    %v1647 = vadd.f32 %v1591, %v1629
    %v1648 = vadd.f32 %v1592, %v1642
    %v1649 = vxor.u32 %v1645, 2147483648
    %v1650 = vmul.f32 %v1649, 1.442695
    %v1651 = vpow.pop %v1650
    %v1652 = vadd.f32 %v1651, 1.0
    %v1653 = vrcp.pop %v1652
    %v1654 = vmul.f32 %v1652, %v1653
    %v1655 = vsub.f32 1.0, %v1654
    %v1656 = vmul.f32 %v1653, %v1655
    %v1657 = vadd.f32 %v1653, %v1656
    %vm1658 = vweird.f32 %v1652
    %vm1659 = vweird.f32 %v1653
    %vm1660 = vmor %vm1658, %vm1659
    %v1661 = vsel %vm1660, %v1653, %v1657
    %v1662 = vand.u32 2147483647, %v1652
    %vm1663 = vcmp.eq.f32.partialorder %v1662, 8.507059e+37
    %v1664 = vand.u32 %v1652, 2147483648
    %v1665 = vor.u32 1.1754944e-38, %v1664
    %v1666 = vsel %vm1663, %v1665, %v1661
    %v1667 = vmul.f32 1.0, %v1666
    %v1668 = vxor.u32 %v1646, 2147483648
    %v1669 = vmul.f32 %v1668, 1.442695
    %v1670 = vpow.pop %v1669
    %v1671 = vadd.f32 %v1670, 1.0
    %v1672 = vrcp.pop %v1671
    %v1673 = vmul.f32 %v1671, %v1672
    %v1674 = vsub.f32 1.0, %v1673
    %v1675 = vmul.f32 %v1672, %v1674
    %v1676 = vadd.f32 %v1672, %v1675
    %vm1677 = vweird.f32 %v1671
    %vm1678 = vweird.f32 %v1672
    %vm1679 = vmor %vm1677, %vm1678
    %v1680 = vsel %vm1679, %v1672, %v1676
    %v1681 = vand.u32 2147483647, %v1671
    %vm1682 = vcmp.eq.f32.partialorder %v1681, 8.507059e+37
    %v1683 = vand.u32 %v1671, 2147483648
    %v1684 = vor.u32 1.1754944e-38, %v1683
    %v1685 = vsel %vm1682, %v1684, %v1680
    %v1686 = vmul.f32 1.0, %v1685
    %v1687 = vtanh.pop %v1647
    %v1688 = vxor.u32 %v1648, 2147483648
    %v1689 = vmul.f32 %v1688, 1.442695
    %v1690 = vpow.pop %v1689
    %v1691 = vadd.f32 %v1690, 1.0
    %v1692 = vrcp.pop %v1691
    %v1693 = vmul.f32 %v1691, %v1692
    %v1694 = vsub.f32 1.0, %v1693
    %v1695 = vmul.f32 %v1692, %v1694
    %v1696 = vadd.f32 %v1692, %v1695
    %vm1697 = vweird.f32 %v1691
    %vm1698 = vweird.f32 %v1692
    %vm1699 = vmor %vm1697, %vm1698
    %v1700 = vsel %vm1699, %v1692, %v1696
    %v1701 = vand.u32 2147483647, %v1691
    %vm1702 = vcmp.eq.f32.partialorder %v1701, 8.507059e+37
    %v1703 = vand.u32 %v1691, 2147483648
    %v1704 = vor.u32 1.1754944e-38, %v1703
    %v1705 = vsel %vm1702, %v1704, %v1700
    %v1706 = vmul.f32 1.0, %v1705
    %v1707 = vmul.f32 %v1686, %v1582
    %v1708 = vmul.f32 %v1667, %v1687
    %v1709 = vadd.f32 %v1707, %v1708
    %v1710 = vtanh.pop %v1709
    %v1711 = vmul.f32 %v1706, %v1710
    %v1712 = vpack.c.bf16 %v1711, %v1711
    %s1713 = scalar_lea.vmem [#allocation3], 28
    %1714 = vst [vmem:[%s1713] sm:$0xf] %v1712
    %1715 = vst [vmem:[%s10] sm:$0xff] %v1711
    %1716 = vst [vmem:[%s11] sm:$0xff] %v1709
    %v1717 = vld [vmem:[#allocation8] sm:$0xff]
    %v1718 = vld [vmem:[#allocation8 + $0x8] sm:$0xff]
    %v1719 = vld [vmem:[#allocation8 + $0x10] sm:$0xff]
    %v1720 = vld [vmem:[#allocation8 + $0x18] sm:$0xff]
    %v1721 = vld [vmem:[#allocation8 + $0x20] sm:$0xff]
    %v1722 = vld [vmem:[#allocation8 + $0x28] sm:$0xff]
    %v1723 = vld [vmem:[#allocation8 + $0x30] sm:$0xff]
    %v1724 = vld [vmem:[#allocation8 + $0x38] sm:$0xff]
    %v1725 = vld [vmem:[#allocation8 + $0x40] sm:$0xff]
    %v1726 = vld [vmem:[#allocation8 + $0x48] sm:$0xff]
    %v1727 = vld [vmem:[#allocation8 + $0x50] sm:$0xff]
    %v1728 = vld [vmem:[#allocation8 + $0x58] sm:$0xff]
    %v1729 = vld [vmem:[#allocation8 + $0x60] sm:$0xff]
    %v1730 = vld [vmem:[#allocation8 + $0x68] sm:$0xff]
    %v1731 = vld [vmem:[#allocation8 + $0x70] sm:$0xff]
    %v1732 = vld [vmem:[#allocation8 + $0x78] sm:$0xff]
    %v1733 = vld [vmem:[#allocation8 + $0x80] sm:$0xff]
    %v1734 = vld [vmem:[#allocation8 + $0x88] sm:$0xff]
    %v1735 = vld [vmem:[#allocation8 + $0x90] sm:$0xff]
    %v1736 = vld [vmem:[#allocation8 + $0x98] sm:$0xff]
    %v1737 = vld [vmem:[#allocation8 + $0xa0] sm:$0xff]
    %v1738 = vld [vmem:[#allocation8 + $0xa8] sm:$0xff]
    %v1739 = vld [vmem:[#allocation8 + $0xb0] sm:$0xff]
    %v1740 = vld [vmem:[#allocation8 + $0xb8] sm:$0xff]
    %v1741 = vld [vmem:[#allocation8 + $0xc0] sm:$0xff]
    %v1742 = vld [vmem:[#allocation8 + $0xc8] sm:$0xff]
    %v1743 = vld [vmem:[#allocation8 + $0xd0] sm:$0xff]
    %v1744 = vld [vmem:[#allocation8 + $0xd8] sm:$0xff]
    %v1745 = vld [vmem:[#allocation8 + $0xe0] sm:$0xff]
    %v1746 = vld [vmem:[#allocation8 + $0xe8] sm:$0xff]
    %v1747 = vld [vmem:[#allocation8 + $0xf0] sm:$0xff]
    %v1748 = vld [vmem:[#allocation8 + $0xf8] sm:$0xff]
    %v1749 = vld [vmem:[#allocation9] sm:$0xff]
    %v1750 = vld [vmem:[#allocation9 + $0x8] sm:$0xff]
    %v1751 = vld [vmem:[#allocation9 + $0x10] sm:$0xff]
    %v1752 = vld [vmem:[#allocation9 + $0x18] sm:$0xff]
    %v1753 = vld [vmem:[#allocation9 + $0x20] sm:$0xff]
    %v1754 = vld [vmem:[#allocation9 + $0x28] sm:$0xff]
    %v1755 = vld [vmem:[#allocation9 + $0x30] sm:$0xff]
    %v1756 = vld [vmem:[#allocation9 + $0x38] sm:$0xff]
    %v1757 = vld [vmem:[#allocation9 + $0x40] sm:$0xff]
    %v1758 = vld [vmem:[#allocation9 + $0x48] sm:$0xff]
    %v1759 = vld [vmem:[#allocation9 + $0x50] sm:$0xff]
    %v1760 = vld [vmem:[#allocation9 + $0x58] sm:$0xff]
    %v1761 = vld [vmem:[#allocation9 + $0x60] sm:$0xff]
    %v1762 = vld [vmem:[#allocation9 + $0x68] sm:$0xff]
    %v1763 = vld [vmem:[#allocation9 + $0x70] sm:$0xff]
    %v1764 = vld [vmem:[#allocation9 + $0x78] sm:$0xff]
    %v1765 = vld [vmem:[#allocation9 + $0x80] sm:$0xff]
    %v1766 = vld [vmem:[#allocation9 + $0x88] sm:$0xff]
    %v1767 = vld [vmem:[#allocation9 + $0x90] sm:$0xff]
    %v1768 = vld [vmem:[#allocation9 + $0x98] sm:$0xff]
    %v1769 = vld [vmem:[#allocation9 + $0xa0] sm:$0xff]
    %v1770 = vld [vmem:[#allocation9 + $0xa8] sm:$0xff]
    %v1771 = vld [vmem:[#allocation9 + $0xb0] sm:$0xff]
    %v1772 = vld [vmem:[#allocation9 + $0xb8] sm:$0xff]
    %v1773 = vld [vmem:[#allocation9 + $0xc0] sm:$0xff]
    %v1774 = vld [vmem:[#allocation9 + $0xc8] sm:$0xff]
    %v1775 = vld [vmem:[#allocation9 + $0xd0] sm:$0xff]
    %v1776 = vld [vmem:[#allocation9 + $0xd8] sm:$0xff]
    %v1777 = vld [vmem:[#allocation9 + $0xe0] sm:$0xff]
    %v1778 = vld [vmem:[#allocation9 + $0xe8] sm:$0xff]
    %v1779 = vld [vmem:[#allocation9 + $0xf0] sm:$0xff]
    %v1780 = vld [vmem:[#allocation9 + $0xf8] sm:$0xff]
    %s1781 = scalar_lea.vmem %s7, 8
    %v1782 = vld [vmem:[%s1781] sm:$0xff]
    %s1783 = scalar_lea.vmem %s8, 8
    %v1784 = vld [vmem:[%s1783] sm:$0xff]
    %v1785 = vld [vmem:[#allocation3] sm:$0xf]
    %v1786 = vld [vmem:[#allocation3 + $0x4] sm:$0xf]
    %v1787 = vld [vmem:[#allocation3 + $0x8] sm:$0xf]
    %v1788 = vld [vmem:[#allocation3 + $0xc] sm:$0xf]
    %v1789 = vld [vmem:[#allocation3 + $0x10] sm:$0xf]
    %v1790 = vld [vmem:[#allocation3 + $0x14] sm:$0xf]
    %v1791 = vld [vmem:[#allocation3 + $0x18] sm:$0xf]
    %v1792 = vld [vmem:[#allocation3 + $0x1c] sm:$0xf]
    %v1793 = vld [vmem:[%s6] sm:$0xf]
    %v1795 = vperm.slane %v1793, 0
    %v1796 = vperm.slane %v1793, 1
    %v1797 = vperm.slane %v1793, 2
    %v1798 = vperm.slane %v1793, 3
    %v1811 = vunpack.c.l.b16 %v1785
    %v1812 = vunpack.c.l.b16 %v1786
    %v1813 = vunpack.c.l.b16 %v1787
    %v1814 = vunpack.c.l.b16 %v1788
    %v1815 = vunpack.c.l.b16 %v1789
    %v1816 = vunpack.c.l.b16 %v1790
    %v1817 = vunpack.c.l.b16 %v1791
    %v1818 = vunpack.c.l.b16 %v1792
    %v1819 = vpack.c.b16 %v1812, %v1811
    %v1820 = vpack.c.b16 %v1814, %v1813
    %v1821 = vpack.c.b16 %v1816, %v1815
    %v1822 = vpack.c.b16 %v1818, %v1817
    %v1859 = vunpack.c.l.b16 %v1717
    %v1860 = vunpack.c.h.b16 %v1717
    %v1861 = vunpack.c.l.b16 %v1718
    %v1862 = vunpack.c.h.b16 %v1718
    %v1863 = vunpack.c.l.b16 %v1719
    %v1864 = vunpack.c.h.b16 %v1719
    %v1865 = vunpack.c.l.b16 %v1720
    %v1866 = vunpack.c.h.b16 %v1720
    %v1867 = vunpack.c.l.b16 %v1721
    %v1868 = vunpack.c.h.b16 %v1721
    %v1869 = vunpack.c.l.b16 %v1722
    %v1870 = vunpack.c.h.b16 %v1722
    %v1871 = vunpack.c.l.b16 %v1723
    %v1872 = vunpack.c.h.b16 %v1723
    %v1873 = vunpack.c.l.b16 %v1724
    %v1874 = vunpack.c.h.b16 %v1724
    %v1875 = vunpack.c.l.b16 %v1725
    %v1876 = vunpack.c.h.b16 %v1725
    %v1877 = vunpack.c.l.b16 %v1726
    %v1878 = vunpack.c.h.b16 %v1726
    %v1879 = vunpack.c.l.b16 %v1727
    %v1880 = vunpack.c.h.b16 %v1727
    %v1881 = vunpack.c.l.b16 %v1728
    %v1882 = vunpack.c.h.b16 %v1728
    %v1883 = vunpack.c.l.b16 %v1729
    %v1884 = vunpack.c.h.b16 %v1729
    %v1885 = vunpack.c.l.b16 %v1730
    %v1886 = vunpack.c.h.b16 %v1730
    %v1887 = vunpack.c.l.b16 %v1731
    %v1888 = vunpack.c.h.b16 %v1731
    %v1889 = vunpack.c.l.b16 %v1732
    %v1890 = vunpack.c.h.b16 %v1732
    %v1891 = vunpack.c.l.b16 %v1733
    %v1892 = vunpack.c.h.b16 %v1733
    %v1893 = vunpack.c.l.b16 %v1734
    %v1894 = vunpack.c.h.b16 %v1734
    %v1895 = vunpack.c.l.b16 %v1735
    %v1896 = vunpack.c.h.b16 %v1735
    %v1897 = vunpack.c.l.b16 %v1736
    %v1898 = vunpack.c.h.b16 %v1736
    %v1899 = vunpack.c.l.b16 %v1737
    %v1900 = vunpack.c.h.b16 %v1737
    %v1901 = vunpack.c.l.b16 %v1738
    %v1902 = vunpack.c.h.b16 %v1738
    %v1903 = vunpack.c.l.b16 %v1739
    %v1904 = vunpack.c.h.b16 %v1739
    %v1905 = vunpack.c.l.b16 %v1740
    %v1906 = vunpack.c.h.b16 %v1740
    %v1907 = vunpack.c.l.b16 %v1741
    %v1908 = vunpack.c.h.b16 %v1741
    %v1909 = vunpack.c.l.b16 %v1742
    %v1910 = vunpack.c.h.b16 %v1742
    %v1911 = vunpack.c.l.b16 %v1743
    %v1912 = vunpack.c.h.b16 %v1743
    %v1913 = vunpack.c.l.b16 %v1744
    %v1914 = vunpack.c.h.b16 %v1744
    %v1915 = vunpack.c.l.b16 %v1745
    %v1916 = vunpack.c.h.b16 %v1745
    %v1917 = vunpack.c.l.b16 %v1746
    %v1918 = vunpack.c.h.b16 %v1746
    %v1919 = vunpack.c.l.b16 %v1747
    %v1920 = vunpack.c.h.b16 %v1747
    %v1921 = vunpack.c.l.b16 %v1748
    %v1922 = vunpack.c.h.b16 %v1748
    %v1923 = vpack.c.b16 %v1863, %v1859
    %v1924 = vpack.c.b16 %v1864, %v1860
    %v1925 = vpack.c.b16 %v1865, %v1861
    %v1926 = vpack.c.b16 %v1866, %v1862
    %v1927 = vpack.c.b16 %v1871, %v1867
    %v1928 = vpack.c.b16 %v1872, %v1868
    %v1929 = vpack.c.b16 %v1873, %v1869
    %v1930 = vpack.c.b16 %v1874, %v1870
    %v1931 = vpack.c.b16 %v1879, %v1875
    %v1932 = vpack.c.b16 %v1880, %v1876
    %v1933 = vpack.c.b16 %v1881, %v1877
    %v1934 = vpack.c.b16 %v1882, %v1878
    %v1935 = vpack.c.b16 %v1887, %v1883
    %v1936 = vpack.c.b16 %v1888, %v1884
    %v1937 = vpack.c.b16 %v1889, %v1885
    %v1938 = vpack.c.b16 %v1890, %v1886
    %v1939 = vpack.c.b16 %v1895, %v1891
    %v1940 = vpack.c.b16 %v1896, %v1892
    %v1941 = vpack.c.b16 %v1897, %v1893
    %v1942 = vpack.c.b16 %v1898, %v1894
    %v1943 = vpack.c.b16 %v1903, %v1899
    %v1944 = vpack.c.b16 %v1904, %v1900
    %v1945 = vpack.c.b16 %v1905, %v1901
    %v1946 = vpack.c.b16 %v1906, %v1902
    %v1947 = vpack.c.b16 %v1911, %v1907
    %v1948 = vpack.c.b16 %v1912, %v1908
    %v1949 = vpack.c.b16 %v1913, %v1909
    %v1950 = vpack.c.b16 %v1914, %v1910
    %v1951 = vpack.c.b16 %v1919, %v1915
    %v1952 = vpack.c.b16 %v1920, %v1916
    %v1953 = vpack.c.b16 %v1921, %v1917
    %v1954 = vpack.c.b16 %v1922, %v1918
    %1987 = vmatpush.bf16.msra.mxu0 %v1951
    %1988 = vmatpush.bf16.msra.mxu0 %v1947
    %1989 = vmatpush.bf16.msra.mxu0 %v1943
    %1990 = vmatpush.bf16.msra.mxu0 %v1939
    %1991 = vmatpush.bf16.msra.mxu0 %v1935
    %1992 = vmatpush.bf16.msra.mxu0 %v1931
    %1993 = vmatpush.bf16.msra.mxu0 %v1927
    %1994 = vmatpush.bf16.msra.mxu0 %v1923
    %1995 = vmatmul.bf16.gmra.mxu0 %v1819
    %v1996 = vpop.f32.mrf.mxu0
    %v1997 = vadd.f32 %v1795, %v1996
    %v1998 = vpop.f32.mrf.mxu0
    %v1999 = vadd.f32 %v1795, %v1998
    %2000 = vmatmul.bf16.gmra.mxu0 %v1820
    %v2001 = vpop.f32.mrf.mxu0
    %v2002 = vadd.f32 %v1795, %v2001
    %v2003 = vpop.f32.mrf.mxu0
    %v2004 = vadd.f32 %v1795, %v2003
    %2005 = vmatmul.bf16.gmra.mxu0 %v1821
    %v2006 = vpop.f32.mrf.mxu0
    %v2007 = vadd.f32 %v1795, %v2006
    %v2008 = vpop.f32.mrf.mxu0
    %v2009 = vadd.f32 %v1795, %v2008
    %2010 = vmatmul.bf16.gmra.mxu0 %v1822
    %v2011 = vpop.f32.mrf.mxu0
    %v2012 = vadd.f32 %v1795, %v2011
    %v2013 = vpop.f32.mrf.mxu0
    %v2014 = vadd.f32 %v1795, %v2013
    %2015 = vdwg.mxu0
    %2016 = vmatpush.bf16.msra.mxu0 %v1952
    %2017 = vmatpush.bf16.msra.mxu0 %v1948
    %2018 = vmatpush.bf16.msra.mxu0 %v1944
    %2019 = vmatpush.bf16.msra.mxu0 %v1940
    %2020 = vmatpush.bf16.msra.mxu0 %v1936
    %2021 = vmatpush.bf16.msra.mxu0 %v1932
    %2022 = vmatpush.bf16.msra.mxu0 %v1928
    %2023 = vmatpush.bf16.msra.mxu0 %v1924
    %2024 = vmatmul.bf16.gmra.mxu0 %v1819
    %v2025 = vpop.f32.mrf.mxu0
    %v2026 = vadd.f32 %v1796, %v2025
    %v2027 = vpop.f32.mrf.mxu0
    %v2028 = vadd.f32 %v1796, %v2027
    %2029 = vmatmul.bf16.gmra.mxu0 %v1820
    %v2030 = vpop.f32.mrf.mxu0
    %v2031 = vadd.f32 %v1796, %v2030
    %v2032 = vpop.f32.mrf.mxu0
    %v2033 = vadd.f32 %v1796, %v2032
    %2034 = vmatmul.bf16.gmra.mxu0 %v1821
    %v2035 = vpop.f32.mrf.mxu0
    %v2036 = vadd.f32 %v1796, %v2035
    %v2037 = vpop.f32.mrf.mxu0
    %v2038 = vadd.f32 %v1796, %v2037
    %2039 = vmatmul.bf16.gmra.mxu0 %v1822
    %v2040 = vpop.f32.mrf.mxu0
    %v2041 = vadd.f32 %v1796, %v2040
    %v2042 = vpop.f32.mrf.mxu0
    %v2043 = vadd.f32 %v1796, %v2042
    %2044 = vdwg.mxu0
    %2045 = vmatpush.bf16.msra.mxu0 %v1953
    %2046 = vmatpush.bf16.msra.mxu0 %v1949
    %2047 = vmatpush.bf16.msra.mxu0 %v1945
    %2048 = vmatpush.bf16.msra.mxu0 %v1941
    %2049 = vmatpush.bf16.msra.mxu0 %v1937
    %2050 = vmatpush.bf16.msra.mxu0 %v1933
    %2051 = vmatpush.bf16.msra.mxu0 %v1929
    %2052 = vmatpush.bf16.msra.mxu0 %v1925
    %2053 = vmatmul.bf16.gmra.mxu0 %v1819
    %v2054 = vpop.f32.mrf.mxu0
    %v2055 = vadd.f32 %v1797, %v2054
    %v2056 = vpop.f32.mrf.mxu0
    %v2057 = vadd.f32 %v1797, %v2056
    %2058 = vmatmul.bf16.gmra.mxu0 %v1820
    %v2059 = vpop.f32.mrf.mxu0
    %v2060 = vadd.f32 %v1797, %v2059
    %v2061 = vpop.f32.mrf.mxu0
    %v2062 = vadd.f32 %v1797, %v2061
    %2063 = vmatmul.bf16.gmra.mxu0 %v1821
    %v2064 = vpop.f32.mrf.mxu0
    %v2065 = vadd.f32 %v1797, %v2064
    %v2066 = vpop.f32.mrf.mxu0
    %v2067 = vadd.f32 %v1797, %v2066
    %2068 = vmatmul.bf16.gmra.mxu0 %v1822
    %v2069 = vpop.f32.mrf.mxu0
    %v2070 = vadd.f32 %v1797, %v2069
    %v2071 = vpop.f32.mrf.mxu0
    %v2072 = vadd.f32 %v1797, %v2071
    %2073 = vdwg.mxu0
    %2074 = vmatpush.bf16.msra.mxu0 %v1954
    %2075 = vmatpush.bf16.msra.mxu0 %v1950
    %2076 = vmatpush.bf16.msra.mxu0 %v1946
    %2077 = vmatpush.bf16.msra.mxu0 %v1942
    %2078 = vmatpush.bf16.msra.mxu0 %v1938
    %2079 = vmatpush.bf16.msra.mxu0 %v1934
    %2080 = vmatpush.bf16.msra.mxu0 %v1930
    %2081 = vmatpush.bf16.msra.mxu0 %v1926
    %2082 = vmatmul.bf16.gmra.mxu0 %v1819
    %v2083 = vpop.f32.mrf.mxu0
    %v2084 = vadd.f32 %v1798, %v2083
    %v2085 = vpop.f32.mrf.mxu0
    %v2086 = vadd.f32 %v1798, %v2085
    %2087 = vmatmul.bf16.gmra.mxu0 %v1820
    %v2088 = vpop.f32.mrf.mxu0
    %v2089 = vadd.f32 %v1798, %v2088
    %v2090 = vpop.f32.mrf.mxu0
    %v2091 = vadd.f32 %v1798, %v2090
    %2092 = vmatmul.bf16.gmra.mxu0 %v1821
    %v2093 = vpop.f32.mrf.mxu0
    %v2094 = vadd.f32 %v1798, %v2093
    %v2095 = vpop.f32.mrf.mxu0
    %v2096 = vadd.f32 %v1798, %v2095
    %2097 = vmatmul.bf16.gmra.mxu0 %v1822
    %v2098 = vpop.f32.mrf.mxu0
    %v2099 = vadd.f32 %v1798, %v2098
    %v2100 = vpop.f32.mrf.mxu0
    %v2101 = vadd.f32 %v1798, %v2100
    %2102 = vdwg.mxu0
    %2103 = vst [vmem:[#allocation2] sm:$0xff] %v1997
    %2104 = vst [vmem:[#allocation2 + $0x8] sm:$0xff] %v2026
    %2105 = vst [vmem:[#allocation2 + $0x10] sm:$0xff] %v2055
    %2106 = vst [vmem:[#allocation2 + $0x18] sm:$0xff] %v2084
    %2107 = vst [vmem:[#allocation2 + $0x20] sm:$0xff] %v1999
    %2108 = vst [vmem:[#allocation2 + $0x28] sm:$0xff] %v2028
    %2109 = vst [vmem:[#allocation2 + $0x30] sm:$0xff] %v2057
    %2110 = vst [vmem:[#allocation2 + $0x38] sm:$0xff] %v2086
    %2111 = vst [vmem:[#allocation2 + $0x40] sm:$0xff] %v2002
    %2112 = vst [vmem:[#allocation2 + $0x48] sm:$0xff] %v2031
    %2113 = vst [vmem:[#allocation2 + $0x50] sm:$0xff] %v2060
    %2114 = vst [vmem:[#allocation2 + $0x58] sm:$0xff] %v2089
    %2115 = vst [vmem:[#allocation2 + $0x60] sm:$0xff] %v2004
    %2116 = vst [vmem:[#allocation2 + $0x68] sm:$0xff] %v2033
    %2117 = vst [vmem:[#allocation2 + $0x70] sm:$0xff] %v2062
    %2118 = vst [vmem:[#allocation2 + $0x78] sm:$0xff] %v2091
    %2119 = vst [vmem:[#allocation2 + $0x80] sm:$0xff] %v2007
    %2120 = vst [vmem:[#allocation2 + $0x88] sm:$0xff] %v2036
    %2121 = vst [vmem:[#allocation2 + $0x90] sm:$0xff] %v2065
    %2122 = vst [vmem:[#allocation2 + $0x98] sm:$0xff] %v2094
    %2123 = vst [vmem:[#allocation2 + $0xa0] sm:$0xff] %v2009
    %2124 = vst [vmem:[#allocation2 + $0xa8] sm:$0xff] %v2038
    %2125 = vst [vmem:[#allocation2 + $0xb0] sm:$0xff] %v2067
    %2126 = vst [vmem:[#allocation2 + $0xb8] sm:$0xff] %v2096
    %2127 = vst [vmem:[#allocation2 + $0xc0] sm:$0xff] %v2012
    %2128 = vst [vmem:[#allocation2 + $0xc8] sm:$0xff] %v2041
    %2129 = vst [vmem:[#allocation2 + $0xd0] sm:$0xff] %v2070
    %2130 = vst [vmem:[#allocation2 + $0xd8] sm:$0xff] %v2099
    %2131 = vst [vmem:[#allocation2 + $0xe0] sm:$0xff] %v2014
    %2132 = vst [vmem:[#allocation2 + $0xe8] sm:$0xff] %v2043
    %2133 = vst [vmem:[#allocation2 + $0xf0] sm:$0xff] %v2072
    %2134 = vst [vmem:[#allocation2 + $0xf8] sm:$0xff] %v2101
    %v2135 = vld [vmem:[#allocation2] sm:$0xff]
    %v2136 = vld [vmem:[#allocation2 + $0x8] sm:$0xff]
    %v2137 = vld [vmem:[#allocation2 + $0x10] sm:$0xff]
    %v2138 = vld [vmem:[#allocation2 + $0x18] sm:$0xff]
    %v2139 = vpack.c.bf16 %v1782, %v1782
    %v2172 = vunpack.c.l.b16 %v1749
    %v2173 = vunpack.c.h.b16 %v1749
    %v2174 = vunpack.c.l.b16 %v1750
    %v2175 = vunpack.c.h.b16 %v1750
    %v2176 = vunpack.c.l.b16 %v1751
    %v2177 = vunpack.c.h.b16 %v1751
    %v2178 = vunpack.c.l.b16 %v1752
    %v2179 = vunpack.c.h.b16 %v1752
    %v2180 = vunpack.c.l.b16 %v1753
    %v2181 = vunpack.c.h.b16 %v1753
    %v2182 = vunpack.c.l.b16 %v1754
    %v2183 = vunpack.c.h.b16 %v1754
    %v2184 = vunpack.c.l.b16 %v1755
    %v2185 = vunpack.c.h.b16 %v1755
    %v2186 = vunpack.c.l.b16 %v1756
    %v2187 = vunpack.c.h.b16 %v1756
    %v2188 = vunpack.c.l.b16 %v1757
    %v2189 = vunpack.c.h.b16 %v1757
    %v2190 = vunpack.c.l.b16 %v1758
    %v2191 = vunpack.c.h.b16 %v1758
    %v2192 = vunpack.c.l.b16 %v1759
    %v2193 = vunpack.c.h.b16 %v1759
    %v2194 = vunpack.c.l.b16 %v1760
    %v2195 = vunpack.c.h.b16 %v1760
    %v2196 = vunpack.c.l.b16 %v1761
    %v2197 = vunpack.c.h.b16 %v1761
    %v2198 = vunpack.c.l.b16 %v1762
    %v2199 = vunpack.c.h.b16 %v1762
    %v2200 = vunpack.c.l.b16 %v1763
    %v2201 = vunpack.c.h.b16 %v1763
    %v2202 = vunpack.c.l.b16 %v1764
    %v2203 = vunpack.c.h.b16 %v1764
    %v2204 = vunpack.c.l.b16 %v1765
    %v2205 = vunpack.c.h.b16 %v1765
    %v2206 = vunpack.c.l.b16 %v1766
    %v2207 = vunpack.c.h.b16 %v1766
    %v2208 = vunpack.c.l.b16 %v1767
    %v2209 = vunpack.c.h.b16 %v1767
    %v2210 = vunpack.c.l.b16 %v1768
    %v2211 = vunpack.c.h.b16 %v1768
    %v2212 = vunpack.c.l.b16 %v1769
    %v2213 = vunpack.c.h.b16 %v1769
    %v2214 = vunpack.c.l.b16 %v1770
    %v2215 = vunpack.c.h.b16 %v1770
    %v2216 = vunpack.c.l.b16 %v1771
    %v2217 = vunpack.c.h.b16 %v1771
    %v2218 = vunpack.c.l.b16 %v1772
    %v2219 = vunpack.c.h.b16 %v1772
    %v2220 = vunpack.c.l.b16 %v1773
    %v2221 = vunpack.c.h.b16 %v1773
    %v2222 = vunpack.c.l.b16 %v1774
    %v2223 = vunpack.c.h.b16 %v1774
    %v2224 = vunpack.c.l.b16 %v1775
    %v2225 = vunpack.c.h.b16 %v1775
    %v2226 = vunpack.c.l.b16 %v1776
    %v2227 = vunpack.c.h.b16 %v1776
    %v2228 = vunpack.c.l.b16 %v1777
    %v2229 = vunpack.c.h.b16 %v1777
    %v2230 = vunpack.c.l.b16 %v1778
    %v2231 = vunpack.c.h.b16 %v1778
    %v2232 = vunpack.c.l.b16 %v1779
    %v2233 = vunpack.c.h.b16 %v1779
    %v2234 = vunpack.c.l.b16 %v1780
    %v2235 = vunpack.c.h.b16 %v1780
    %v2236 = vpack.c.b16 %v2176, %v2172
    %v2237 = vpack.c.b16 %v2177, %v2173
    %v2238 = vpack.c.b16 %v2178, %v2174
    %v2239 = vpack.c.b16 %v2179, %v2175
    %v2240 = vpack.c.b16 %v2184, %v2180
    %v2241 = vpack.c.b16 %v2185, %v2181
    %v2242 = vpack.c.b16 %v2186, %v2182
    %v2243 = vpack.c.b16 %v2187, %v2183
    %v2244 = vpack.c.b16 %v2192, %v2188
    %v2245 = vpack.c.b16 %v2193, %v2189
    %v2246 = vpack.c.b16 %v2194, %v2190
    %v2247 = vpack.c.b16 %v2195, %v2191
    %v2248 = vpack.c.b16 %v2200, %v2196
    %v2249 = vpack.c.b16 %v2201, %v2197
    %v2250 = vpack.c.b16 %v2202, %v2198
    %v2251 = vpack.c.b16 %v2203, %v2199
    %v2252 = vpack.c.b16 %v2208, %v2204
    %v2253 = vpack.c.b16 %v2209, %v2205
    %v2254 = vpack.c.b16 %v2210, %v2206
    %v2255 = vpack.c.b16 %v2211, %v2207
    %v2256 = vpack.c.b16 %v2216, %v2212
    %v2257 = vpack.c.b16 %v2217, %v2213
    %v2258 = vpack.c.b16 %v2218, %v2214
    %v2259 = vpack.c.b16 %v2219, %v2215
    %v2260 = vpack.c.b16 %v2224, %v2220
    %v2261 = vpack.c.b16 %v2225, %v2221
    %v2262 = vpack.c.b16 %v2226, %v2222
    %v2263 = vpack.c.b16 %v2227, %v2223
    %v2264 = vpack.c.b16 %v2232, %v2228
    %v2265 = vpack.c.b16 %v2233, %v2229
    %v2266 = vpack.c.b16 %v2234, %v2230
    %v2267 = vpack.c.b16 %v2235, %v2231
    %2300 = vmatpush.bf16.msra.mxu0 %v2264
    %2301 = vmatpush.bf16.msra.mxu0 %v2260
    %2302 = vmatpush.bf16.msra.mxu0 %v2256
    %2303 = vmatpush.bf16.msra.mxu0 %v2252
    %2304 = vmatpush.bf16.msra.mxu0 %v2248
    %2305 = vmatpush.bf16.msra.mxu0 %v2244
    %2306 = vmatpush.bf16.msra.mxu0 %v2240
    %2307 = vmatpush.bf16.msra.mxu0 %v2236
    %2308 = vmatmul.bf16.gmra.mxu0 %v2139
    %v2309 = vpop.f32.mrf.mxu0
    %v2310 = vadd.f32 0.0, %v2309
    %v2311 = vpop.f32.mrf.mxu0
    %2312 = vdwg.mxu0
    %2313 = vmatpush.bf16.msra.mxu0 %v2265
    %2314 = vmatpush.bf16.msra.mxu0 %v2261
    %2315 = vmatpush.bf16.msra.mxu0 %v2257
    %2316 = vmatpush.bf16.msra.mxu0 %v2253
    %2317 = vmatpush.bf16.msra.mxu0 %v2249
    %2318 = vmatpush.bf16.msra.mxu0 %v2245
    %2319 = vmatpush.bf16.msra.mxu0 %v2241
    %2320 = vmatpush.bf16.msra.mxu0 %v2237
    %2321 = vmatmul.bf16.gmra.mxu0 %v2139
    %v2322 = vpop.f32.mrf.mxu0
    %v2323 = vadd.f32 0.0, %v2322
    %v2324 = vpop.f32.mrf.mxu0
    %2325 = vdwg.mxu0
    %2326 = vmatpush.bf16.msra.mxu0 %v2266
    %2327 = vmatpush.bf16.msra.mxu0 %v2262
    %2328 = vmatpush.bf16.msra.mxu0 %v2258
    %2329 = vmatpush.bf16.msra.mxu0 %v2254
    %2330 = vmatpush.bf16.msra.mxu0 %v2250
    %2331 = vmatpush.bf16.msra.mxu0 %v2246
    %2332 = vmatpush.bf16.msra.mxu0 %v2242
    %2333 = vmatpush.bf16.msra.mxu0 %v2238
    %2334 = vmatmul.bf16.gmra.mxu0 %v2139
    %v2335 = vpop.f32.mrf.mxu0
    %v2336 = vadd.f32 0.0, %v2335
    %v2337 = vpop.f32.mrf.mxu0
    %2338 = vdwg.mxu0
    %2339 = vmatpush.bf16.msra.mxu0 %v2267
    %2340 = vmatpush.bf16.msra.mxu0 %v2263
    %2341 = vmatpush.bf16.msra.mxu0 %v2259
    %2342 = vmatpush.bf16.msra.mxu0 %v2255
    %2343 = vmatpush.bf16.msra.mxu0 %v2251
    %2344 = vmatpush.bf16.msra.mxu0 %v2247
    %2345 = vmatpush.bf16.msra.mxu0 %v2243
    %2346 = vmatpush.bf16.msra.mxu0 %v2239
    %2347 = vmatmul.bf16.gmra.mxu0 %v2139
    %v2348 = vpop.f32.mrf.mxu0
    %v2349 = vadd.f32 0.0, %v2348
    %v2350 = vpop.f32.mrf.mxu0
    %2351 = vdwg.mxu0
    %v2352 = vadd.f32 %v2135, %v2310
    %v2353 = vadd.f32 %v2136, %v2323
    %v2354 = vadd.f32 %v2137, %v2336
    %v2355 = vadd.f32 %v2138, %v2349
    %v2356 = vxor.u32 %v2352, 2147483648
    %v2357 = vmul.f32 %v2356, 1.442695
    %v2358 = vpow.pop %v2357
    %v2359 = vadd.f32 %v2358, 1.0
    %v2360 = vrcp.pop %v2359
    %v2361 = vmul.f32 %v2359, %v2360
    %v2362 = vsub.f32 1.0, %v2361
    %v2363 = vmul.f32 %v2360, %v2362
    %v2364 = vadd.f32 %v2360, %v2363
    %vm2365 = vweird.f32 %v2359
    %vm2366 = vweird.f32 %v2360
    %vm2367 = vmor %vm2365, %vm2366
    %v2368 = vsel %vm2367, %v2360, %v2364
    %v2369 = vand.u32 2147483647, %v2359
    %vm2370 = vcmp.eq.f32.partialorder %v2369, 8.507059e+37
    %v2371 = vand.u32 %v2359, 2147483648
    %v2372 = vor.u32 1.1754944e-38, %v2371
    %v2373 = vsel %vm2370, %v2372, %v2368
    %v2374 = vmul.f32 1.0, %v2373
    %v2375 = vxor.u32 %v2353, 2147483648
    %v2376 = vmul.f32 %v2375, 1.442695
    %v2377 = vpow.pop %v2376
    %v2378 = vadd.f32 %v2377, 1.0
    %v2379 = vrcp.pop %v2378
    %v2380 = vmul.f32 %v2378, %v2379
    %v2381 = vsub.f32 1.0, %v2380
    %v2382 = vmul.f32 %v2379, %v2381
    %v2383 = vadd.f32 %v2379, %v2382
    %vm2384 = vweird.f32 %v2378
    %vm2385 = vweird.f32 %v2379
    %vm2386 = vmor %vm2384, %vm2385
    %v2387 = vsel %vm2386, %v2379, %v2383
    %v2388 = vand.u32 2147483647, %v2378
    %vm2389 = vcmp.eq.f32.partialorder %v2388, 8.507059e+37
    %v2390 = vand.u32 %v2378, 2147483648
    %v2391 = vor.u32 1.1754944e-38, %v2390
    %v2392 = vsel %vm2389, %v2391, %v2387
    %v2393 = vmul.f32 1.0, %v2392
    %v2394 = vtanh.pop %v2354
    %v2395 = vxor.u32 %v2355, 2147483648
    %v2396 = vmul.f32 %v2395, 1.442695
    %v2397 = vpow.pop %v2396
    %v2398 = vadd.f32 %v2397, 1.0
    %v2399 = vrcp.pop %v2398
    %v2400 = vmul.f32 %v2398, %v2399
    %v2401 = vsub.f32 1.0, %v2400
    %v2402 = vmul.f32 %v2399, %v2401
    %v2403 = vadd.f32 %v2399, %v2402
    %vm2404 = vweird.f32 %v2398
    %vm2405 = vweird.f32 %v2399
    %vm2406 = vmor %vm2404, %vm2405
    %v2407 = vsel %vm2406, %v2399, %v2403
    %v2408 = vand.u32 2147483647, %v2398
    %vm2409 = vcmp.eq.f32.partialorder %v2408, 8.507059e+37
    %v2410 = vand.u32 %v2398, 2147483648
    %v2411 = vor.u32 1.1754944e-38, %v2410
    %v2412 = vsel %vm2409, %v2411, %v2407
    %v2413 = vmul.f32 1.0, %v2412
    %v2414 = vmul.f32 %v2393, %v1784
    %v2415 = vmul.f32 %v2374, %v2394
    %v2416 = vadd.f32 %v2414, %v2415
    %v2417 = vtanh.pop %v2416
    %v2418 = vmul.f32 %v2413, %v2417
    %v2419 = vpack.c.bf16 %v2418, %v2418
    %2420 = vst [vmem:[%s9] sm:$0xf] %v2419
    %v2421 = vld [vmem:[%s826] sm:$0xff]
    %v2422 = vld [vmem:[%s826 + $0x8] sm:$0xff]
    %v2423 = vld [vmem:[%s826 + $0x10] sm:$0xff]
    %v2424 = vld [vmem:[%s826 + $0x18] sm:$0xff]
    %2425 = vmatpush.bf16.msra.mxu0 %v2264
    %2426 = vmatpush.bf16.msra.mxu0 %v2260
    %2427 = vmatpush.bf16.msra.mxu0 %v2256
    %2428 = vmatpush.bf16.msra.mxu0 %v2252
    %2429 = vmatpush.bf16.msra.mxu0 %v2248
    %2430 = vmatpush.bf16.msra.mxu0 %v2244
    %2431 = vmatpush.bf16.msra.mxu0 %v2240
    %2432 = vmatpush.bf16.msra.mxu0 %v2236
    %2433 = vmatmul.bf16.gmra.mxu0 %v2419
    %v2434 = vpop.f32.mrf.mxu0
    %v2435 = vadd.f32 0.0, %v2434
    %v2436 = vpop.f32.mrf.mxu0
    %2437 = vdwg.mxu0
    %2438 = vmatpush.bf16.msra.mxu0 %v2265
    %2439 = vmatpush.bf16.msra.mxu0 %v2261
    %2440 = vmatpush.bf16.msra.mxu0 %v2257
    %2441 = vmatpush.bf16.msra.mxu0 %v2253
    %2442 = vmatpush.bf16.msra.mxu0 %v2249
    %2443 = vmatpush.bf16.msra.mxu0 %v2245
    %2444 = vmatpush.bf16.msra.mxu0 %v2241
    %2445 = vmatpush.bf16.msra.mxu0 %v2237
    %2446 = vmatmul.bf16.gmra.mxu0 %v2419
    %v2447 = vpop.f32.mrf.mxu0
    %v2448 = vadd.f32 0.0, %v2447
    %v2449 = vpop.f32.mrf.mxu0
    %2450 = vdwg.mxu0
    %2451 = vmatpush.bf16.msra.mxu0 %v2266
    %2452 = vmatpush.bf16.msra.mxu0 %v2262
    %2453 = vmatpush.bf16.msra.mxu0 %v2258
    %2454 = vmatpush.bf16.msra.mxu0 %v2254
    %2455 = vmatpush.bf16.msra.mxu0 %v2250
    %2456 = vmatpush.bf16.msra.mxu0 %v2246
    %2457 = vmatpush.bf16.msra.mxu0 %v2242
    %2458 = vmatpush.bf16.msra.mxu0 %v2238
    %2459 = vmatmul.bf16.gmra.mxu0 %v2419
    %v2460 = vpop.f32.mrf.mxu0
    %v2461 = vadd.f32 0.0, %v2460
    %v2462 = vpop.f32.mrf.mxu0
    %2463 = vdwg.mxu0
    %2464 = vmatpush.bf16.msra.mxu0 %v2267
    %2465 = vmatpush.bf16.msra.mxu0 %v2263
    %2466 = vmatpush.bf16.msra.mxu0 %v2259
    %2467 = vmatpush.bf16.msra.mxu0 %v2255
    %2468 = vmatpush.bf16.msra.mxu0 %v2251
    %2469 = vmatpush.bf16.msra.mxu0 %v2247
    %2470 = vmatpush.bf16.msra.mxu0 %v2243
    %2471 = vmatpush.bf16.msra.mxu0 %v2239
    %2472 = vmatmul.bf16.gmra.mxu0 %v2419
    %v2473 = vpop.f32.mrf.mxu0
    %v2474 = vadd.f32 0.0, %v2473
    %v2475 = vpop.f32.mrf.mxu0
    %2476 = vdwg.mxu0
    %v2477 = vadd.f32 %v2421, %v2435
    %v2478 = vadd.f32 %v2422, %v2448
    %v2479 = vadd.f32 %v2423, %v2461
    %v2480 = vadd.f32 %v2424, %v2474
    %v2481 = vxor.u32 %v2477, 2147483648
    %v2482 = vmul.f32 %v2481, 1.442695
    %v2483 = vpow.pop %v2482
    %v2484 = vadd.f32 %v2483, 1.0
    %v2485 = vrcp.pop %v2484
    %v2486 = vmul.f32 %v2484, %v2485
    %v2487 = vsub.f32 1.0, %v2486
    %v2488 = vmul.f32 %v2485, %v2487
    %v2489 = vadd.f32 %v2485, %v2488
    %vm2490 = vweird.f32 %v2484
    %vm2491 = vweird.f32 %v2485
    %vm2492 = vmor %vm2490, %vm2491
    %v2493 = vsel %vm2492, %v2485, %v2489
    %v2494 = vand.u32 2147483647, %v2484
    %vm2495 = vcmp.eq.f32.partialorder %v2494, 8.507059e+37
    %v2496 = vand.u32 %v2484, 2147483648
    %v2497 = vor.u32 1.1754944e-38, %v2496
    %v2498 = vsel %vm2495, %v2497, %v2493
    %v2499 = vmul.f32 1.0, %v2498
    %v2500 = vxor.u32 %v2478, 2147483648
    %v2501 = vmul.f32 %v2500, 1.442695
    %v2502 = vpow.pop %v2501
    %v2503 = vadd.f32 %v2502, 1.0
    %v2504 = vrcp.pop %v2503
    %v2505 = vmul.f32 %v2503, %v2504
    %v2506 = vsub.f32 1.0, %v2505
    %v2507 = vmul.f32 %v2504, %v2506
    %v2508 = vadd.f32 %v2504, %v2507
    %vm2509 = vweird.f32 %v2503
    %vm2510 = vweird.f32 %v2504
    %vm2511 = vmor %vm2509, %vm2510
    %v2512 = vsel %vm2511, %v2504, %v2508
    %v2513 = vand.u32 2147483647, %v2503
    %vm2514 = vcmp.eq.f32.partialorder %v2513, 8.507059e+37
    %v2515 = vand.u32 %v2503, 2147483648
    %v2516 = vor.u32 1.1754944e-38, %v2515
    %v2517 = vsel %vm2514, %v2516, %v2512
    %v2518 = vmul.f32 1.0, %v2517
    %v2519 = vtanh.pop %v2479
    %v2520 = vxor.u32 %v2480, 2147483648
    %v2521 = vmul.f32 %v2520, 1.442695
    %v2522 = vpow.pop %v2521
    %v2523 = vadd.f32 %v2522, 1.0
    %v2524 = vrcp.pop %v2523
    %v2525 = vmul.f32 %v2523, %v2524
    %v2526 = vsub.f32 1.0, %v2525
    %v2527 = vmul.f32 %v2524, %v2526
    %v2528 = vadd.f32 %v2524, %v2527
    %vm2529 = vweird.f32 %v2523
    %vm2530 = vweird.f32 %v2524
    %vm2531 = vmor %vm2529, %vm2530
    %v2532 = vsel %vm2531, %v2524, %v2528
    %v2533 = vand.u32 2147483647, %v2523
    %vm2534 = vcmp.eq.f32.partialorder %v2533, 8.507059e+37
    %v2535 = vand.u32 %v2523, 2147483648
    %v2536 = vor.u32 1.1754944e-38, %v2535
    %v2537 = vsel %vm2534, %v2536, %v2532
    %v2538 = vmul.f32 1.0, %v2537
    %v2539 = vmul.f32 %v2518, %v2416
    %v2540 = vmul.f32 %v2499, %v2519
    %v2541 = vadd.f32 %v2539, %v2540
    %v2542 = vtanh.pop %v2541
    %v2543 = vmul.f32 %v2538, %v2542
    %v2544 = vpack.c.bf16 %v2543, %v2543
    %s2545 = scalar_lea.vmem %s9, 4
    %2546 = vst [vmem:[%s2545] sm:$0xf] %v2544
    %v2547 = vld [vmem:[%s953] sm:$0xff]
    %v2548 = vld [vmem:[%s953 + $0x8] sm:$0xff]
    %v2549 = vld [vmem:[%s953 + $0x10] sm:$0xff]
    %v2550 = vld [vmem:[%s953 + $0x18] sm:$0xff]
    %2551 = vmatpush.bf16.msra.mxu0 %v2264
    %2552 = vmatpush.bf16.msra.mxu0 %v2260
    %2553 = vmatpush.bf16.msra.mxu0 %v2256
    %2554 = vmatpush.bf16.msra.mxu0 %v2252
    %2555 = vmatpush.bf16.msra.mxu0 %v2248
    %2556 = vmatpush.bf16.msra.mxu0 %v2244
    %2557 = vmatpush.bf16.msra.mxu0 %v2240
    %2558 = vmatpush.bf16.msra.mxu0 %v2236
    %2559 = vmatmul.bf16.gmra.mxu0 %v2544
    %v2560 = vpop.f32.mrf.mxu0
    %v2561 = vadd.f32 0.0, %v2560
    %v2562 = vpop.f32.mrf.mxu0
    %2563 = vdwg.mxu0
    %2564 = vmatpush.bf16.msra.mxu0 %v2265
    %2565 = vmatpush.bf16.msra.mxu0 %v2261
    %2566 = vmatpush.bf16.msra.mxu0 %v2257
    %2567 = vmatpush.bf16.msra.mxu0 %v2253
    %2568 = vmatpush.bf16.msra.mxu0 %v2249
    %2569 = vmatpush.bf16.msra.mxu0 %v2245
    %2570 = vmatpush.bf16.msra.mxu0 %v2241
    %2571 = vmatpush.bf16.msra.mxu0 %v2237
    %2572 = vmatmul.bf16.gmra.mxu0 %v2544
    %v2573 = vpop.f32.mrf.mxu0
    %v2574 = vadd.f32 0.0, %v2573
    %v2575 = vpop.f32.mrf.mxu0
    %2576 = vdwg.mxu0
    %2577 = vmatpush.bf16.msra.mxu0 %v2266
    %2578 = vmatpush.bf16.msra.mxu0 %v2262
    %2579 = vmatpush.bf16.msra.mxu0 %v2258
    %2580 = vmatpush.bf16.msra.mxu0 %v2254
    %2581 = vmatpush.bf16.msra.mxu0 %v2250
    %2582 = vmatpush.bf16.msra.mxu0 %v2246
    %2583 = vmatpush.bf16.msra.mxu0 %v2242
    %2584 = vmatpush.bf16.msra.mxu0 %v2238
    %2585 = vmatmul.bf16.gmra.mxu0 %v2544
    %v2586 = vpop.f32.mrf.mxu0
    %v2587 = vadd.f32 0.0, %v2586
    %v2588 = vpop.f32.mrf.mxu0
    %2589 = vdwg.mxu0
    %2590 = vmatpush.bf16.msra.mxu0 %v2267
    %2591 = vmatpush.bf16.msra.mxu0 %v2263
    %2592 = vmatpush.bf16.msra.mxu0 %v2259
    %2593 = vmatpush.bf16.msra.mxu0 %v2255
    %2594 = vmatpush.bf16.msra.mxu0 %v2251
    %2595 = vmatpush.bf16.msra.mxu0 %v2247
    %2596 = vmatpush.bf16.msra.mxu0 %v2243
    %2597 = vmatpush.bf16.msra.mxu0 %v2239
    %2598 = vmatmul.bf16.gmra.mxu0 %v2544
    %v2599 = vpop.f32.mrf.mxu0
    %v2600 = vadd.f32 0.0, %v2599
    %v2601 = vpop.f32.mrf.mxu0
    %2602 = vdwg.mxu0
    %v2603 = vadd.f32 %v2547, %v2561
    %v2604 = vadd.f32 %v2548, %v2574
    %v2605 = vadd.f32 %v2549, %v2587
    %v2606 = vadd.f32 %v2550, %v2600
    %v2607 = vxor.u32 %v2603, 2147483648
    %v2608 = vmul.f32 %v2607, 1.442695
    %v2609 = vpow.pop %v2608
    %v2610 = vadd.f32 %v2609, 1.0
    %v2611 = vrcp.pop %v2610
    %v2612 = vmul.f32 %v2610, %v2611
    %v2613 = vsub.f32 1.0, %v2612
    %v2614 = vmul.f32 %v2611, %v2613
    %v2615 = vadd.f32 %v2611, %v2614
    %vm2616 = vweird.f32 %v2610
    %vm2617 = vweird.f32 %v2611
    %vm2618 = vmor %vm2616, %vm2617
    %v2619 = vsel %vm2618, %v2611, %v2615
    %v2620 = vand.u32 2147483647, %v2610
    %vm2621 = vcmp.eq.f32.partialorder %v2620, 8.507059e+37
    %v2622 = vand.u32 %v2610, 2147483648
    %v2623 = vor.u32 1.1754944e-38, %v2622
    %v2624 = vsel %vm2621, %v2623, %v2619
    %v2625 = vmul.f32 1.0, %v2624
    %v2626 = vxor.u32 %v2604, 2147483648
    %v2627 = vmul.f32 %v2626, 1.442695
    %v2628 = vpow.pop %v2627
    %v2629 = vadd.f32 %v2628, 1.0
    %v2630 = vrcp.pop %v2629
    %v2631 = vmul.f32 %v2629, %v2630
    %v2632 = vsub.f32 1.0, %v2631
    %v2633 = vmul.f32 %v2630, %v2632
    %v2634 = vadd.f32 %v2630, %v2633
    %vm2635 = vweird.f32 %v2629
    %vm2636 = vweird.f32 %v2630
    %vm2637 = vmor %vm2635, %vm2636
    %v2638 = vsel %vm2637, %v2630, %v2634
    %v2639 = vand.u32 2147483647, %v2629
    %vm2640 = vcmp.eq.f32.partialorder %v2639, 8.507059e+37
    %v2641 = vand.u32 %v2629, 2147483648
    %v2642 = vor.u32 1.1754944e-38, %v2641
    %v2643 = vsel %vm2640, %v2642, %v2638
    %v2644 = vmul.f32 1.0, %v2643
    %v2645 = vtanh.pop %v2605
    %v2646 = vxor.u32 %v2606, 2147483648
    %v2647 = vmul.f32 %v2646, 1.442695
    %v2648 = vpow.pop %v2647
    %v2649 = vadd.f32 %v2648, 1.0
    %v2650 = vrcp.pop %v2649
    %v2651 = vmul.f32 %v2649, %v2650
    %v2652 = vsub.f32 1.0, %v2651
    %v2653 = vmul.f32 %v2650, %v2652
    %v2654 = vadd.f32 %v2650, %v2653
    %vm2655 = vweird.f32 %v2649
    %vm2656 = vweird.f32 %v2650
    %vm2657 = vmor %vm2655, %vm2656
    %v2658 = vsel %vm2657, %v2650, %v2654
    %v2659 = vand.u32 2147483647, %v2649
    %vm2660 = vcmp.eq.f32.partialorder %v2659, 8.507059e+37
    %v2661 = vand.u32 %v2649, 2147483648
    %v2662 = vor.u32 1.1754944e-38, %v2661
    %v2663 = vsel %vm2660, %v2662, %v2658
    %v2664 = vmul.f32 1.0, %v2663
    %v2665 = vmul.f32 %v2644, %v2541
    %v2666 = vmul.f32 %v2625, %v2645
    %v2667 = vadd.f32 %v2665, %v2666
    %v2668 = vtanh.pop %v2667
    %v2669 = vmul.f32 %v2664, %v2668
    %v2670 = vpack.c.bf16 %v2669, %v2669
    %s2671 = scalar_lea.vmem %s9, 8
    %2672 = vst [vmem:[%s2671] sm:$0xf] %v2670
    %v2673 = vld [vmem:[%s1080] sm:$0xff]
    %v2674 = vld [vmem:[%s1080 + $0x8] sm:$0xff]
    %v2675 = vld [vmem:[%s1080 + $0x10] sm:$0xff]
    %v2676 = vld [vmem:[%s1080 + $0x18] sm:$0xff]
    %2677 = vmatpush.bf16.msra.mxu0 %v2264
    %2678 = vmatpush.bf16.msra.mxu0 %v2260
    %2679 = vmatpush.bf16.msra.mxu0 %v2256
    %2680 = vmatpush.bf16.msra.mxu0 %v2252
    %2681 = vmatpush.bf16.msra.mxu0 %v2248
    %2682 = vmatpush.bf16.msra.mxu0 %v2244
    %2683 = vmatpush.bf16.msra.mxu0 %v2240
    %2684 = vmatpush.bf16.msra.mxu0 %v2236
    %2685 = vmatmul.bf16.gmra.mxu0 %v2670
    %v2686 = vpop.f32.mrf.mxu0
    %v2687 = vadd.f32 0.0, %v2686
    %v2688 = vpop.f32.mrf.mxu0
    %2689 = vdwg.mxu0
    %2690 = vmatpush.bf16.msra.mxu0 %v2265
    %2691 = vmatpush.bf16.msra.mxu0 %v2261
    %2692 = vmatpush.bf16.msra.mxu0 %v2257
    %2693 = vmatpush.bf16.msra.mxu0 %v2253
    %2694 = vmatpush.bf16.msra.mxu0 %v2249
    %2695 = vmatpush.bf16.msra.mxu0 %v2245
    %2696 = vmatpush.bf16.msra.mxu0 %v2241
    %2697 = vmatpush.bf16.msra.mxu0 %v2237
    %2698 = vmatmul.bf16.gmra.mxu0 %v2670
    %v2699 = vpop.f32.mrf.mxu0
    %v2700 = vadd.f32 0.0, %v2699
    %v2701 = vpop.f32.mrf.mxu0
    %2702 = vdwg.mxu0
    %2703 = vmatpush.bf16.msra.mxu0 %v2266
    %2704 = vmatpush.bf16.msra.mxu0 %v2262
    %2705 = vmatpush.bf16.msra.mxu0 %v2258
    %2706 = vmatpush.bf16.msra.mxu0 %v2254
    %2707 = vmatpush.bf16.msra.mxu0 %v2250
    %2708 = vmatpush.bf16.msra.mxu0 %v2246
    %2709 = vmatpush.bf16.msra.mxu0 %v2242
    %2710 = vmatpush.bf16.msra.mxu0 %v2238
    %2711 = vmatmul.bf16.gmra.mxu0 %v2670
    %v2712 = vpop.f32.mrf.mxu0
    %v2713 = vadd.f32 0.0, %v2712
    %v2714 = vpop.f32.mrf.mxu0
    %2715 = vdwg.mxu0
    %2716 = vmatpush.bf16.msra.mxu0 %v2267
    %2717 = vmatpush.bf16.msra.mxu0 %v2263
    %2718 = vmatpush.bf16.msra.mxu0 %v2259
    %2719 = vmatpush.bf16.msra.mxu0 %v2255
    %2720 = vmatpush.bf16.msra.mxu0 %v2251
    %2721 = vmatpush.bf16.msra.mxu0 %v2247
    %2722 = vmatpush.bf16.msra.mxu0 %v2243
    %2723 = vmatpush.bf16.msra.mxu0 %v2239
    %2724 = vmatmul.bf16.gmra.mxu0 %v2670
    %v2725 = vpop.f32.mrf.mxu0
    %v2726 = vadd.f32 0.0, %v2725
    %v2727 = vpop.f32.mrf.mxu0
    %2728 = vdwg.mxu0
    %v2729 = vadd.f32 %v2673, %v2687
    %v2730 = vadd.f32 %v2674, %v2700
    %v2731 = vadd.f32 %v2675, %v2713
    %v2732 = vadd.f32 %v2676, %v2726
    %v2733 = vxor.u32 %v2729, 2147483648
    %v2734 = vmul.f32 %v2733, 1.442695
    %v2735 = vpow.pop %v2734
    %v2736 = vadd.f32 %v2735, 1.0
    %v2737 = vrcp.pop %v2736
    %v2738 = vmul.f32 %v2736, %v2737
    %v2739 = vsub.f32 1.0, %v2738
    %v2740 = vmul.f32 %v2737, %v2739
    %v2741 = vadd.f32 %v2737, %v2740
    %vm2742 = vweird.f32 %v2736
    %vm2743 = vweird.f32 %v2737
    %vm2744 = vmor %vm2742, %vm2743
    %v2745 = vsel %vm2744, %v2737, %v2741
    %v2746 = vand.u32 2147483647, %v2736
    %vm2747 = vcmp.eq.f32.partialorder %v2746, 8.507059e+37
    %v2748 = vand.u32 %v2736, 2147483648
    %v2749 = vor.u32 1.1754944e-38, %v2748
    %v2750 = vsel %vm2747, %v2749, %v2745
    %v2751 = vmul.f32 1.0, %v2750
    %v2752 = vxor.u32 %v2730, 2147483648
    %v2753 = vmul.f32 %v2752, 1.442695
    %v2754 = vpow.pop %v2753
    %v2755 = vadd.f32 %v2754, 1.0
    %v2756 = vrcp.pop %v2755
    %v2757 = vmul.f32 %v2755, %v2756
    %v2758 = vsub.f32 1.0, %v2757
    %v2759 = vmul.f32 %v2756, %v2758
    %v2760 = vadd.f32 %v2756, %v2759
    %vm2761 = vweird.f32 %v2755
    %vm2762 = vweird.f32 %v2756
    %vm2763 = vmor %vm2761, %vm2762
    %v2764 = vsel %vm2763, %v2756, %v2760
    %v2765 = vand.u32 2147483647, %v2755
    %vm2766 = vcmp.eq.f32.partialorder %v2765, 8.507059e+37
    %v2767 = vand.u32 %v2755, 2147483648
    %v2768 = vor.u32 1.1754944e-38, %v2767
    %v2769 = vsel %vm2766, %v2768, %v2764
    %v2770 = vmul.f32 1.0, %v2769
    %v2771 = vtanh.pop %v2731
    %v2772 = vxor.u32 %v2732, 2147483648
    %v2773 = vmul.f32 %v2772, 1.442695
    %v2774 = vpow.pop %v2773
    %v2775 = vadd.f32 %v2774, 1.0
    %v2776 = vrcp.pop %v2775
    %v2777 = vmul.f32 %v2775, %v2776
    %v2778 = vsub.f32 1.0, %v2777
    %v2779 = vmul.f32 %v2776, %v2778
    %v2780 = vadd.f32 %v2776, %v2779
    %vm2781 = vweird.f32 %v2775
    %vm2782 = vweird.f32 %v2776
    %vm2783 = vmor %vm2781, %vm2782
    %v2784 = vsel %vm2783, %v2776, %v2780
    %v2785 = vand.u32 2147483647, %v2775
    %vm2786 = vcmp.eq.f32.partialorder %v2785, 8.507059e+37
    %v2787 = vand.u32 %v2775, 2147483648
    %v2788 = vor.u32 1.1754944e-38, %v2787
    %v2789 = vsel %vm2786, %v2788, %v2784
    %v2790 = vmul.f32 1.0, %v2789
    %v2791 = vmul.f32 %v2770, %v2667
    %v2792 = vmul.f32 %v2751, %v2771
    %v2793 = vadd.f32 %v2791, %v2792
    %v2794 = vtanh.pop %v2793
    %v2795 = vmul.f32 %v2790, %v2794
    %v2796 = vpack.c.bf16 %v2795, %v2795
    %s2797 = scalar_lea.vmem %s9, 12
    %2798 = vst [vmem:[%s2797] sm:$0xf] %v2796
    %v2799 = vld [vmem:[%s1207] sm:$0xff]
    %v2800 = vld [vmem:[%s1207 + $0x8] sm:$0xff]
    %v2801 = vld [vmem:[%s1207 + $0x10] sm:$0xff]
    %v2802 = vld [vmem:[%s1207 + $0x18] sm:$0xff]
    %2803 = vmatpush.bf16.msra.mxu0 %v2264
    %2804 = vmatpush.bf16.msra.mxu0 %v2260
    %2805 = vmatpush.bf16.msra.mxu0 %v2256
    %2806 = vmatpush.bf16.msra.mxu0 %v2252
    %2807 = vmatpush.bf16.msra.mxu0 %v2248
    %2808 = vmatpush.bf16.msra.mxu0 %v2244
    %2809 = vmatpush.bf16.msra.mxu0 %v2240
    %2810 = vmatpush.bf16.msra.mxu0 %v2236
    %2811 = vmatmul.bf16.gmra.mxu0 %v2796
    %v2812 = vpop.f32.mrf.mxu0
    %v2813 = vadd.f32 0.0, %v2812
    %v2814 = vpop.f32.mrf.mxu0
    %2815 = vdwg.mxu0
    %2816 = vmatpush.bf16.msra.mxu0 %v2265
    %2817 = vmatpush.bf16.msra.mxu0 %v2261
    %2818 = vmatpush.bf16.msra.mxu0 %v2257
    %2819 = vmatpush.bf16.msra.mxu0 %v2253
    %2820 = vmatpush.bf16.msra.mxu0 %v2249
    %2821 = vmatpush.bf16.msra.mxu0 %v2245
    %2822 = vmatpush.bf16.msra.mxu0 %v2241
    %2823 = vmatpush.bf16.msra.mxu0 %v2237
    %2824 = vmatmul.bf16.gmra.mxu0 %v2796
    %v2825 = vpop.f32.mrf.mxu0
    %v2826 = vadd.f32 0.0, %v2825
    %v2827 = vpop.f32.mrf.mxu0
    %2828 = vdwg.mxu0
    %2829 = vmatpush.bf16.msra.mxu0 %v2266
    %2830 = vmatpush.bf16.msra.mxu0 %v2262
    %2831 = vmatpush.bf16.msra.mxu0 %v2258
    %2832 = vmatpush.bf16.msra.mxu0 %v2254
    %2833 = vmatpush.bf16.msra.mxu0 %v2250
    %2834 = vmatpush.bf16.msra.mxu0 %v2246
    %2835 = vmatpush.bf16.msra.mxu0 %v2242
    %2836 = vmatpush.bf16.msra.mxu0 %v2238
    %2837 = vmatmul.bf16.gmra.mxu0 %v2796
    %v2838 = vpop.f32.mrf.mxu0
    %v2839 = vadd.f32 0.0, %v2838
    %v2840 = vpop.f32.mrf.mxu0
    %2841 = vdwg.mxu0
    %2842 = vmatpush.bf16.msra.mxu0 %v2267
    %2843 = vmatpush.bf16.msra.mxu0 %v2263
    %2844 = vmatpush.bf16.msra.mxu0 %v2259
    %2845 = vmatpush.bf16.msra.mxu0 %v2255
    %2846 = vmatpush.bf16.msra.mxu0 %v2251
    %2847 = vmatpush.bf16.msra.mxu0 %v2247
    %2848 = vmatpush.bf16.msra.mxu0 %v2243
    %2849 = vmatpush.bf16.msra.mxu0 %v2239
    %2850 = vmatmul.bf16.gmra.mxu0 %v2796
    %v2851 = vpop.f32.mrf.mxu0
    %v2852 = vadd.f32 0.0, %v2851
    %v2853 = vpop.f32.mrf.mxu0
    %2854 = vdwg.mxu0
    %v2855 = vadd.f32 %v2799, %v2813
    %v2856 = vadd.f32 %v2800, %v2826
    %v2857 = vadd.f32 %v2801, %v2839
    %v2858 = vadd.f32 %v2802, %v2852
    %v2859 = vxor.u32 %v2855, 2147483648
    %v2860 = vmul.f32 %v2859, 1.442695
    %v2861 = vpow.pop %v2860
    %v2862 = vadd.f32 %v2861, 1.0
    %v2863 = vrcp.pop %v2862
    %v2864 = vmul.f32 %v2862, %v2863
    %v2865 = vsub.f32 1.0, %v2864
    %v2866 = vmul.f32 %v2863, %v2865
    %v2867 = vadd.f32 %v2863, %v2866
    %vm2868 = vweird.f32 %v2862
    %vm2869 = vweird.f32 %v2863
    %vm2870 = vmor %vm2868, %vm2869
    %v2871 = vsel %vm2870, %v2863, %v2867
    %v2872 = vand.u32 2147483647, %v2862
    %vm2873 = vcmp.eq.f32.partialorder %v2872, 8.507059e+37
    %v2874 = vand.u32 %v2862, 2147483648
    %v2875 = vor.u32 1.1754944e-38, %v2874
    %v2876 = vsel %vm2873, %v2875, %v2871
    %v2877 = vmul.f32 1.0, %v2876
    %v2878 = vxor.u32 %v2856, 2147483648
    %v2879 = vmul.f32 %v2878, 1.442695
    %v2880 = vpow.pop %v2879
    %v2881 = vadd.f32 %v2880, 1.0
    %v2882 = vrcp.pop %v2881
    %v2883 = vmul.f32 %v2881, %v2882
    %v2884 = vsub.f32 1.0, %v2883
    %v2885 = vmul.f32 %v2882, %v2884
    %v2886 = vadd.f32 %v2882, %v2885
    %vm2887 = vweird.f32 %v2881
    %vm2888 = vweird.f32 %v2882
    %vm2889 = vmor %vm2887, %vm2888
    %v2890 = vsel %vm2889, %v2882, %v2886
    %v2891 = vand.u32 2147483647, %v2881
    %vm2892 = vcmp.eq.f32.partialorder %v2891, 8.507059e+37
    %v2893 = vand.u32 %v2881, 2147483648
    %v2894 = vor.u32 1.1754944e-38, %v2893
    %v2895 = vsel %vm2892, %v2894, %v2890
    %v2896 = vmul.f32 1.0, %v2895
    %v2897 = vtanh.pop %v2857
    %v2898 = vxor.u32 %v2858, 2147483648
    %v2899 = vmul.f32 %v2898, 1.442695
    %v2900 = vpow.pop %v2899
    %v2901 = vadd.f32 %v2900, 1.0
    %v2902 = vrcp.pop %v2901
    %v2903 = vmul.f32 %v2901, %v2902
    %v2904 = vsub.f32 1.0, %v2903
    %v2905 = vmul.f32 %v2902, %v2904
    %v2906 = vadd.f32 %v2902, %v2905
    %vm2907 = vweird.f32 %v2901
    %vm2908 = vweird.f32 %v2902
    %vm2909 = vmor %vm2907, %vm2908
    %v2910 = vsel %vm2909, %v2902, %v2906
    %v2911 = vand.u32 2147483647, %v2901
    %vm2912 = vcmp.eq.f32.partialorder %v2911, 8.507059e+37
    %v2913 = vand.u32 %v2901, 2147483648
    %v2914 = vor.u32 1.1754944e-38, %v2913
    %v2915 = vsel %vm2912, %v2914, %v2910
    %v2916 = vmul.f32 1.0, %v2915
    %v2917 = vmul.f32 %v2896, %v2793
    %v2918 = vmul.f32 %v2877, %v2897
    %v2919 = vadd.f32 %v2917, %v2918
    %v2920 = vtanh.pop %v2919
    %v2921 = vmul.f32 %v2916, %v2920
    %v2922 = vpack.c.bf16 %v2921, %v2921
    %s2923 = scalar_lea.vmem %s9, 16
    %2924 = vst [vmem:[%s2923] sm:$0xf] %v2922
    %v2925 = vld [vmem:[%s1334] sm:$0xff]
    %v2926 = vld [vmem:[%s1334 + $0x8] sm:$0xff]
    %v2927 = vld [vmem:[%s1334 + $0x10] sm:$0xff]
    %v2928 = vld [vmem:[%s1334 + $0x18] sm:$0xff]
    %2929 = vmatpush.bf16.msra.mxu0 %v2264
    %2930 = vmatpush.bf16.msra.mxu0 %v2260
    %2931 = vmatpush.bf16.msra.mxu0 %v2256
    %2932 = vmatpush.bf16.msra.mxu0 %v2252
    %2933 = vmatpush.bf16.msra.mxu0 %v2248
    %2934 = vmatpush.bf16.msra.mxu0 %v2244
    %2935 = vmatpush.bf16.msra.mxu0 %v2240
    %2936 = vmatpush.bf16.msra.mxu0 %v2236
    %2937 = vmatmul.bf16.gmra.mxu0 %v2922
    %v2938 = vpop.f32.mrf.mxu0
    %v2939 = vadd.f32 0.0, %v2938
    %v2940 = vpop.f32.mrf.mxu0
    %2941 = vdwg.mxu0
    %2942 = vmatpush.bf16.msra.mxu0 %v2265
    %2943 = vmatpush.bf16.msra.mxu0 %v2261
    %2944 = vmatpush.bf16.msra.mxu0 %v2257
    %2945 = vmatpush.bf16.msra.mxu0 %v2253
    %2946 = vmatpush.bf16.msra.mxu0 %v2249
    %2947 = vmatpush.bf16.msra.mxu0 %v2245
    %2948 = vmatpush.bf16.msra.mxu0 %v2241
    %2949 = vmatpush.bf16.msra.mxu0 %v2237
    %2950 = vmatmul.bf16.gmra.mxu0 %v2922
    %v2951 = vpop.f32.mrf.mxu0
    %v2952 = vadd.f32 0.0, %v2951
    %v2953 = vpop.f32.mrf.mxu0
    %2954 = vdwg.mxu0
    %2955 = vmatpush.bf16.msra.mxu0 %v2266
    %2956 = vmatpush.bf16.msra.mxu0 %v2262
    %2957 = vmatpush.bf16.msra.mxu0 %v2258
    %2958 = vmatpush.bf16.msra.mxu0 %v2254
    %2959 = vmatpush.bf16.msra.mxu0 %v2250
    %2960 = vmatpush.bf16.msra.mxu0 %v2246
    %2961 = vmatpush.bf16.msra.mxu0 %v2242
    %2962 = vmatpush.bf16.msra.mxu0 %v2238
    %2963 = vmatmul.bf16.gmra.mxu0 %v2922
    %v2964 = vpop.f32.mrf.mxu0
    %v2965 = vadd.f32 0.0, %v2964
    %v2966 = vpop.f32.mrf.mxu0
    %2967 = vdwg.mxu0
    %2968 = vmatpush.bf16.msra.mxu0 %v2267
    %2969 = vmatpush.bf16.msra.mxu0 %v2263
    %2970 = vmatpush.bf16.msra.mxu0 %v2259
    %2971 = vmatpush.bf16.msra.mxu0 %v2255
    %2972 = vmatpush.bf16.msra.mxu0 %v2251
    %2973 = vmatpush.bf16.msra.mxu0 %v2247
    %2974 = vmatpush.bf16.msra.mxu0 %v2243
    %2975 = vmatpush.bf16.msra.mxu0 %v2239
    %2976 = vmatmul.bf16.gmra.mxu0 %v2922
    %v2977 = vpop.f32.mrf.mxu0
    %v2978 = vadd.f32 0.0, %v2977
    %v2979 = vpop.f32.mrf.mxu0
    %2980 = vdwg.mxu0
    %v2981 = vadd.f32 %v2925, %v2939
    %v2982 = vadd.f32 %v2926, %v2952
    %v2983 = vadd.f32 %v2927, %v2965
    %v2984 = vadd.f32 %v2928, %v2978
    %v2985 = vxor.u32 %v2981, 2147483648
    %v2986 = vmul.f32 %v2985, 1.442695
    %v2987 = vpow.pop %v2986
    %v2988 = vadd.f32 %v2987, 1.0
    %v2989 = vrcp.pop %v2988
    %v2990 = vmul.f32 %v2988, %v2989
    %v2991 = vsub.f32 1.0, %v2990
    %v2992 = vmul.f32 %v2989, %v2991
    %v2993 = vadd.f32 %v2989, %v2992
    %vm2994 = vweird.f32 %v2988
    %vm2995 = vweird.f32 %v2989
    %vm2996 = vmor %vm2994, %vm2995
    %v2997 = vsel %vm2996, %v2989, %v2993
    %v2998 = vand.u32 2147483647, %v2988
    %vm2999 = vcmp.eq.f32.partialorder %v2998, 8.507059e+37
    %v3000 = vand.u32 %v2988, 2147483648
    %v3001 = vor.u32 1.1754944e-38, %v3000
    %v3002 = vsel %vm2999, %v3001, %v2997
    %v3003 = vmul.f32 1.0, %v3002
    %v3004 = vxor.u32 %v2982, 2147483648
    %v3005 = vmul.f32 %v3004, 1.442695
    %v3006 = vpow.pop %v3005
    %v3007 = vadd.f32 %v3006, 1.0
    %v3008 = vrcp.pop %v3007
    %v3009 = vmul.f32 %v3007, %v3008
    %v3010 = vsub.f32 1.0, %v3009
    %v3011 = vmul.f32 %v3008, %v3010
    %v3012 = vadd.f32 %v3008, %v3011
    %vm3013 = vweird.f32 %v3007
    %vm3014 = vweird.f32 %v3008
    %vm3015 = vmor %vm3013, %vm3014
    %v3016 = vsel %vm3015, %v3008, %v3012
    %v3017 = vand.u32 2147483647, %v3007
    %vm3018 = vcmp.eq.f32.partialorder %v3017, 8.507059e+37
    %v3019 = vand.u32 %v3007, 2147483648
    %v3020 = vor.u32 1.1754944e-38, %v3019
    %v3021 = vsel %vm3018, %v3020, %v3016
    %v3022 = vmul.f32 1.0, %v3021
    %v3023 = vtanh.pop %v2983
    %v3024 = vxor.u32 %v2984, 2147483648
    %v3025 = vmul.f32 %v3024, 1.442695
    %v3026 = vpow.pop %v3025
    %v3027 = vadd.f32 %v3026, 1.0
    %v3028 = vrcp.pop %v3027
    %v3029 = vmul.f32 %v3027, %v3028
    %v3030 = vsub.f32 1.0, %v3029
    %v3031 = vmul.f32 %v3028, %v3030
    %v3032 = vadd.f32 %v3028, %v3031
    %vm3033 = vweird.f32 %v3027
    %vm3034 = vweird.f32 %v3028
    %vm3035 = vmor %vm3033, %vm3034
    %v3036 = vsel %vm3035, %v3028, %v3032
    %v3037 = vand.u32 2147483647, %v3027
    %vm3038 = vcmp.eq.f32.partialorder %v3037, 8.507059e+37
    %v3039 = vand.u32 %v3027, 2147483648
    %v3040 = vor.u32 1.1754944e-38, %v3039
    %v3041 = vsel %vm3038, %v3040, %v3036
    %v3042 = vmul.f32 1.0, %v3041
    %v3043 = vmul.f32 %v3022, %v2919
    %v3044 = vmul.f32 %v3003, %v3023
    %v3045 = vadd.f32 %v3043, %v3044
    %v3046 = vtanh.pop %v3045
    %v3047 = vmul.f32 %v3042, %v3046
    %v3048 = vpack.c.bf16 %v3047, %v3047
    %s3049 = scalar_lea.vmem %s9, 20
    %3050 = vst [vmem:[%s3049] sm:$0xf] %v3048
    %v3051 = vld [vmem:[%s1461] sm:$0xff]
    %v3052 = vld [vmem:[%s1461 + $0x8] sm:$0xff]
    %v3053 = vld [vmem:[%s1461 + $0x10] sm:$0xff]
    %v3054 = vld [vmem:[%s1461 + $0x18] sm:$0xff]
    %3055 = vmatpush.bf16.msra.mxu0 %v2264
    %3056 = vmatpush.bf16.msra.mxu0 %v2260
    %3057 = vmatpush.bf16.msra.mxu0 %v2256
    %3058 = vmatpush.bf16.msra.mxu0 %v2252
    %3059 = vmatpush.bf16.msra.mxu0 %v2248
    %3060 = vmatpush.bf16.msra.mxu0 %v2244
    %3061 = vmatpush.bf16.msra.mxu0 %v2240
    %3062 = vmatpush.bf16.msra.mxu0 %v2236
    %3063 = vmatmul.bf16.gmra.mxu0 %v3048
    %v3064 = vpop.f32.mrf.mxu0
    %v3065 = vadd.f32 0.0, %v3064
    %v3066 = vpop.f32.mrf.mxu0
    %3067 = vdwg.mxu0
    %3068 = vmatpush.bf16.msra.mxu0 %v2265
    %3069 = vmatpush.bf16.msra.mxu0 %v2261
    %3070 = vmatpush.bf16.msra.mxu0 %v2257
    %3071 = vmatpush.bf16.msra.mxu0 %v2253
    %3072 = vmatpush.bf16.msra.mxu0 %v2249
    %3073 = vmatpush.bf16.msra.mxu0 %v2245
    %3074 = vmatpush.bf16.msra.mxu0 %v2241
    %3075 = vmatpush.bf16.msra.mxu0 %v2237
    %3076 = vmatmul.bf16.gmra.mxu0 %v3048
    %v3077 = vpop.f32.mrf.mxu0
    %v3078 = vadd.f32 0.0, %v3077
    %v3079 = vpop.f32.mrf.mxu0
    %3080 = vdwg.mxu0
    %3081 = vmatpush.bf16.msra.mxu0 %v2266
    %3082 = vmatpush.bf16.msra.mxu0 %v2262
    %3083 = vmatpush.bf16.msra.mxu0 %v2258
    %3084 = vmatpush.bf16.msra.mxu0 %v2254
    %3085 = vmatpush.bf16.msra.mxu0 %v2250
    %3086 = vmatpush.bf16.msra.mxu0 %v2246
    %3087 = vmatpush.bf16.msra.mxu0 %v2242
    %3088 = vmatpush.bf16.msra.mxu0 %v2238
    %3089 = vmatmul.bf16.gmra.mxu0 %v3048
    %v3090 = vpop.f32.mrf.mxu0
    %v3091 = vadd.f32 0.0, %v3090
    %v3092 = vpop.f32.mrf.mxu0
    %3093 = vdwg.mxu0
    %3094 = vmatpush.bf16.msra.mxu0 %v2267
    %3095 = vmatpush.bf16.msra.mxu0 %v2263
    %3096 = vmatpush.bf16.msra.mxu0 %v2259
    %3097 = vmatpush.bf16.msra.mxu0 %v2255
    %3098 = vmatpush.bf16.msra.mxu0 %v2251
    %3099 = vmatpush.bf16.msra.mxu0 %v2247
    %3100 = vmatpush.bf16.msra.mxu0 %v2243
    %3101 = vmatpush.bf16.msra.mxu0 %v2239
    %3102 = vmatmul.bf16.gmra.mxu0 %v3048
    %v3103 = vpop.f32.mrf.mxu0
    %v3104 = vadd.f32 0.0, %v3103
    %v3105 = vpop.f32.mrf.mxu0
    %3106 = vdwg.mxu0
    %v3107 = vadd.f32 %v3051, %v3065
    %v3108 = vadd.f32 %v3052, %v3078
    %v3109 = vadd.f32 %v3053, %v3091
    %v3110 = vadd.f32 %v3054, %v3104
    %v3111 = vxor.u32 %v3107, 2147483648
    %v3112 = vmul.f32 %v3111, 1.442695
    %v3113 = vpow.pop %v3112
    %v3114 = vadd.f32 %v3113, 1.0
    %v3115 = vrcp.pop %v3114
    %v3116 = vmul.f32 %v3114, %v3115
    %v3117 = vsub.f32 1.0, %v3116
    %v3118 = vmul.f32 %v3115, %v3117
    %v3119 = vadd.f32 %v3115, %v3118
    %vm3120 = vweird.f32 %v3114
    %vm3121 = vweird.f32 %v3115
    %vm3122 = vmor %vm3120, %vm3121
    %v3123 = vsel %vm3122, %v3115, %v3119
    %v3124 = vand.u32 2147483647, %v3114
    %vm3125 = vcmp.eq.f32.partialorder %v3124, 8.507059e+37
    %v3126 = vand.u32 %v3114, 2147483648
    %v3127 = vor.u32 1.1754944e-38, %v3126
    %v3128 = vsel %vm3125, %v3127, %v3123
    %v3129 = vmul.f32 1.0, %v3128
    %v3130 = vxor.u32 %v3108, 2147483648
    %v3131 = vmul.f32 %v3130, 1.442695
    %v3132 = vpow.pop %v3131
    %v3133 = vadd.f32 %v3132, 1.0
    %v3134 = vrcp.pop %v3133
    %v3135 = vmul.f32 %v3133, %v3134
    %v3136 = vsub.f32 1.0, %v3135
    %v3137 = vmul.f32 %v3134, %v3136
    %v3138 = vadd.f32 %v3134, %v3137
    %vm3139 = vweird.f32 %v3133
    %vm3140 = vweird.f32 %v3134
    %vm3141 = vmor %vm3139, %vm3140
    %v3142 = vsel %vm3141, %v3134, %v3138
    %v3143 = vand.u32 2147483647, %v3133
    %vm3144 = vcmp.eq.f32.partialorder %v3143, 8.507059e+37
    %v3145 = vand.u32 %v3133, 2147483648
    %v3146 = vor.u32 1.1754944e-38, %v3145
    %v3147 = vsel %vm3144, %v3146, %v3142
    %v3148 = vmul.f32 1.0, %v3147
    %v3149 = vtanh.pop %v3109
    %v3150 = vxor.u32 %v3110, 2147483648
    %v3151 = vmul.f32 %v3150, 1.442695
    %v3152 = vpow.pop %v3151
    %v3153 = vadd.f32 %v3152, 1.0
    %v3154 = vrcp.pop %v3153
    %v3155 = vmul.f32 %v3153, %v3154
    %v3156 = vsub.f32 1.0, %v3155
    %v3157 = vmul.f32 %v3154, %v3156
    %v3158 = vadd.f32 %v3154, %v3157
    %vm3159 = vweird.f32 %v3153
    %vm3160 = vweird.f32 %v3154
    %vm3161 = vmor %vm3159, %vm3160
    %v3162 = vsel %vm3161, %v3154, %v3158
    %v3163 = vand.u32 2147483647, %v3153
    %vm3164 = vcmp.eq.f32.partialorder %v3163, 8.507059e+37
    %v3165 = vand.u32 %v3153, 2147483648
    %v3166 = vor.u32 1.1754944e-38, %v3165
    %v3167 = vsel %vm3164, %v3166, %v3162
    %v3168 = vmul.f32 1.0, %v3167
    %v3169 = vmul.f32 %v3148, %v3045
    %v3170 = vmul.f32 %v3129, %v3149
    %v3171 = vadd.f32 %v3169, %v3170
    %v3172 = vtanh.pop %v3171
    %v3173 = vmul.f32 %v3168, %v3172
    %v3174 = vpack.c.bf16 %v3173, %v3173
    %s3175 = scalar_lea.vmem %s9, 24
    %3176 = vst [vmem:[%s3175] sm:$0xf] %v3174
    %v3177 = vld [vmem:[%s1588] sm:$0xff]
    %v3178 = vld [vmem:[%s1588 + $0x8] sm:$0xff]
    %v3179 = vld [vmem:[%s1588 + $0x10] sm:$0xff]
    %v3180 = vld [vmem:[%s1588 + $0x18] sm:$0xff]
    %3181 = vmatpush.bf16.msra.mxu0 %v2264
    %3182 = vmatpush.bf16.msra.mxu0 %v2260
    %3183 = vmatpush.bf16.msra.mxu0 %v2256
    %3184 = vmatpush.bf16.msra.mxu0 %v2252
    %3185 = vmatpush.bf16.msra.mxu0 %v2248
    %3186 = vmatpush.bf16.msra.mxu0 %v2244
    %3187 = vmatpush.bf16.msra.mxu0 %v2240
    %3188 = vmatpush.bf16.msra.mxu0 %v2236
    %3189 = vmatmul.bf16.gmra.mxu0 %v3174
    %v3190 = vpop.f32.mrf.mxu0
    %v3191 = vadd.f32 0.0, %v3190
    %v3192 = vpop.f32.mrf.mxu0
    %3193 = vdwg.mxu0
    %3194 = vmatpush.bf16.msra.mxu0 %v2265
    %3195 = vmatpush.bf16.msra.mxu0 %v2261
    %3196 = vmatpush.bf16.msra.mxu0 %v2257
    %3197 = vmatpush.bf16.msra.mxu0 %v2253
    %3198 = vmatpush.bf16.msra.mxu0 %v2249
    %3199 = vmatpush.bf16.msra.mxu0 %v2245
    %3200 = vmatpush.bf16.msra.mxu0 %v2241
    %3201 = vmatpush.bf16.msra.mxu0 %v2237
    %3202 = vmatmul.bf16.gmra.mxu0 %v3174
    %v3203 = vpop.f32.mrf.mxu0
    %v3204 = vadd.f32 0.0, %v3203
    %v3205 = vpop.f32.mrf.mxu0
    %3206 = vdwg.mxu0
    %3207 = vmatpush.bf16.msra.mxu0 %v2266
    %3208 = vmatpush.bf16.msra.mxu0 %v2262
    %3209 = vmatpush.bf16.msra.mxu0 %v2258
    %3210 = vmatpush.bf16.msra.mxu0 %v2254
    %3211 = vmatpush.bf16.msra.mxu0 %v2250
    %3212 = vmatpush.bf16.msra.mxu0 %v2246
    %3213 = vmatpush.bf16.msra.mxu0 %v2242
    %3214 = vmatpush.bf16.msra.mxu0 %v2238
    %3215 = vmatmul.bf16.gmra.mxu0 %v3174
    %v3216 = vpop.f32.mrf.mxu0
    %v3217 = vadd.f32 0.0, %v3216
    %v3218 = vpop.f32.mrf.mxu0
    %3219 = vdwg.mxu0
    %3220 = vmatpush.bf16.msra.mxu0 %v2267
    %3221 = vmatpush.bf16.msra.mxu0 %v2263
    %3222 = vmatpush.bf16.msra.mxu0 %v2259
    %3223 = vmatpush.bf16.msra.mxu0 %v2255
    %3224 = vmatpush.bf16.msra.mxu0 %v2251
    %3225 = vmatpush.bf16.msra.mxu0 %v2247
    %3226 = vmatpush.bf16.msra.mxu0 %v2243
    %3227 = vmatpush.bf16.msra.mxu0 %v2239
    %3228 = vmatmul.bf16.gmra.mxu0 %v3174
    %v3229 = vpop.f32.mrf.mxu0
    %v3230 = vadd.f32 0.0, %v3229
    %v3231 = vpop.f32.mrf.mxu0
    %3232 = vdwg.mxu0
    %v3233 = vadd.f32 %v3177, %v3191
    %v3234 = vadd.f32 %v3178, %v3204
    %v3235 = vadd.f32 %v3179, %v3217
    %v3236 = vadd.f32 %v3180, %v3230
    %v3237 = vxor.u32 %v3233, 2147483648
    %v3238 = vmul.f32 %v3237, 1.442695
    %v3239 = vpow.pop %v3238
    %v3240 = vadd.f32 %v3239, 1.0
    %v3241 = vrcp.pop %v3240
    %v3242 = vmul.f32 %v3240, %v3241
    %v3243 = vsub.f32 1.0, %v3242
    %v3244 = vmul.f32 %v3241, %v3243
    %v3245 = vadd.f32 %v3241, %v3244
    %vm3246 = vweird.f32 %v3240
    %vm3247 = vweird.f32 %v3241
    %vm3248 = vmor %vm3246, %vm3247
    %v3249 = vsel %vm3248, %v3241, %v3245
    %v3250 = vand.u32 2147483647, %v3240
    %vm3251 = vcmp.eq.f32.partialorder %v3250, 8.507059e+37
    %v3252 = vand.u32 %v3240, 2147483648
    %v3253 = vor.u32 1.1754944e-38, %v3252
    %v3254 = vsel %vm3251, %v3253, %v3249
    %v3255 = vmul.f32 1.0, %v3254
    %v3256 = vxor.u32 %v3234, 2147483648
    %v3257 = vmul.f32 %v3256, 1.442695
    %v3258 = vpow.pop %v3257
    %v3259 = vadd.f32 %v3258, 1.0
    %v3260 = vrcp.pop %v3259
    %v3261 = vmul.f32 %v3259, %v3260
    %v3262 = vsub.f32 1.0, %v3261
    %v3263 = vmul.f32 %v3260, %v3262
    %v3264 = vadd.f32 %v3260, %v3263
    %vm3265 = vweird.f32 %v3259
    %vm3266 = vweird.f32 %v3260
    %vm3267 = vmor %vm3265, %vm3266
    %v3268 = vsel %vm3267, %v3260, %v3264
    %v3269 = vand.u32 2147483647, %v3259
    %vm3270 = vcmp.eq.f32.partialorder %v3269, 8.507059e+37
    %v3271 = vand.u32 %v3259, 2147483648
    %v3272 = vor.u32 1.1754944e-38, %v3271
    %v3273 = vsel %vm3270, %v3272, %v3268
    %v3274 = vmul.f32 1.0, %v3273
    %v3275 = vtanh.pop %v3235
    %v3276 = vxor.u32 %v3236, 2147483648
    %v3277 = vmul.f32 %v3276, 1.442695
    %v3278 = vpow.pop %v3277
    %v3279 = vadd.f32 %v3278, 1.0
    %v3280 = vrcp.pop %v3279
    %v3281 = vmul.f32 %v3279, %v3280
    %v3282 = vsub.f32 1.0, %v3281
    %v3283 = vmul.f32 %v3280, %v3282
    %v3284 = vadd.f32 %v3280, %v3283
    %vm3285 = vweird.f32 %v3279
    %vm3286 = vweird.f32 %v3280
    %vm3287 = vmor %vm3285, %vm3286
    %v3288 = vsel %vm3287, %v3280, %v3284
    %v3289 = vand.u32 2147483647, %v3279
    %vm3290 = vcmp.eq.f32.partialorder %v3289, 8.507059e+37
    %v3291 = vand.u32 %v3279, 2147483648
    %v3292 = vor.u32 1.1754944e-38, %v3291
    %v3293 = vsel %vm3290, %v3292, %v3288
    %v3294 = vmul.f32 1.0, %v3293
    %v3295 = vmul.f32 %v3274, %v3171
    %v3296 = vmul.f32 %v3255, %v3275
    %v3297 = vadd.f32 %v3295, %v3296
    %v3298 = vtanh.pop %v3297
    %v3299 = vmul.f32 %v3294, %v3298
    %v3300 = vpack.c.bf16 %v3299, %v3299
    %s3301 = scalar_lea.vmem %s9, 28
    %3302 = vst [vmem:[%s3301] sm:$0xf] %v3300
    %s3303 = scalar_lea.vmem %s10, 8
    %3304 = vst [vmem:[%s3303] sm:$0xff] %v3299
    %s3305 = scalar_lea.vmem %s11, 8
    %3306 = vst [vmem:[%s3305] sm:$0xff] %v3297
    // Predicated region
    $region54: #{generator_forward.2} parent=1 // pred_check
      _
    $region55: #{generator_forward.2} parent=1 // pred_check_branch
      %3308 = sbr.rel (0) target = $region57
    $region56: #{generator_forward.2} parent=1 // pred_region
      _
    $region57: #{generator_forward.2} parent=1 // pred_fallthru
      _
    // Predicated region
    $region58: #{generator_forward.2} parent=1 // pred_check
      _
    $region59: #{generator_forward.2} parent=1 // pred_check_branch
      %3310 = sbr.rel (0) target = $region61
    $region60: #{generator_forward.2} parent=1 // pred_region
      _
    $region61: #{generator_forward.2} parent=1 // pred_fallthru
      _
    // Predicated region
    $region62: #{generator_forward.2} parent=1 // pred_check
      _
    $region63: #{generator_forward.2} parent=1 // pred_check_branch
      %3312 = sbr.rel (0) target = $region65
    $region64: #{generator_forward.2} parent=1 // pred_region
      _
    $region65: #{generator_forward.2} parent=1 // pred_fallthru
      _
    // Predicated region
    $region66: #{generator_forward.2} parent=1 // pred_check
      _
    $region67: #{generator_forward.2} parent=1 // pred_check_branch
      %3314 = sbr.rel (0) target = $region69
    $region68: #{generator_forward.2} parent=1 // pred_region
      _
    $region69: #{generator_forward.2} parent=1 // pred_fallthru
      _
    // Predicated region
    $region70: #{generator_forward.2} parent=1 // pred_check
      _
    $region71: #{generator_forward.2} parent=1 // pred_check_branch
      %3316 = sbr.rel (0) target = $region73
    $region72: #{generator_forward.2} parent=1 // pred_region
      _
    $region73: #{generator_forward.2} parent=1 // pred_fallthru
      _
    // Predicated region
    $region74: #{generator_forward.2} parent=1 // pred_check
      _
    $region75: #{generator_forward.2} parent=1 // pred_check_branch
      %3318 = sbr.rel (0) target = $region77
    $region76: #{generator_forward.2} parent=1 // pred_region
      _
    $region77: #{generator_forward.2} parent=1 // pred_fallthru
      _
    %3319 = vsyncpa [#allocation5], 1
    %3320 = vsyncpa [#allocation7], 1
    %3321 = vsyncpa [#allocation10], 1

</llo_original>
